<compile_context>
chip_gen: v7x
topology: tpu7x:2x2x1
jax: 0.10.0
libtpu: 0.0.40
codegen_flags: <defaults>
</compile_context>

<pallas_src>
import numpy as np
import jax
import jax.numpy as jnp
from jax.experimental import pallas as pl
from jax.experimental.pallas import tpu as pltpu

EPS = 1e-5


def _bn_scale_shift(bn):
    scale = bn["gamma"] / jnp.sqrt(bn["var"] + EPS)
    shift = bn["beta"] - bn["mean"] * scale
    return scale, shift


def _round_up(n, m):
    return ((n + m - 1) // m) * m


# --------------------------- parameter packing -------------------------------

class _SlabPacker:
    """Packs 2-D matrices (1-D vectors become (n,1) columns) into one slab.

    Every entry starts at an 8-aligned row offset so in-kernel slices are
    sublane-aligned. finalize() pads all entries to a common lane width.
    """

    def __init__(self):
        self.items = []
        self.off = 0

    def add(self, a):
        a = jnp.asarray(a, jnp.float32)
        if a.ndim == 1:
            a = a.reshape(-1, 1)
        r, c = a.shape
        off = self.off
        self.items.append(a)
        self.off += _round_up(r, 8)
        return (off, r, c)

    def finalize(self, lane_multiple):
        width = _round_up(max(a.shape[1] for a in self.items), lane_multiple)
        rows = []
        for a in self.items:
            r, c = a.shape
            rows.append(jnp.pad(a, ((0, _round_up(r, 8) - r), (0, width - c))))
        return jnp.concatenate(rows, axis=0)


def _pack_params(params, B, Lin):
    """One-time packing of all weights into two slabs + a static 'plan' of
    slab offsets that the kernel closure consumes at trace time."""
    vecs = _SlabPacker()
    mats = _SlabPacker()

    stem = params["stem"]
    w = stem["conv"]["w"]                       # (F, Cin, K)
    F, Cin, K = w.shape
    Lc = (Lin - K) // 2 + 1                     # Conv1d(., ., 7, stride=2), pad=0
    L = Lc // 3                                 # MaxPool1d(3, 3), floor
    scale, shift = _bn_scale_shift(stem["bn"])

    plan = {
        "Cin": Cin, "K": K, "F": F, "L_stem": L,
        "stem": {
            "w": mats.add(jnp.transpose(w, (0, 2, 1)).reshape(F, K * Cin)),
            "b": vecs.add(stem["conv"]["b"]),
            "s": vecs.add(scale),
            "t": vecs.add(shift),
        },
        "blocks": [],
    }

    c_max = F
    L_cur = L
    for bi in range(4):
        layers = params["block%d" % (bi + 1)]
        blk = {"layers": [], "trans": None}
        for lp_ in layers:
            c_in = lp_["conv1"]["w"].shape[1]
            mid = lp_["conv1"]["w"].shape[0]
            growth = lp_["conv2"]["w"].shape[0]
            mid_p = _round_up(mid, 8)           # sublane-align bottleneck dim
            c_max = max(c_max, c_in + growth)

            s1, t1 = _bn_scale_shift(lp_["bn1"])
            s2, t2 = _bn_scale_shift(lp_["bn2"])
            w1 = jnp.pad(lp_["conv1"]["w"][:, :, 0], ((0, mid_p - mid), (0, 0)))
            b1 = jnp.pad(lp_["conv1"]["b"], (0, mid_p - mid))
            w2 = jnp.pad(lp_["conv2"]["w"], ((0, 0), (0, mid_p - mid), (0, 0)))
            w2 = jnp.transpose(w2, (0, 2, 1)).reshape(growth, 3 * mid_p)

            blk["layers"].append({
                "s1": vecs.add(s1), "t1": vecs.add(t1),
                "w1": mats.add(w1), "b1": vecs.add(b1),
                "s2": vecs.add(jnp.pad(s2, (0, mid_p - mid))),
                "t2": vecs.add(jnp.pad(t2, (0, mid_p - mid))),
                "w2": mats.add(w2), "b2": vecs.add(lp_["conv2"]["b"]),
                "g": growth,
            })

        if bi < 3:                              # Transition
            tp = params["trans%d" % (bi + 1)]
            C = tp["conv"]["w"].shape[1]
            Ch = tp["conv"]["w"].shape[0]
            s, t = _bn_scale_shift(tp["bn"])
            wt = jnp.transpose(tp["conv"]["w"], (0, 2, 1)).reshape(Ch, 3 * C)
            # AvgPool1d(2) (floor) as a constant (B*L, B*(L//2)) matmul.
            Lh = L_cur // 2
            P = np.zeros((B * L_cur, B * Lh), np.float32)
            for b in range(B):
                for m in range(Lh):
                    P[b * L_cur + 2 * m, b * Lh + m] = 0.5
                    P[b * L_cur + 2 * m + 1, b * Lh + m] = 0.5
            blk["trans"] = {
                "s": vecs.add(s), "t": vecs.add(t),
                "w": mats.add(wt), "b": vecs.add(tp["conv"]["b"]),
                "pool": mats.add(jnp.asarray(P)), "Ch": Ch,
            }
            L_cur = Lh
        plan["blocks"].append(blk)

    # AdaptiveAvgPool1d(1) as a constant (B*L_last, B) matmul.
    G = np.zeros((B * L_cur, B), np.float32)
    for b in range(B):
        G[b * L_cur:(b + 1) * L_cur, b] = 1.0 / L_cur

    # classifier: Linear(f+1, f) -> ReLU -> Dropout(id) -> Linear(f, classes)
    cl = params["classifier"]
    w1, b1, w2, b2 = cl["w1"], cl["b1"], cl["w2"], cl["b2"]   # torch (out, in)
    f = w1.shape[0]
    sig_dist = 1.0 / (1.0 + jnp.exp(-params["epicenter_dis"]))
    b1_eff = b1 + w1[:, f] * sig_dist            # fold sigmoid(dist) column
    plan["head"] = {
        "gpool": mats.add(jnp.asarray(G)),
        "w1": mats.add(w1[:, :f]), "b1": vecs.add(b1_eff),
        "w2": mats.add(w2), "b2": vecs.add(b2),
        "classes": w2.shape[0],
    }
    plan["c_max"] = c_max

    vec_slab = vecs.finalize(lane_multiple=1)    # (N, 1): all channel columns
    mat_slab = mats.finalize(lane_multiple=128)  # (M, 128k): all matrices
    return plan, vec_slab, mat_slab


# ----------------------------- fused kernel ----------------------------------

def _make_kernel(B, plan, use_bf16=False):
    L0 = plan["L_stem"]
    op_dtype = jnp.bfloat16 if use_bf16 else jnp.float32

    def mm(a, b):
        return jnp.dot(a.astype(op_dtype), b.astype(op_dtype),
                       preferred_element_type=jnp.float32)

    def mat(ref, ent):                  # static, 8-aligned slab slice
        off, r, c = ent
        return ref[off:off + r, 0:c]

    def vec(ref, ent):
        off, r, _ = ent
        return ref[off:off + r, 0:1]

    def kernel(patches_ref, vec_ref, mat_ref, out_ref, feat_scr):
        # ---- stem: Conv1d(Cin, F, 7, stride=2) + BN + ReLU + MaxPool1d(3,3)
        st = plan["stem"]
        conv = mm(mat(mat_ref, st["w"]), patches_ref[...]) + vec(vec_ref, st["b"])
        y = jnp.maximum(conv * vec(vec_ref, st["s"]) + vec(vec_ref, st["t"]), 0.0)
        L = L0
        BL = B * L
        # columns ordered (pool-tap j, batch, position) -> MaxPool(3,3) is a
        # max over three contiguous BL-wide lane slices.
        stem_out = jnp.maximum(jnp.maximum(y[:, 0:BL], y[:, BL:2 * BL]),
                               y[:, 2 * BL:3 * BL])
        C = plan["F"]
        feat_scr[0:C, 0:BL] = stem_out

        # ---- dense blocks + transitions --------------------------------------
        for blk in plan["blocks"]:
            BL = B * L
            pos = jax.lax.broadcasted_iota(jnp.int32, (1, BL), 1) % L
            not_first = pos != 0            # not the first position of a sample
            not_last = pos != (L - 1)       # not the last position of a sample

            def taps3(a, BL=BL, not_first=not_first, not_last=not_last):
                # (3*C, BL) operand of a 3-tap pad=1 conv: [x[l-1]; x[l]; x[l+1]]
                # with zeros at per-sample boundaries (= conv zero padding).
                right = jnp.where(not_first, pltpu.roll(a, shift=1, axis=1), 0.0)
                left = jnp.where(not_last, pltpu.roll(a, shift=BL - 1, axis=1), 0.0)
                return jnp.concatenate([right, a, left], axis=0)

            for lay in blk["layers"]:               # DenseLayer
                x_cur = feat_scr[0:C, 0:BL]
                a1 = jnp.maximum(
                    x_cur * vec(vec_ref, lay["s1"]) + vec(vec_ref, lay["t1"]), 0.0)
                h = mm(mat(mat_ref, lay["w1"]), a1) + vec(vec_ref, lay["b1"])
                a2 = jnp.maximum(
                    h * vec(vec_ref, lay["s2"]) + vec(vec_ref, lay["t2"]), 0.0)
                new = mm(mat(mat_ref, lay["w2"]), taps3(a2)) + vec(vec_ref, lay["b2"])
                g = lay["g"]
                feat_scr[C:C + g, 0:BL] = new       # torch.cat([x, layer(x)], 1)
                C = C + g

            tr = blk["trans"]
            if tr is not None:                      # Transition
                x_cur = feat_scr[0:C, 0:BL]
                a = jnp.maximum(
                    x_cur * vec(vec_ref, tr["s"]) + vec(vec_ref, tr["t"]), 0.0)
                h = mm(mat(mat_ref, tr["w"]), taps3(a)) + vec(vec_ref, tr["b"])
                red = mm(h, mat(mat_ref, tr["pool"]))   # AvgPool1d(2) via matmul
                L = L // 2
                C = tr["Ch"]
                feat_scr[0:C, 0:B * L] = red

        # ---- global avg pool + sigmoid + classifier MLP ----------------------
        hd = plan["head"]
        x_cur = feat_scr[0:C, 0:B * L]
        pooled = mm(x_cur, mat(mat_ref, hd["gpool"]))          # (C, B)
        sig = 1.0 / (1.0 + jnp.exp(-pooled))                   # torch.sigmoid (EUP)
        hcl = jnp.maximum(
            mm(mat(mat_ref, hd["w1"]), sig) + vec(vec_ref, hd["b1"]), 0.0)
        out_ref[...] = mm(mat(mat_ref, hd["w2"]), hcl) + vec(vec_ref, hd["b2"])

    return kernel


# ------------------------------- builder --------------------------------------

def build_densenet_forward(params, B, Lin, use_bf16=False):
    """Packs parameters once and returns a jitted forward(x) -> (B, classes)."""
    plan, vec_slab, mat_slab = _pack_params(params, B, Lin)
    L_stem = plan["L_stem"]
    Cin, K = plan["Cin"], plan["K"]
    classes = plan["head"]["classes"]
    c_rows = _round_up(plan["c_max"], 8)
    BL = B * L_stem

    kernel = _make_kernel(B, plan, use_bf16=use_bf16)
    vmem = pltpu.MemorySpace.VMEM

    # Explicit VMEM budget (re-derived so a batch/length change can't silently
    # overrun v7x's smaller 64 MiB VMEM).  2x on inputs for buffering headroom.
    def tile_bytes(shape):
        return _round_up(shape[0], 8) * _round_up(shape[1], 128) * 4

    patches_shape = (K * Cin, 3 * BL)
    vmem_budget = (2 * (tile_bytes(patches_shape) + tile_bytes(vec_slab.shape)
                        + tile_bytes(mat_slab.shape))
                   + tile_bytes((c_rows, BL)) + tile_bytes((classes, B))
                   + (1 << 20))
    vmem_limit = int(max(16 << 20, vmem_budget))

    call = pl.pallas_call(
        kernel,
        out_shape=jax.ShapeDtypeStruct((classes, B), jnp.float32),
        in_specs=[pl.BlockSpec(memory_space=vmem)] * 3,
        out_specs=pl.BlockSpec(memory_space=vmem),
        scratch_shapes=[pltpu.VMEM((c_rows, BL), jnp.float32)],
        compiler_params=pltpu.CompilerParams(vmem_limit_bytes=vmem_limit),
    )

    def forward(x):
        # Stem im2col is the ONLY per-call wrapper work.  Column
        # j*(B*L) + b*L + l of `patches` holds x[b, c, 6*l + 2*j + k] at row
        # k*Cin + c (conv position 3*l + j; max over j = MaxPool(3,3)).
        blocks = []
        for j in range(3):
            taps = []
            for k in range(K):
                start = 2 * j + k
                taps.append(x[:, :, start:start + 6 * (L_stem - 1) + 1:6])
            blk = jnp.concatenate(taps, axis=1)                  # (B, K*Cin, L)
            blk = jnp.transpose(blk, (1, 0, 2)).reshape(K * Cin, BL)
            blocks.append(blk)
        patches = jnp.concatenate(blocks, axis=1)                # (K*Cin, 3*B*L)
        out = call(patches, vec_slab, mat_slab)                  # (classes, B)
        return out.T                                             # (B, classes)

    return jax.jit(forward)


# --------------------------- parameter creation -------------------------------

def init_conv(key, cin, cout, k):
    kw, kb = jax.random.split(key)
    bound = 1.0 / np.sqrt(cin * k)
    return {"w": jax.random.uniform(kw, (cout, cin, k), jnp.float32, -bound, bound),
            "b": jax.random.uniform(kb, (cout,), jnp.float32, -bound, bound)}


def init_bn(key, c):
    kg, kb = jax.random.split(key)
    return {"gamma": 1.0 + 0.1 * jax.random.normal(kg, (c,), jnp.float32),
            "beta": 0.1 * jax.random.normal(kb, (c,), jnp.float32),
            "mean": jnp.zeros((c,), jnp.float32),
            "var": jnp.ones((c,), jnp.float32)}


def init_linear(key, cin, cout):
    # torch layout: weight (out, in), bias (out,)
    kw, kb = jax.random.split(key)
    bound = 1.0 / np.sqrt(cin)
    return {"w": jax.random.uniform(kw, (cout, cin), jnp.float32, -bound, bound),
            "b": jax.random.uniform(kb, (cout,), jnp.float32, -bound, bound)}


def init_dense_layer(key, cin, mid, growth):
    k = jax.random.split(key, 4)
    return {"bn1": init_bn(k[0], cin), "conv1": init_conv(k[1], cin, mid, 1),
            "bn2": init_bn(k[2], mid), "conv2": init_conv(k[3], mid, growth, 3)}


def init_dense_block(key, n_layers, growth, cin, mid):
    keys = jax.random.split(key, n_layers)
    return [init_dense_layer(keys[i], cin + i * growth, mid, growth)
            for i in range(n_layers)]


def init_transition(key, c):
    k = jax.random.split(key, 2)
    return {"bn": init_bn(k[0], c), "conv": init_conv(k[1], c, c // 2, 3)}


def init_densenet(key, layer_num, growth, init_features, in_channels, mid, classes,
                  epicenter_dis=100.0):
    keys = jax.random.split(key, 11)
    params = {}
    f = init_features
    params["stem"] = {"conv": init_conv(keys[0], in_channels, f, 7),
                      "bn": init_bn(keys[1], f)}
    params["block1"] = init_dense_block(keys[2], layer_num[0], growth, f, mid)
    f = f + layer_num[0] * growth
    params["trans1"] = init_transition(keys[3], f)
    params["block2"] = init_dense_block(keys[4], layer_num[1], growth, f // 2, mid)
    f = f // 2 + layer_num[1] * growth
    params["trans2"] = init_transition(keys[5], f)
    params["block3"] = init_dense_block(keys[6], layer_num[2], growth, f // 2, mid)
    f = f // 2 + layer_num[2] * growth
    params["trans3"] = init_transition(keys[7], f)
    params["block4"] = init_dense_block(keys[8], layer_num[3], growth, f // 2, mid)
    f = f // 2 + layer_num[3] * growth
    l1 = init_linear(keys[9], f + 1, f)
    l2 = init_linear(keys[10], f, classes)
    params["classifier"] = {"w1": l1["w"], "b1": l1["b"],
                            "w2": l2["w"], "b2": l2["b"]}
    params["epicenter_dis"] = jnp.float32(epicenter_dis)
    return params


# ---------------------------------- main --------------------------------------

if __name__ == "__main__":
    key = jax.random.PRNGKey(0)
    kp, kx = jax.random.split(key)

    # Small DenseNet configuration (same constructor semantics, reduced sizes).
    layer_num = (2, 2, 2, 2)
    growth = 8
    init_features = 16
    in_channels = 3
    mid = 4
    classes = 2

    params = init_densenet(kp, layer_num, growth, init_features,
                           in_channels, mid, classes)

    # B=4, Lin=200 -> L_stem=32 -> B*L_stem = 128: full 128-lane vregs at the
    # stem and first dense block (lane-dense stores).
    B, Lin = 4, 200
    x = jax.random.normal(kx, (B, in_channels, Lin), jnp.float32)

    # All weight packing / BN folding happens once here, outside the hot path.
    fwd = build_densenet_forward(params, B, Lin, use_bf16=False)

    out = jax.block_until_ready(fwd(x))
    assert out.shape == (B, classes) and out.dtype == jnp.float32
    # Second call exercises the cached (no re-packing, no re-compile) path.
    out2 = jax.block_until_ready(fwd(x))
    assert out2.shape == (B, classes)
    print("KERNEL_OK")
</pallas_src>

<mosaic_0001>
module attributes {stable_mosaic.version = 11 : i64} {
  func.func @kernel(%arg0: memref<21x384xf32, #tpu.memory_space<vmem>>, %arg1: memref<904x1xf32, #tpu.memory_space<vmem>>, %arg2: memref<472x128xf32, #tpu.memory_space<vmem>>, %arg3: memref<2x4xf32, #tpu.memory_space<vmem>>, %arg4: memref<32x128xf32, #tpu.memory_space<vmem>>) attributes {dimension_semantics = [], scalar_prefetch = 0 : i64, scratch_operands = 1 : i64, tpu.core_type = #tpu.core_type<tc>} {
    %c0 = arith.constant 0 : index
    %c0_0 = arith.constant 0 : index
    %0 = vector.load %arg2[%c0, %c0_0] : memref<472x128xf32, #tpu.memory_space<vmem>>, vector<16x21xf32>
    %c0_1 = arith.constant 0 : index
    %c0_2 = arith.constant 0 : index
    %1 = vector.load %arg0[%c0_1, %c0_2] : memref<21x384xf32, #tpu.memory_space<vmem>>, vector<21x384xf32>
    %cst = arith.constant dense<0.000000e+00> : vector<16x384xf32>
    %2 = tpu.matmul %0, %1, %cst {dimension_numbers = #tpu.dot_dimension_numbers<[1], [0], [0], [1], [0, 0, 1, 1], [], []>} : vector<16x21xf32>, vector<21x384xf32>, vector<16x384xf32> -> vector<16x384xf32>
    %c0_3 = arith.constant 0 : index
    %c0_4 = arith.constant 0 : index
    %3 = vector.load %arg1[%c0_3, %c0_4] : memref<904x1xf32, #tpu.memory_space<vmem>>, vector<16x1xf32>
    %4 = vector.broadcast %3 : vector<16x1xf32> to vector<16x384xf32>
    %5 = arith.addf %2, %4 : vector<16x384xf32>
    %c16 = arith.constant 16 : index
    %c0_5 = arith.constant 0 : index
    %6 = vector.load %arg1[%c16, %c0_5] : memref<904x1xf32, #tpu.memory_space<vmem>>, vector<16x1xf32>
    %7 = vector.broadcast %6 : vector<16x1xf32> to vector<16x384xf32>
    %8 = arith.mulf %5, %7 : vector<16x384xf32>
    %c32 = arith.constant 32 : index
    %c0_6 = arith.constant 0 : index
    %9 = vector.load %arg1[%c32, %c0_6] : memref<904x1xf32, #tpu.memory_space<vmem>>, vector<16x1xf32>
    %10 = vector.broadcast %9 : vector<16x1xf32> to vector<16x384xf32>
    %11 = arith.addf %8, %10 : vector<16x384xf32>
    %cst_7 = arith.constant 0.000000e+00 : f32
    %12 = vector.broadcast %cst_7 : f32 to vector<16x384xf32>
    %13 = arith.maximumf %11, %12 : vector<16x384xf32>
    %14 = vector.extract_strided_slice %13 {offsets = [0, 0], sizes = [16, 128], strides = [1, 1]} : vector<16x384xf32> to vector<16x128xf32>
    %15 = vector.extract_strided_slice %13 {offsets = [0, 128], sizes = [16, 128], strides = [1, 1]} : vector<16x384xf32> to vector<16x128xf32>
    %16 = arith.maximumf %14, %15 : vector<16x128xf32>
    %17 = vector.extract_strided_slice %13 {offsets = [0, 256], sizes = [16, 128], strides = [1, 1]} : vector<16x384xf32> to vector<16x128xf32>
    %18 = arith.maximumf %16, %17 : vector<16x128xf32>
    %c0_8 = arith.constant 0 : index
    %c0_9 = arith.constant 0 : index
    %19 = vector.load %arg4[%c0_8, %c0_9] : memref<32x128xf32, #tpu.memory_space<vmem>>, vector<16x128xf32>
    tpu.vector_store %arg4[%c0_8, %c0_9], %18 {strides = array<i32>} : memref<32x128xf32, #tpu.memory_space<vmem>>, vector<16x128xf32>,
    %20 = tpu.iota {dimensions = array<i32: 1>} : vector<1x128xi32>
    %c32_i32 = arith.constant 32 : i32
    %c0_i32 = arith.constant 0 : i32
    %21 = arith.cmpi eq, %c32_i32, %c0_i32 : i32
    %c1_i32 = arith.constant 1 : i32
    %22 = arith.select %21, %c1_i32, %c32_i32 : i32
    %23 = vector.broadcast %22 : i32 to vector<1x128xi32>
    %24 = arith.remsi %20, %23 : vector<1x128xi32>
    %c0_i32_10 = arith.constant 0 : i32
    %25 = vector.broadcast %c0_i32_10 : i32 to vector<1x128xi32>
    %26 = arith.cmpi ne, %24, %25 : vector<1x128xi32>
    %c0_i32_11 = arith.constant 0 : i32
    %27 = vector.broadcast %c0_i32_11 : i32 to vector<1x128xi32>
    %28 = arith.cmpi slt, %24, %27 : vector<1x128xi32>
    %c0_i32_12 = arith.constant 0 : i32
    %29 = arith.cmpi slt, %22, %c0_i32_12 : i32
    %30 = vector.broadcast %29 : i1 to vector<1x128xi1>
    %31 = vector.broadcast %30 : vector<1x128xi1> to vector<1x128xi1>
    %32 = arith.xori %28, %31 : vector<1x128xi1>
    %33 = arith.andi %32, %26 : vector<1x128xi1>
    %34 = vector.broadcast %22 : i32 to vector<1x128xi32>
    %35 = arith.addi %24, %34 : vector<1x128xi32>
    %36 = arith.select %33, %35, %24 : vector<1x128xi1>, vector<1x128xi32>
    %c0_i32_13 = arith.constant 0 : i32
    %37 = vector.broadcast %c0_i32_13 : i32 to vector<1x128xi32>
    %38 = arith.cmpi ne, %36, %37 : vector<1x128xi32>
    %c31_i32 = arith.constant 31 : i32
    %39 = vector.broadcast %c31_i32 : i32 to vector<1x128xi32>
    %40 = arith.cmpi ne, %36, %39 : vector<1x128xi32>
    %c0_14 = arith.constant 0 : index
    %c0_15 = arith.constant 0 : index
    %41 = vector.load %arg4[%c0_14, %c0_15] : memref<32x128xf32, #tpu.memory_space<vmem>>, vector<16x128xf32>
    %c48 = arith.constant 48 : index
    %c0_16 = arith.constant 0 : index
    %42 = vector.load %arg1[%c48, %c0_16] : memref<904x1xf32, #tpu.memory_space<vmem>>, vector<16x1xf32>
    %43 = vector.broadcast %42 : vector<16x1xf32> to vector<16x128xf32>
    %44 = arith.mulf %41, %43 : vector<16x128xf32>
    %c64 = arith.constant 64 : index
    %c0_17 = arith.constant 0 : index
    %45 = vector.load %arg1[%c64, %c0_17] : memref<904x1xf32, #tpu.memory_space<vmem>>, vector<16x1xf32>
    %46 = vector.broadcast %45 : vector<16x1xf32> to vector<16x128xf32>
    %47 = arith.addf %44, %46 : vector<16x128xf32>
    %cst_18 = arith.constant 0.000000e+00 : f32
    %48 = vector.broadcast %cst_18 : f32 to vector<16x128xf32>
    %49 = arith.maximumf %47, %48 : vector<16x128xf32>
    %c16_19 = arith.constant 16 : index
    %c0_20 = arith.constant 0 : index
    %50 = vector.load %arg2[%c16_19, %c0_20] : memref<472x128xf32, #tpu.memory_space<vmem>>, vector<8x16xf32>
    %cst_21 = arith.constant dense<0.000000e+00> : vector<8x128xf32>
    %51 = tpu.matmul %50, %49, %cst_21 {dimension_numbers = #tpu.dot_dimension_numbers<[1], [0], [0], [1], [0, 0, 1, 1], [], []>} : vector<8x16xf32>, vector<16x128xf32>, vector<8x128xf32> -> vector<8x128xf32>
    %c80 = arith.constant 80 : index
    %c0_22 = arith.constant 0 : index
    %52 = vector.load %arg1[%c80, %c0_22] : memref<904x1xf32, #tpu.memory_space<vmem>>, vector<8x1xf32>
    %53 = vector.broadcast %52 : vector<8x1xf32> to vector<8x128xf32>
    %54 = arith.addf %51, %53 : vector<8x128xf32>
    %c88 = arith.constant 88 : index
    %c0_23 = arith.constant 0 : index
    %55 = vector.load %arg1[%c88, %c0_23] : memref<904x1xf32, #tpu.memory_space<vmem>>, vector<8x1xf32>
    %56 = vector.broadcast %55 : vector<8x1xf32> to vector<8x128xf32>
    %57 = arith.mulf %54, %56 : vector<8x128xf32>
    %c96 = arith.constant 96 : index
    %c0_24 = arith.constant 0 : index
    %58 = vector.load %arg1[%c96, %c0_24] : memref<904x1xf32, #tpu.memory_space<vmem>>, vector<8x1xf32>
    %59 = vector.broadcast %58 : vector<8x1xf32> to vector<8x128xf32>
    %60 = arith.addf %57, %59 : vector<8x128xf32>
    %cst_25 = arith.constant 0.000000e+00 : f32
    %61 = vector.broadcast %cst_25 : f32 to vector<8x128xf32>
    %62 = arith.maximumf %60, %61 : vector<8x128xf32>
    %c24 = arith.constant 24 : index
    %c0_26 = arith.constant 0 : index
    %63 = vector.load %arg2[%c24, %c0_26] : memref<472x128xf32, #tpu.memory_space<vmem>>, vector<8x24xf32>
    %c1_i32_27 = arith.constant 1 : i32
    %64 = tpu.dynamic_rotate %62 by %c1_i32_27 dim 1 : vector<8x128xf32>, i32 -> vector<8x128xf32>
    %cst_28 = arith.constant 0.000000e+00 : f32
    %65 = vector.shape_cast %38 : vector<1x128xi1> to vector<1x128xi1>
    %66 = vector.broadcast %65 : vector<1x128xi1> to vector<8x128xi1>
    %67 = vector.broadcast %cst_28 : f32 to vector<8x128xf32>
    %68 = arith.select %66, %64, %67 : vector<8x128xi1>, vector<8x128xf32>
    %c127_i32 = arith.constant 127 : i32
    %69 = tpu.dynamic_rotate %62 by %c127_i32 dim 1 : vector<8x128xf32>, i32 -> vector<8x128xf32>
    %cst_29 = arith.constant 0.000000e+00 : f32
    %70 = vector.shape_cast %40 : vector<1x128xi1> to vector<1x128xi1>
    %71 = vector.broadcast %70 : vector<1x128xi1> to vector<8x128xi1>
    %72 = vector.broadcast %cst_29 : f32 to vector<8x128xf32>
    %73 = arith.select %71, %69, %72 : vector<8x128xi1>, vector<8x128xf32>
    %74 = tpu.concatenate %68, %62, %73 in 0 : vector<8x128xf32>, vector<8x128xf32>, vector<8x128xf32> -> vector<24x128xf32>
    %cst_30 = arith.constant dense<0.000000e+00> : vector<8x128xf32>
    %75 = tpu.matmul %63, %74, %cst_30 {dimension_numbers = #tpu.dot_dimension_numbers<[1], [0], [0], [1], [0, 0, 1, 1], [], []>} : vector<8x24xf32>, vector<24x128xf32>, vector<8x128xf32> -> vector<8x128xf32>
    %c104 = arith.constant 104 : index
    %c0_31 = arith.constant 0 : index
    %76 = vector.load %arg1[%c104, %c0_31] : memref<904x1xf32, #tpu.memory_space<vmem>>, vector<8x1xf32>
    %77 = vector.broadcast %76 : vector<8x1xf32> to vector<8x128xf32>
    %78 = arith.addf %75, %77 : vector<8x128xf32>
    %c16_32 = arith.constant 16 : index
    %c0_33 = arith.constant 0 : index
    %79 = vector.load %arg4[%c16_32, %c0_33] : memref<32x128xf32, #tpu.memory_space<vmem>>, vector<8x128xf32>
    tpu.vector_store %arg4[%c16_32, %c0_33], %78 {strides = array<i32>} : memref<32x128xf32, #tpu.memory_space<vmem>>, vector<8x128xf32>,
    %c0_34 = arith.constant 0 : index
    %c0_35 = arith.constant 0 : index
    %80 = vector.load %arg4[%c0_34, %c0_35] : memref<32x128xf32, #tpu.memory_space<vmem>>, vector<24x128xf32>
    %c112 = arith.constant 112 : index
    %c0_36 = arith.constant 0 : index
    %81 = vector.load %arg1[%c112, %c0_36] : memref<904x1xf32, #tpu.memory_space<vmem>>, vector<24x1xf32>
    %82 = vector.broadcast %81 : vector<24x1xf32> to vector<24x128xf32>
    %83 = arith.mulf %80, %82 : vector<24x128xf32>
    %c136 = arith.constant 136 : index
    %c0_37 = arith.constant 0 : index
    %84 = vector.load %arg1[%c136, %c0_37] : memref<904x1xf32, #tpu.memory_space<vmem>>, vector<24x1xf32>
    %85 = vector.broadcast %84 : vector<24x1xf32> to vector<24x128xf32>
    %86 = arith.addf %83, %85 : vector<24x128xf32>
    %cst_38 = arith.constant 0.000000e+00 : f32
    %87 = vector.broadcast %cst_38 : f32 to vector<24x128xf32>
    %88 = arith.maximumf %86, %87 : vector<24x128xf32>
    %c32_39 = arith.constant 32 : index
    %c0_40 = arith.constant 0 : index
    %89 = vector.load %arg2[%c32_39, %c0_40] : memref<472x128xf32, #tpu.memory_space<vmem>>, vector<8x24xf32>
    %cst_41 = arith.constant dense<0.000000e+00> : vector<8x128xf32>
    %90 = tpu.matmul %89, %88, %cst_41 {dimension_numbers = #tpu.dot_dimension_numbers<[1], [0], [0], [1], [0, 0, 1, 1], [], []>} : vector<8x24xf32>, vector<24x128xf32>, vector<8x128xf32> -> vector<8x128xf32>
    %c160 = arith.constant 160 : index
    %c0_42 = arith.constant 0 : index
    %91 = vector.load %arg1[%c160, %c0_42] : memref<904x1xf32, #tpu.memory_space<vmem>>, vector<8x1xf32>
    %92 = vector.broadcast %91 : vector<8x1xf32> to vector<8x128xf32>
    %93 = arith.addf %90, %92 : vector<8x128xf32>
    %c168 = arith.constant 168 : index
    %c0_43 = arith.constant 0 : index
    %94 = vector.load %arg1[%c168, %c0_43] : memref<904x1xf32, #tpu.memory_space<vmem>>, vector<8x1xf32>
    %95 = vector.broadcast %94 : vector<8x1xf32> to vector<8x128xf32>
    %96 = arith.mulf %93, %95 : vector<8x128xf32>
    %c176 = arith.constant 176 : index
    %c0_44 = arith.constant 0 : index
    %97 = vector.load %arg1[%c176, %c0_44] : memref<904x1xf32, #tpu.memory_space<vmem>>, vector<8x1xf32>
    %98 = vector.broadcast %97 : vector<8x1xf32> to vector<8x128xf32>
    %99 = arith.addf %96, %98 : vector<8x128xf32>
    %cst_45 = arith.constant 0.000000e+00 : f32
    %100 = vector.broadcast %cst_45 : f32 to vector<8x128xf32>
    %101 = arith.maximumf %99, %100 : vector<8x128xf32>
    %c40 = arith.constant 40 : index
    %c0_46 = arith.constant 0 : index
    %102 = vector.load %arg2[%c40, %c0_46] : memref<472x128xf32, #tpu.memory_space<vmem>>, vector<8x24xf32>
    %c1_i32_47 = arith.constant 1 : i32
    %103 = tpu.dynamic_rotate %101 by %c1_i32_47 dim 1 : vector<8x128xf32>, i32 -> vector<8x128xf32>
    %cst_48 = arith.constant 0.000000e+00 : f32
    %104 = vector.shape_cast %38 : vector<1x128xi1> to vector<1x128xi1>
    %105 = vector.broadcast %104 : vector<1x128xi1> to vector<8x128xi1>
    %106 = vector.broadcast %cst_48 : f32 to vector<8x128xf32>
    %107 = arith.select %105, %103, %106 : vector<8x128xi1>, vector<8x128xf32>
    %c127_i32_49 = arith.constant 127 : i32
    %108 = tpu.dynamic_rotate %101 by %c127_i32_49 dim 1 : vector<8x128xf32>, i32 -> vector<8x128xf32>
    %cst_50 = arith.constant 0.000000e+00 : f32
    %109 = vector.shape_cast %40 : vector<1x128xi1> to vector<1x128xi1>
    %110 = vector.broadcast %109 : vector<1x128xi1> to vector<8x128xi1>
    %111 = vector.broadcast %cst_50 : f32 to vector<8x128xf32>
    %112 = arith.select %110, %108, %111 : vector<8x128xi1>, vector<8x128xf32>
    %113 = tpu.concatenate %107, %101, %112 in 0 : vector<8x128xf32>, vector<8x128xf32>, vector<8x128xf32> -> vector<24x128xf32>
    %cst_51 = arith.constant dense<0.000000e+00> : vector<8x128xf32>
    %114 = tpu.matmul %102, %113, %cst_51 {dimension_numbers = #tpu.dot_dimension_numbers<[1], [0], [0], [1], [0, 0, 1, 1], [], []>} : vector<8x24xf32>, vector<24x128xf32>, vector<8x128xf32> -> vector<8x128xf32>
    %c184 = arith.constant 184 : index
    %c0_52 = arith.constant 0 : index
    %115 = vector.load %arg1[%c184, %c0_52] : memref<904x1xf32, #tpu.memory_space<vmem>>, vector<8x1xf32>
    %116 = vector.broadcast %115 : vector<8x1xf32> to vector<8x128xf32>
    %117 = arith.addf %114, %116 : vector<8x128xf32>
    %c24_53 = arith.constant 24 : index
    %c0_54 = arith.constant 0 : index
    %118 = vector.load %arg4[%c24_53, %c0_54] : memref<32x128xf32, #tpu.memory_space<vmem>>, vector<8x128xf32>
    tpu.vector_store %arg4[%c24_53, %c0_54], %117 {strides = array<i32>} : memref<32x128xf32, #tpu.memory_space<vmem>>, vector<8x128xf32>,
    %c0_55 = arith.constant 0 : index
    %c0_56 = arith.constant 0 : index
    %119 = vector.load %arg4[%c0_55, %c0_56] : memref<32x128xf32, #tpu.memory_space<vmem>>, vector<32x128xf32>
    %c192 = arith.constant 192 : index
    %c0_57 = arith.constant 0 : index
    %120 = vector.load %arg1[%c192, %c0_57] : memref<904x1xf32, #tpu.memory_space<vmem>>, vector<32x1xf32>
    %121 = vector.broadcast %120 : vector<32x1xf32> to vector<32x128xf32>
    %122 = arith.mulf %119, %121 : vector<32x128xf32>
    %c224 = arith.constant 224 : index
    %c0_58 = arith.constant 0 : index
    %123 = vector.load %arg1[%c224, %c0_58] : memref<904x1xf32, #tpu.memory_space<vmem>>, vector<32x1xf32>
    %124 = vector.broadcast %123 : vector<32x1xf32> to vector<32x128xf32>
    %125 = arith.addf %122, %124 : vector<32x128xf32>
    %cst_59 = arith.constant 0.000000e+00 : f32
    %126 = vector.broadcast %cst_59 : f32 to vector<32x128xf32>
    %127 = arith.maximumf %125, %126 : vector<32x128xf32>
    %c48_60 = arith.constant 48 : index
    %c0_61 = arith.constant 0 : index
    %128 = vector.load %arg2[%c48_60, %c0_61] : memref<472x128xf32, #tpu.memory_space<vmem>>, vector<16x96xf32>
    %c1_i32_62 = arith.constant 1 : i32
    %129 = tpu.dynamic_rotate %127 by %c1_i32_62 dim 1 : vector<32x128xf32>, i32 -> vector<32x128xf32>
    %cst_63 = arith.constant 0.000000e+00 : f32
    %130 = vector.shape_cast %38 : vector<1x128xi1> to vector<1x128xi1>
    %131 = vector.broadcast %130 : vector<1x128xi1> to vector<32x128xi1>
    %132 = vector.broadcast %cst_63 : f32 to vector<32x128xf32>
    %133 = arith.select %131, %129, %132 : vector<32x128xi1>, vector<32x128xf32>
    %c127_i32_64 = arith.constant 127 : i32
    %134 = tpu.dynamic_rotate %127 by %c127_i32_64 dim 1 : vector<32x128xf32>, i32 -> vector<32x128xf32>
    %cst_65 = arith.constant 0.000000e+00 : f32
    %135 = vector.shape_cast %40 : vector<1x128xi1> to vector<1x128xi1>
    %136 = vector.broadcast %135 : vector<1x128xi1> to vector<32x128xi1>
    %137 = vector.broadcast %cst_65 : f32 to vector<32x128xf32>
    %138 = arith.select %136, %134, %137 : vector<32x128xi1>, vector<32x128xf32>
    %139 = tpu.concatenate %133, %127, %138 in 0 : vector<32x128xf32>, vector<32x128xf32>, vector<32x128xf32> -> vector<96x128xf32>
    %cst_66 = arith.constant dense<0.000000e+00> : vector<16x128xf32>
    %140 = tpu.matmul %128, %139, %cst_66 {dimension_numbers = #tpu.dot_dimension_numbers<[1], [0], [0], [1], [0, 0, 1, 1], [], []>} : vector<16x96xf32>, vector<96x128xf32>, vector<16x128xf32> -> vector<16x128xf32>
    %c256 = arith.constant 256 : index
    %c0_67 = arith.constant 0 : index
    %141 = vector.load %arg1[%c256, %c0_67] : memref<904x1xf32, #tpu.memory_space<vmem>>, vector<16x1xf32>
    %142 = vector.broadcast %141 : vector<16x1xf32> to vector<16x128xf32>
    %143 = arith.addf %140, %142 : vector<16x128xf32>
    %c64_68 = arith.constant 64 : index
    %c0_69 = arith.constant 0 : index
    %144 = vector.load %arg2[%c64_68, %c0_69] : memref<472x128xf32, #tpu.memory_space<vmem>>, vector<128x64xf32>
    %cst_70 = arith.constant dense<0.000000e+00> : vector<16x64xf32>
    %145 = tpu.matmul %143, %144, %cst_70 {dimension_numbers = #tpu.dot_dimension_numbers<[1], [0], [0], [1], [0, 0, 1, 1], [], []>} : vector<16x128xf32>, vector<128x64xf32>, vector<16x64xf32> -> vector<16x64xf32>
    %c0_71 = arith.constant 0 : index
    %c0_72 = arith.constant 0 : index
    %146 = vector.load %arg4[%c0_71, %c0_72] : memref<32x128xf32, #tpu.memory_space<vmem>>, vector<16x64xf32>
    tpu.vector_store %arg4[%c0_71, %c0_72], %145 {strides = array<i32>} : memref<32x128xf32, #tpu.memory_space<vmem>>, vector<16x64xf32>,
    %147 = tpu.iota {dimensions = array<i32: 1>} : vector<1x64xi32>
    %c16_i32 = arith.constant 16 : i32
    %c0_i32_73 = arith.constant 0 : i32
    %148 = arith.cmpi eq, %c16_i32, %c0_i32_73 : i32
    %c1_i32_74 = arith.constant 1 : i32
    %149 = arith.select %148, %c1_i32_74, %c16_i32 : i32
    %150 = vector.broadcast %149 : i32 to vector<1x64xi32>
    %151 = arith.remsi %147, %150 : vector<1x64xi32>
    %c0_i32_75 = arith.constant 0 : i32
    %152 = vector.broadcast %c0_i32_75 : i32 to vector<1x64xi32>
    %153 = arith.cmpi ne, %151, %152 : vector<1x64xi32>
    %c0_i32_76 = arith.constant 0 : i32
    %154 = vector.broadcast %c0_i32_76 : i32 to vector<1x64xi32>
    %155 = arith.cmpi slt, %151, %154 : vector<1x64xi32>
    %c0_i32_77 = arith.constant 0 : i32
    %156 = arith.cmpi slt, %149, %c0_i32_77 : i32
    %157 = vector.broadcast %156 : i1 to vector<1x64xi1>
    %158 = vector.broadcast %157 : vector<1x64xi1> to vector<1x64xi1>
    %159 = arith.xori %155, %158 : vector<1x64xi1>
    %160 = arith.andi %159, %153 : vector<1x64xi1>
    %161 = vector.broadcast %149 : i32 to vector<1x64xi32>
    %162 = arith.addi %151, %161 : vector<1x64xi32>
    %163 = arith.select %160, %162, %151 : vector<1x64xi1>, vector<1x64xi32>
    %c0_i32_78 = arith.constant 0 : i32
    %164 = vector.broadcast %c0_i32_78 : i32 to vector<1x64xi32>
    %165 = arith.cmpi ne, %163, %164 : vector<1x64xi32>
    %c15_i32 = arith.constant 15 : i32
    %166 = vector.broadcast %c15_i32 : i32 to vector<1x64xi32>
    %167 = arith.cmpi ne, %163, %166 : vector<1x64xi32>
    %c0_79 = arith.constant 0 : index
    %c0_80 = arith.constant 0 : index
    %168 = vector.load %arg4[%c0_79, %c0_80] : memref<32x128xf32, #tpu.memory_space<vmem>>, vector<16x64xf32>
    %c272 = arith.constant 272 : index
    %c0_81 = arith.constant 0 : index
    %169 = vector.load %arg1[%c272, %c0_81] : memref<904x1xf32, #tpu.memory_space<vmem>>, vector<16x1xf32>
    %170 = vector.broadcast %169 : vector<16x1xf32> to vector<16x64xf32>
    %171 = arith.mulf %168, %170 : vector<16x64xf32>
    %c288 = arith.constant 288 : index
    %c0_82 = arith.constant 0 : index
    %172 = vector.load %arg1[%c288, %c0_82] : memref<904x1xf32, #tpu.memory_space<vmem>>, vector<16x1xf32>
    %173 = vector.broadcast %172 : vector<16x1xf32> to vector<16x64xf32>
    %174 = arith.addf %171, %173 : vector<16x64xf32>
    %cst_83 = arith.constant 0.000000e+00 : f32
    %175 = vector.broadcast %cst_83 : f32 to vector<16x64xf32>
    %176 = arith.maximumf %174, %175 : vector<16x64xf32>
    %c192_84 = arith.constant 192 : index
    %c0_85 = arith.constant 0 : index
    %177 = vector.load %arg2[%c192_84, %c0_85] : memref<472x128xf32, #tpu.memory_space<vmem>>, vector<8x16xf32>
    %cst_86 = arith.constant dense<0.000000e+00> : vector<8x64xf32>
    %178 = tpu.matmul %177, %176, %cst_86 {dimension_numbers = #tpu.dot_dimension_numbers<[1], [0], [0], [1], [0, 0, 1, 1], [], []>} : vector<8x16xf32>, vector<16x64xf32>, vector<8x64xf32> -> vector<8x64xf32>
    %c304 = arith.constant 304 : index
    %c0_87 = arith.constant 0 : index
    %179 = vector.load %arg1[%c304, %c0_87] : memref<904x1xf32, #tpu.memory_space<vmem>>, vector<8x1xf32>
    %180 = vector.broadcast %179 : vector<8x1xf32> to vector<8x64xf32>
    %181 = arith.addf %178, %180 : vector<8x64xf32>
    %c312 = arith.constant 312 : index
    %c0_88 = arith.constant 0 : index
    %182 = vector.load %arg1[%c312, %c0_88] : memref<904x1xf32, #tpu.memory_space<vmem>>, vector<8x1xf32>
    %183 = vector.broadcast %182 : vector<8x1xf32> to vector<8x64xf32>
    %184 = arith.mulf %181, %183 : vector<8x64xf32>
    %c320 = arith.constant 320 : index
    %c0_89 = arith.constant 0 : index
    %185 = vector.load %arg1[%c320, %c0_89] : memref<904x1xf32, #tpu.memory_space<vmem>>, vector<8x1xf32>
    %186 = vector.broadcast %185 : vector<8x1xf32> to vector<8x64xf32>
    %187 = arith.addf %184, %186 : vector<8x64xf32>
    %cst_90 = arith.constant 0.000000e+00 : f32
    %188 = vector.broadcast %cst_90 : f32 to vector<8x64xf32>
    %189 = arith.maximumf %187, %188 : vector<8x64xf32>
    %c200 = arith.constant 200 : index
    %c0_91 = arith.constant 0 : index
    %190 = vector.load %arg2[%c200, %c0_91] : memref<472x128xf32, #tpu.memory_space<vmem>>, vector<8x24xf32>
    %c1_i32_92 = arith.constant 1 : i32
    %191 = tpu.dynamic_rotate %189 by %c1_i32_92 dim 1 : vector<8x64xf32>, i32 -> vector<8x64xf32>
    %cst_93 = arith.constant 0.000000e+00 : f32
    %192 = vector.shape_cast %165 : vector<1x64xi1> to vector<1x64xi1>
    %193 = vector.broadcast %192 : vector<1x64xi1> to vector<8x64xi1>
    %194 = vector.broadcast %cst_93 : f32 to vector<8x64xf32>
    %195 = arith.select %193, %191, %194 : vector<8x64xi1>, vector<8x64xf32>
    %c63_i32 = arith.constant 63 : i32
    %196 = tpu.dynamic_rotate %189 by %c63_i32 dim 1 : vector<8x64xf32>, i32 -> vector<8x64xf32>
    %cst_94 = arith.constant 0.000000e+00 : f32
    %197 = vector.shape_cast %167 : vector<1x64xi1> to vector<1x64xi1>
    %198 = vector.broadcast %197 : vector<1x64xi1> to vector<8x64xi1>
    %199 = vector.broadcast %cst_94 : f32 to vector<8x64xf32>
    %200 = arith.select %198, %196, %199 : vector<8x64xi1>, vector<8x64xf32>
    %201 = tpu.concatenate %195, %189, %200 in 0 : vector<8x64xf32>, vector<8x64xf32>, vector<8x64xf32> -> vector<24x64xf32>
    %cst_95 = arith.constant dense<0.000000e+00> : vector<8x64xf32>
    %202 = tpu.matmul %190, %201, %cst_95 {dimension_numbers = #tpu.dot_dimension_numbers<[1], [0], [0], [1], [0, 0, 1, 1], [], []>} : vector<8x24xf32>, vector<24x64xf32>, vector<8x64xf32> -> vector<8x64xf32>
    %c328 = arith.constant 328 : index
    %c0_96 = arith.constant 0 : index
    %203 = vector.load %arg1[%c328, %c0_96] : memref<904x1xf32, #tpu.memory_space<vmem>>, vector<8x1xf32>
    %204 = vector.broadcast %203 : vector<8x1xf32> to vector<8x64xf32>
    %205 = arith.addf %202, %204 : vector<8x64xf32>
    %c16_97 = arith.constant 16 : index
    %c0_98 = arith.constant 0 : index
    %206 = vector.load %arg4[%c16_97, %c0_98] : memref<32x128xf32, #tpu.memory_space<vmem>>, vector<8x64xf32>
    tpu.vector_store %arg4[%c16_97, %c0_98], %205 {strides = array<i32>} : memref<32x128xf32, #tpu.memory_space<vmem>>, vector<8x64xf32>,
    %c0_99 = arith.constant 0 : index
    %c0_100 = arith.constant 0 : index
    %207 = vector.load %arg4[%c0_99, %c0_100] : memref<32x128xf32, #tpu.memory_space<vmem>>, vector<24x64xf32>
    %c336 = arith.constant 336 : index
    %c0_101 = arith.constant 0 : index
    %208 = vector.load %arg1[%c336, %c0_101] : memref<904x1xf32, #tpu.memory_space<vmem>>, vector<24x1xf32>
    %209 = vector.broadcast %208 : vector<24x1xf32> to vector<24x64xf32>
    %210 = arith.mulf %207, %209 : vector<24x64xf32>
    %c360 = arith.constant 360 : index
    %c0_102 = arith.constant 0 : index
    %211 = vector.load %arg1[%c360, %c0_102] : memref<904x1xf32, #tpu.memory_space<vmem>>, vector<24x1xf32>
    %212 = vector.broadcast %211 : vector<24x1xf32> to vector<24x64xf32>
    %213 = arith.addf %210, %212 : vector<24x64xf32>
    %cst_103 = arith.constant 0.000000e+00 : f32
    %214 = vector.broadcast %cst_103 : f32 to vector<24x64xf32>
    %215 = arith.maximumf %213, %214 : vector<24x64xf32>
    %c208 = arith.constant 208 : index
    %c0_104 = arith.constant 0 : index
    %216 = vector.load %arg2[%c208, %c0_104] : memref<472x128xf32, #tpu.memory_space<vmem>>, vector<8x24xf32>
    %cst_105 = arith.constant dense<0.000000e+00> : vector<8x64xf32>
    %217 = tpu.matmul %216, %215, %cst_105 {dimension_numbers = #tpu.dot_dimension_numbers<[1], [0], [0], [1], [0, 0, 1, 1], [], []>} : vector<8x24xf32>, vector<24x64xf32>, vector<8x64xf32> -> vector<8x64xf32>
    %c384 = arith.constant 384 : index
    %c0_106 = arith.constant 0 : index
    %218 = vector.load %arg1[%c384, %c0_106] : memref<904x1xf32, #tpu.memory_space<vmem>>, vector<8x1xf32>
    %219 = vector.broadcast %218 : vector<8x1xf32> to vector<8x64xf32>
    %220 = arith.addf %217, %219 : vector<8x64xf32>
    %c392 = arith.constant 392 : index
    %c0_107 = arith.constant 0 : index
    %221 = vector.load %arg1[%c392, %c0_107] : memref<904x1xf32, #tpu.memory_space<vmem>>, vector<8x1xf32>
    %222 = vector.broadcast %221 : vector<8x1xf32> to vector<8x64xf32>
    %223 = arith.mulf %220, %222 : vector<8x64xf32>
    %c400 = arith.constant 400 : index
    %c0_108 = arith.constant 0 : index
    %224 = vector.load %arg1[%c400, %c0_108] : memref<904x1xf32, #tpu.memory_space<vmem>>, vector<8x1xf32>
    %225 = vector.broadcast %224 : vector<8x1xf32> to vector<8x64xf32>
    %226 = arith.addf %223, %225 : vector<8x64xf32>
    %cst_109 = arith.constant 0.000000e+00 : f32
    %227 = vector.broadcast %cst_109 : f32 to vector<8x64xf32>
    %228 = arith.maximumf %226, %227 : vector<8x64xf32>
    %c216 = arith.constant 216 : index
    %c0_110 = arith.constant 0 : index
    %229 = vector.load %arg2[%c216, %c0_110] : memref<472x128xf32, #tpu.memory_space<vmem>>, vector<8x24xf32>
    %c1_i32_111 = arith.constant 1 : i32
    %230 = tpu.dynamic_rotate %228 by %c1_i32_111 dim 1 : vector<8x64xf32>, i32 -> vector<8x64xf32>
    %cst_112 = arith.constant 0.000000e+00 : f32
    %231 = vector.shape_cast %165 : vector<1x64xi1> to vector<1x64xi1>
    %232 = vector.broadcast %231 : vector<1x64xi1> to vector<8x64xi1>
    %233 = vector.broadcast %cst_112 : f32 to vector<8x64xf32>
    %234 = arith.select %232, %230, %233 : vector<8x64xi1>, vector<8x64xf32>
    %c63_i32_113 = arith.constant 63 : i32
    %235 = tpu.dynamic_rotate %228 by %c63_i32_113 dim 1 : vector<8x64xf32>, i32 -> vector<8x64xf32>
    %cst_114 = arith.constant 0.000000e+00 : f32
    %236 = vector.shape_cast %167 : vector<1x64xi1> to vector<1x64xi1>
    %237 = vector.broadcast %236 : vector<1x64xi1> to vector<8x64xi1>
    %238 = vector.broadcast %cst_114 : f32 to vector<8x64xf32>
    %239 = arith.select %237, %235, %238 : vector<8x64xi1>, vector<8x64xf32>
    %240 = tpu.concatenate %234, %228, %239 in 0 : vector<8x64xf32>, vector<8x64xf32>, vector<8x64xf32> -> vector<24x64xf32>
    %cst_115 = arith.constant dense<0.000000e+00> : vector<8x64xf32>
    %241 = tpu.matmul %229, %240, %cst_115 {dimension_numbers = #tpu.dot_dimension_numbers<[1], [0], [0], [1], [0, 0, 1, 1], [], []>} : vector<8x24xf32>, vector<24x64xf32>, vector<8x64xf32> -> vector<8x64xf32>
    %c408 = arith.constant 408 : index
    %c0_116 = arith.constant 0 : index
    %242 = vector.load %arg1[%c408, %c0_116] : memref<904x1xf32, #tpu.memory_space<vmem>>, vector<8x1xf32>
    %243 = vector.broadcast %242 : vector<8x1xf32> to vector<8x64xf32>
    %244 = arith.addf %241, %243 : vector<8x64xf32>
    %c24_117 = arith.constant 24 : index
    %c0_118 = arith.constant 0 : index
    %245 = vector.load %arg4[%c24_117, %c0_118] : memref<32x128xf32, #tpu.memory_space<vmem>>, vector<8x64xf32>
    tpu.vector_store %arg4[%c24_117, %c0_118], %244 {strides = array<i32>} : memref<32x128xf32, #tpu.memory_space<vmem>>, vector<8x64xf32>,
    %c0_119 = arith.constant 0 : index
    %c0_120 = arith.constant 0 : index
    %246 = vector.load %arg4[%c0_119, %c0_120] : memref<32x128xf32, #tpu.memory_space<vmem>>, vector<32x64xf32>
    %c416 = arith.constant 416 : index
    %c0_121 = arith.constant 0 : index
    %247 = vector.load %arg1[%c416, %c0_121] : memref<904x1xf32, #tpu.memory_space<vmem>>, vector<32x1xf32>
    %248 = vector.broadcast %247 : vector<32x1xf32> to vector<32x64xf32>
    %249 = arith.mulf %246, %248 : vector<32x64xf32>
    %c448 = arith.constant 448 : index
    %c0_122 = arith.constant 0 : index
    %250 = vector.load %arg1[%c448, %c0_122] : memref<904x1xf32, #tpu.memory_space<vmem>>, vector<32x1xf32>
    %251 = vector.broadcast %250 : vector<32x1xf32> to vector<32x64xf32>
    %252 = arith.addf %249, %251 : vector<32x64xf32>
    %cst_123 = arith.constant 0.000000e+00 : f32
    %253 = vector.broadcast %cst_123 : f32 to vector<32x64xf32>
    %254 = arith.maximumf %252, %253 : vector<32x64xf32>
    %c224_124 = arith.constant 224 : index
    %c0_125 = arith.constant 0 : index
    %255 = vector.load %arg2[%c224_124, %c0_125] : memref<472x128xf32, #tpu.memory_space<vmem>>, vector<16x96xf32>
    %c1_i32_126 = arith.constant 1 : i32
    %256 = tpu.dynamic_rotate %254 by %c1_i32_126 dim 1 : vector<32x64xf32>, i32 -> vector<32x64xf32>
    %cst_127 = arith.constant 0.000000e+00 : f32
    %257 = vector.shape_cast %165 : vector<1x64xi1> to vector<1x64xi1>
    %258 = vector.broadcast %257 : vector<1x64xi1> to vector<32x64xi1>
    %259 = vector.broadcast %cst_127 : f32 to vector<32x64xf32>
    %260 = arith.select %258, %256, %259 : vector<32x64xi1>, vector<32x64xf32>
    %c63_i32_128 = arith.constant 63 : i32
    %261 = tpu.dynamic_rotate %254 by %c63_i32_128 dim 1 : vector<32x64xf32>, i32 -> vector<32x64xf32>
    %cst_129 = arith.constant 0.000000e+00 : f32
    %262 = vector.shape_cast %167 : vector<1x64xi1> to vector<1x64xi1>
    %263 = vector.broadcast %262 : vector<1x64xi1> to vector<32x64xi1>
    %264 = vector.broadcast %cst_129 : f32 to vector<32x64xf32>
    %265 = arith.select %263, %261, %264 : vector<32x64xi1>, vector<32x64xf32>
    %266 = tpu.concatenate %260, %254, %265 in 0 : vector<32x64xf32>, vector<32x64xf32>, vector<32x64xf32> -> vector<96x64xf32>
    %cst_130 = arith.constant dense<0.000000e+00> : vector<16x64xf32>
    %267 = tpu.matmul %255, %266, %cst_130 {dimension_numbers = #tpu.dot_dimension_numbers<[1], [0], [0], [1], [0, 0, 1, 1], [], []>} : vector<16x96xf32>, vector<96x64xf32>, vector<16x64xf32> -> vector<16x64xf32>
    %c480 = arith.constant 480 : index
    %c0_131 = arith.constant 0 : index
    %268 = vector.load %arg1[%c480, %c0_131] : memref<904x1xf32, #tpu.memory_space<vmem>>, vector<16x1xf32>
    %269 = vector.broadcast %268 : vector<16x1xf32> to vector<16x64xf32>
    %270 = arith.addf %267, %269 : vector<16x64xf32>
    %c240 = arith.constant 240 : index
    %c0_132 = arith.constant 0 : index
    %271 = vector.load %arg2[%c240, %c0_132] : memref<472x128xf32, #tpu.memory_space<vmem>>, vector<64x32xf32>
    %cst_133 = arith.constant dense<0.000000e+00> : vector<16x32xf32>
    %272 = tpu.matmul %270, %271, %cst_133 {dimension_numbers = #tpu.dot_dimension_numbers<[1], [0], [0], [1], [0, 0, 1, 1], [], []>} : vector<16x64xf32>, vector<64x32xf32>, vector<16x32xf32> -> vector<16x32xf32>
    %c0_134 = arith.constant 0 : index
    %c0_135 = arith.constant 0 : index
    %273 = vector.load %arg4[%c0_134, %c0_135] : memref<32x128xf32, #tpu.memory_space<vmem>>, vector<16x32xf32>
    tpu.vector_store %arg4[%c0_134, %c0_135], %272 {strides = array<i32>} : memref<32x128xf32, #tpu.memory_space<vmem>>, vector<16x32xf32>,
    %274 = tpu.iota {dimensions = array<i32: 1>} : vector<1x32xi32>
    %c8_i32 = arith.constant 8 : i32
    %c0_i32_136 = arith.constant 0 : i32
    %275 = arith.cmpi eq, %c8_i32, %c0_i32_136 : i32
    %c1_i32_137 = arith.constant 1 : i32
    %276 = arith.select %275, %c1_i32_137, %c8_i32 : i32
    %277 = vector.broadcast %276 : i32 to vector<1x32xi32>
    %278 = arith.remsi %274, %277 : vector<1x32xi32>
    %c0_i32_138 = arith.constant 0 : i32
    %279 = vector.broadcast %c0_i32_138 : i32 to vector<1x32xi32>
    %280 = arith.cmpi ne, %278, %279 : vector<1x32xi32>
    %c0_i32_139 = arith.constant 0 : i32
    %281 = vector.broadcast %c0_i32_139 : i32 to vector<1x32xi32>
    %282 = arith.cmpi slt, %278, %281 : vector<1x32xi32>
    %c0_i32_140 = arith.constant 0 : i32
    %283 = arith.cmpi slt, %276, %c0_i32_140 : i32
    %284 = vector.broadcast %283 : i1 to vector<1x32xi1>
    %285 = vector.broadcast %284 : vector<1x32xi1> to vector<1x32xi1>
    %286 = arith.xori %282, %285 : vector<1x32xi1>
    %287 = arith.andi %286, %280 : vector<1x32xi1>
    %288 = vector.broadcast %276 : i32 to vector<1x32xi32>
    %289 = arith.addi %278, %288 : vector<1x32xi32>
    %290 = arith.select %287, %289, %278 : vector<1x32xi1>, vector<1x32xi32>
    %c0_i32_141 = arith.constant 0 : i32
    %291 = vector.broadcast %c0_i32_141 : i32 to vector<1x32xi32>
    %292 = arith.cmpi ne, %290, %291 : vector<1x32xi32>
    %c7_i32 = arith.constant 7 : i32
    %293 = vector.broadcast %c7_i32 : i32 to vector<1x32xi32>
    %294 = arith.cmpi ne, %290, %293 : vector<1x32xi32>
    %c0_142 = arith.constant 0 : index
    %c0_143 = arith.constant 0 : index
    %295 = vector.load %arg4[%c0_142, %c0_143] : memref<32x128xf32, #tpu.memory_space<vmem>>, vector<16x32xf32>
    %c496 = arith.constant 496 : index
    %c0_144 = arith.constant 0 : index
    %296 = vector.load %arg1[%c496, %c0_144] : memref<904x1xf32, #tpu.memory_space<vmem>>, vector<16x1xf32>
    %297 = vector.broadcast %296 : vector<16x1xf32> to vector<16x32xf32>
    %298 = arith.mulf %295, %297 : vector<16x32xf32>
    %c512 = arith.constant 512 : index
    %c0_145 = arith.constant 0 : index
    %299 = vector.load %arg1[%c512, %c0_145] : memref<904x1xf32, #tpu.memory_space<vmem>>, vector<16x1xf32>
    %300 = vector.broadcast %299 : vector<16x1xf32> to vector<16x32xf32>
    %301 = arith.addf %298, %300 : vector<16x32xf32>
    %cst_146 = arith.constant 0.000000e+00 : f32
    %302 = vector.broadcast %cst_146 : f32 to vector<16x32xf32>
    %303 = arith.maximumf %301, %302 : vector<16x32xf32>
    %c304_147 = arith.constant 304 : index
    %c0_148 = arith.constant 0 : index
    %304 = vector.load %arg2[%c304_147, %c0_148] : memref<472x128xf32, #tpu.memory_space<vmem>>, vector<8x16xf32>
    %cst_149 = arith.constant dense<0.000000e+00> : vector<8x32xf32>
    %305 = tpu.matmul %304, %303, %cst_149 {dimension_numbers = #tpu.dot_dimension_numbers<[1], [0], [0], [1], [0, 0, 1, 1], [], []>} : vector<8x16xf32>, vector<16x32xf32>, vector<8x32xf32> -> vector<8x32xf32>
    %c528 = arith.constant 528 : index
    %c0_150 = arith.constant 0 : index
    %306 = vector.load %arg1[%c528, %c0_150] : memref<904x1xf32, #tpu.memory_space<vmem>>, vector<8x1xf32>
    %307 = vector.broadcast %306 : vector<8x1xf32> to vector<8x32xf32>
    %308 = arith.addf %305, %307 : vector<8x32xf32>
    %c536 = arith.constant 536 : index
    %c0_151 = arith.constant 0 : index
    %309 = vector.load %arg1[%c536, %c0_151] : memref<904x1xf32, #tpu.memory_space<vmem>>, vector<8x1xf32>
    %310 = vector.broadcast %309 : vector<8x1xf32> to vector<8x32xf32>
    %311 = arith.mulf %308, %310 : vector<8x32xf32>
    %c544 = arith.constant 544 : index
    %c0_152 = arith.constant 0 : index
    %312 = vector.load %arg1[%c544, %c0_152] : memref<904x1xf32, #tpu.memory_space<vmem>>, vector<8x1xf32>
    %313 = vector.broadcast %312 : vector<8x1xf32> to vector<8x32xf32>
    %314 = arith.addf %311, %313 : vector<8x32xf32>
    %cst_153 = arith.constant 0.000000e+00 : f32
    %315 = vector.broadcast %cst_153 : f32 to vector<8x32xf32>
    %316 = arith.maximumf %314, %315 : vector<8x32xf32>
    %c312_154 = arith.constant 312 : index
    %c0_155 = arith.constant 0 : index
    %317 = vector.load %arg2[%c312_154, %c0_155] : memref<472x128xf32, #tpu.memory_space<vmem>>, vector<8x24xf32>
    %c1_i32_156 = arith.constant 1 : i32
    %318 = tpu.dynamic_rotate %316 by %c1_i32_156 dim 1 : vector<8x32xf32>, i32 -> vector<8x32xf32>
    %cst_157 = arith.constant 0.000000e+00 : f32
    %319 = vector.shape_cast %292 : vector<1x32xi1> to vector<1x32xi1>
    %320 = vector.broadcast %319 : vector<1x32xi1> to vector<8x32xi1>
    %321 = vector.broadcast %cst_157 : f32 to vector<8x32xf32>
    %322 = arith.select %320, %318, %321 : vector<8x32xi1>, vector<8x32xf32>
    %c31_i32_158 = arith.constant 31 : i32
    %323 = tpu.dynamic_rotate %316 by %c31_i32_158 dim 1 : vector<8x32xf32>, i32 -> vector<8x32xf32>
    %cst_159 = arith.constant 0.000000e+00 : f32
    %324 = vector.shape_cast %294 : vector<1x32xi1> to vector<1x32xi1>
    %325 = vector.broadcast %324 : vector<1x32xi1> to vector<8x32xi1>
    %326 = vector.broadcast %cst_159 : f32 to vector<8x32xf32>
    %327 = arith.select %325, %323, %326 : vector<8x32xi1>, vector<8x32xf32>
    %328 = tpu.concatenate %322, %316, %327 in 0 : vector<8x32xf32>, vector<8x32xf32>, vector<8x32xf32> -> vector<24x32xf32>
    %cst_160 = arith.constant dense<0.000000e+00> : vector<8x32xf32>
    %329 = tpu.matmul %317, %328, %cst_160 {dimension_numbers = #tpu.dot_dimension_numbers<[1], [0], [0], [1], [0, 0, 1, 1], [], []>} : vector<8x24xf32>, vector<24x32xf32>, vector<8x32xf32> -> vector<8x32xf32>
    %c552 = arith.constant 552 : index
    %c0_161 = arith.constant 0 : index
    %330 = vector.load %arg1[%c552, %c0_161] : memref<904x1xf32, #tpu.memory_space<vmem>>, vector<8x1xf32>
    %331 = vector.broadcast %330 : vector<8x1xf32> to vector<8x32xf32>
    %332 = arith.addf %329, %331 : vector<8x32xf32>
    %c16_162 = arith.constant 16 : index
    %c0_163 = arith.constant 0 : index
    %333 = vector.load %arg4[%c16_162, %c0_163] : memref<32x128xf32, #tpu.memory_space<vmem>>, vector<8x32xf32>
    tpu.vector_store %arg4[%c16_162, %c0_163], %332 {strides = array<i32>} : memref<32x128xf32, #tpu.memory_space<vmem>>, vector<8x32xf32>,
    %c0_164 = arith.constant 0 : index
    %c0_165 = arith.constant 0 : index
    %334 = vector.load %arg4[%c0_164, %c0_165] : memref<32x128xf32, #tpu.memory_space<vmem>>, vector<24x32xf32>
    %c560 = arith.constant 560 : index
    %c0_166 = arith.constant 0 : index
    %335 = vector.load %arg1[%c560, %c0_166] : memref<904x1xf32, #tpu.memory_space<vmem>>, vector<24x1xf32>
    %336 = vector.broadcast %335 : vector<24x1xf32> to vector<24x32xf32>
    %337 = arith.mulf %334, %336 : vector<24x32xf32>
    %c584 = arith.constant 584 : index
    %c0_167 = arith.constant 0 : index
    %338 = vector.load %arg1[%c584, %c0_167] : memref<904x1xf32, #tpu.memory_space<vmem>>, vector<24x1xf32>
    %339 = vector.broadcast %338 : vector<24x1xf32> to vector<24x32xf32>
    %340 = arith.addf %337, %339 : vector<24x32xf32>
    %cst_168 = arith.constant 0.000000e+00 : f32
    %341 = vector.broadcast %cst_168 : f32 to vector<24x32xf32>
    %342 = arith.maximumf %340, %341 : vector<24x32xf32>
    %c320_169 = arith.constant 320 : index
    %c0_170 = arith.constant 0 : index
    %343 = vector.load %arg2[%c320_169, %c0_170] : memref<472x128xf32, #tpu.memory_space<vmem>>, vector<8x24xf32>
    %cst_171 = arith.constant dense<0.000000e+00> : vector<8x32xf32>
    %344 = tpu.matmul %343, %342, %cst_171 {dimension_numbers = #tpu.dot_dimension_numbers<[1], [0], [0], [1], [0, 0, 1, 1], [], []>} : vector<8x24xf32>, vector<24x32xf32>, vector<8x32xf32> -> vector<8x32xf32>
    %c608 = arith.constant 608 : index
    %c0_172 = arith.constant 0 : index
    %345 = vector.load %arg1[%c608, %c0_172] : memref<904x1xf32, #tpu.memory_space<vmem>>, vector<8x1xf32>
    %346 = vector.broadcast %345 : vector<8x1xf32> to vector<8x32xf32>
    %347 = arith.addf %344, %346 : vector<8x32xf32>
    %c616 = arith.constant 616 : index
    %c0_173 = arith.constant 0 : index
    %348 = vector.load %arg1[%c616, %c0_173] : memref<904x1xf32, #tpu.memory_space<vmem>>, vector<8x1xf32>
    %349 = vector.broadcast %348 : vector<8x1xf32> to vector<8x32xf32>
    %350 = arith.mulf %347, %349 : vector<8x32xf32>
    %c624 = arith.constant 624 : index
    %c0_174 = arith.constant 0 : index
    %351 = vector.load %arg1[%c624, %c0_174] : memref<904x1xf32, #tpu.memory_space<vmem>>, vector<8x1xf32>
    %352 = vector.broadcast %351 : vector<8x1xf32> to vector<8x32xf32>
    %353 = arith.addf %350, %352 : vector<8x32xf32>
    %cst_175 = arith.constant 0.000000e+00 : f32
    %354 = vector.broadcast %cst_175 : f32 to vector<8x32xf32>
    %355 = arith.maximumf %353, %354 : vector<8x32xf32>
    %c328_176 = arith.constant 328 : index
    %c0_177 = arith.constant 0 : index
    %356 = vector.load %arg2[%c328_176, %c0_177] : memref<472x128xf32, #tpu.memory_space<vmem>>, vector<8x24xf32>
    %c1_i32_178 = arith.constant 1 : i32
    %357 = tpu.dynamic_rotate %355 by %c1_i32_178 dim 1 : vector<8x32xf32>, i32 -> vector<8x32xf32>
    %cst_179 = arith.constant 0.000000e+00 : f32
    %358 = vector.shape_cast %292 : vector<1x32xi1> to vector<1x32xi1>
    %359 = vector.broadcast %358 : vector<1x32xi1> to vector<8x32xi1>
    %360 = vector.broadcast %cst_179 : f32 to vector<8x32xf32>
    %361 = arith.select %359, %357, %360 : vector<8x32xi1>, vector<8x32xf32>
    %c31_i32_180 = arith.constant 31 : i32
    %362 = tpu.dynamic_rotate %355 by %c31_i32_180 dim 1 : vector<8x32xf32>, i32 -> vector<8x32xf32>
    %cst_181 = arith.constant 0.000000e+00 : f32
    %363 = vector.shape_cast %294 : vector<1x32xi1> to vector<1x32xi1>
    %364 = vector.broadcast %363 : vector<1x32xi1> to vector<8x32xi1>
    %365 = vector.broadcast %cst_181 : f32 to vector<8x32xf32>
    %366 = arith.select %364, %362, %365 : vector<8x32xi1>, vector<8x32xf32>
    %367 = tpu.concatenate %361, %355, %366 in 0 : vector<8x32xf32>, vector<8x32xf32>, vector<8x32xf32> -> vector<24x32xf32>
    %cst_182 = arith.constant dense<0.000000e+00> : vector<8x32xf32>
    %368 = tpu.matmul %356, %367, %cst_182 {dimension_numbers = #tpu.dot_dimension_numbers<[1], [0], [0], [1], [0, 0, 1, 1], [], []>} : vector<8x24xf32>, vector<24x32xf32>, vector<8x32xf32> -> vector<8x32xf32>
    %c632 = arith.constant 632 : index
    %c0_183 = arith.constant 0 : index
    %369 = vector.load %arg1[%c632, %c0_183] : memref<904x1xf32, #tpu.memory_space<vmem>>, vector<8x1xf32>
    %370 = vector.broadcast %369 : vector<8x1xf32> to vector<8x32xf32>
    %371 = arith.addf %368, %370 : vector<8x32xf32>
    %c24_184 = arith.constant 24 : index
    %c0_185 = arith.constant 0 : index
    %372 = vector.load %arg4[%c24_184, %c0_185] : memref<32x128xf32, #tpu.memory_space<vmem>>, vector<8x32xf32>
    tpu.vector_store %arg4[%c24_184, %c0_185], %371 {strides = array<i32>} : memref<32x128xf32, #tpu.memory_space<vmem>>, vector<8x32xf32>,
    %c0_186 = arith.constant 0 : index
    %c0_187 = arith.constant 0 : index
    %373 = vector.load %arg4[%c0_186, %c0_187] : memref<32x128xf32, #tpu.memory_space<vmem>>, vector<32x32xf32>
    %c640 = arith.constant 640 : index
    %c0_188 = arith.constant 0 : index
    %374 = vector.load %arg1[%c640, %c0_188] : memref<904x1xf32, #tpu.memory_space<vmem>>, vector<32x1xf32>
    %375 = vector.broadcast %374 : vector<32x1xf32> to vector<32x32xf32>
    %376 = arith.mulf %373, %375 : vector<32x32xf32>
    %c672 = arith.constant 672 : index
    %c0_189 = arith.constant 0 : index
    %377 = vector.load %arg1[%c672, %c0_189] : memref<904x1xf32, #tpu.memory_space<vmem>>, vector<32x1xf32>
    %378 = vector.broadcast %377 : vector<32x1xf32> to vector<32x32xf32>
    %379 = arith.addf %376, %378 : vector<32x32xf32>
    %cst_190 = arith.constant 0.000000e+00 : f32
    %380 = vector.broadcast %cst_190 : f32 to vector<32x32xf32>
    %381 = arith.maximumf %379, %380 : vector<32x32xf32>
    %c336_191 = arith.constant 336 : index
    %c0_192 = arith.constant 0 : index
    %382 = vector.load %arg2[%c336_191, %c0_192] : memref<472x128xf32, #tpu.memory_space<vmem>>, vector<16x96xf32>
    %c1_i32_193 = arith.constant 1 : i32
    %383 = tpu.dynamic_rotate %381 by %c1_i32_193 dim 1 : vector<32x32xf32>, i32 -> vector<32x32xf32>
    %cst_194 = arith.constant 0.000000e+00 : f32
    %384 = vector.shape_cast %292 : vector<1x32xi1> to vector<1x32xi1>
    %385 = vector.broadcast %384 : vector<1x32xi1> to vector<32x32xi1>
    %386 = vector.broadcast %cst_194 : f32 to vector<32x32xf32>
    %387 = arith.select %385, %383, %386 : vector<32x32xi1>, vector<32x32xf32>
    %c31_i32_195 = arith.constant 31 : i32
    %388 = tpu.dynamic_rotate %381 by %c31_i32_195 dim 1 : vector<32x32xf32>, i32 -> vector<32x32xf32>
    %cst_196 = arith.constant 0.000000e+00 : f32
    %389 = vector.shape_cast %294 : vector<1x32xi1> to vector<1x32xi1>
    %390 = vector.broadcast %389 : vector<1x32xi1> to vector<32x32xi1>
    %391 = vector.broadcast %cst_196 : f32 to vector<32x32xf32>
    %392 = arith.select %390, %388, %391 : vector<32x32xi1>, vector<32x32xf32>
    %393 = tpu.concatenate %387, %381, %392 in 0 : vector<32x32xf32>, vector<32x32xf32>, vector<32x32xf32> -> vector<96x32xf32>
    %cst_197 = arith.constant dense<0.000000e+00> : vector<16x32xf32>
    %394 = tpu.matmul %382, %393, %cst_197 {dimension_numbers = #tpu.dot_dimension_numbers<[1], [0], [0], [1], [0, 0, 1, 1], [], []>} : vector<16x96xf32>, vector<96x32xf32>, vector<16x32xf32> -> vector<16x32xf32>
    %c704 = arith.constant 704 : index
    %c0_198 = arith.constant 0 : index
    %395 = vector.load %arg1[%c704, %c0_198] : memref<904x1xf32, #tpu.memory_space<vmem>>, vector<16x1xf32>
    %396 = vector.broadcast %395 : vector<16x1xf32> to vector<16x32xf32>
    %397 = arith.addf %394, %396 : vector<16x32xf32>
    %c352 = arith.constant 352 : index
    %c0_199 = arith.constant 0 : index
    %398 = vector.load %arg2[%c352, %c0_199] : memref<472x128xf32, #tpu.memory_space<vmem>>, vector<32x16xf32>
    %cst_200 = arith.constant dense<0.000000e+00> : vector<16x16xf32>
    %399 = tpu.matmul %397, %398, %cst_200 {dimension_numbers = #tpu.dot_dimension_numbers<[1], [0], [0], [1], [0, 0, 1, 1], [], []>} : vector<16x32xf32>, vector<32x16xf32>, vector<16x16xf32> -> vector<16x16xf32>
    %c0_201 = arith.constant 0 : index
    %c0_202 = arith.constant 0 : index
    %400 = vector.load %arg4[%c0_201, %c0_202] : memref<32x128xf32, #tpu.memory_space<vmem>>, vector<16x16xf32>
    tpu.vector_store %arg4[%c0_201, %c0_202], %399 {strides = array<i32>} : memref<32x128xf32, #tpu.memory_space<vmem>>, vector<16x16xf32>,
    %401 = tpu.iota {dimensions = array<i32: 1>} : vector<1x16xi32>
    %c4_i32 = arith.constant 4 : i32
    %c0_i32_203 = arith.constant 0 : i32
    %402 = arith.cmpi eq, %c4_i32, %c0_i32_203 : i32
    %c1_i32_204 = arith.constant 1 : i32
    %403 = arith.select %402, %c1_i32_204, %c4_i32 : i32
    %404 = vector.broadcast %403 : i32 to vector<1x16xi32>
    %405 = arith.remsi %401, %404 : vector<1x16xi32>
    %c0_i32_205 = arith.constant 0 : i32
    %406 = vector.broadcast %c0_i32_205 : i32 to vector<1x16xi32>
    %407 = arith.cmpi ne, %405, %406 : vector<1x16xi32>
    %c0_i32_206 = arith.constant 0 : i32
    %408 = vector.broadcast %c0_i32_206 : i32 to vector<1x16xi32>
    %409 = arith.cmpi slt, %405, %408 : vector<1x16xi32>
    %c0_i32_207 = arith.constant 0 : i32
    %410 = arith.cmpi slt, %403, %c0_i32_207 : i32
    %411 = vector.broadcast %410 : i1 to vector<1x16xi1>
    %412 = vector.broadcast %411 : vector<1x16xi1> to vector<1x16xi1>
    %413 = arith.xori %409, %412 : vector<1x16xi1>
    %414 = arith.andi %413, %407 : vector<1x16xi1>
    %415 = vector.broadcast %403 : i32 to vector<1x16xi32>
    %416 = arith.addi %405, %415 : vector<1x16xi32>
    %417 = arith.select %414, %416, %405 : vector<1x16xi1>, vector<1x16xi32>
    %c0_i32_208 = arith.constant 0 : i32
    %418 = vector.broadcast %c0_i32_208 : i32 to vector<1x16xi32>
    %419 = arith.cmpi ne, %417, %418 : vector<1x16xi32>
    %c3_i32 = arith.constant 3 : i32
    %420 = vector.broadcast %c3_i32 : i32 to vector<1x16xi32>
    %421 = arith.cmpi ne, %417, %420 : vector<1x16xi32>
    %c0_209 = arith.constant 0 : index
    %c0_210 = arith.constant 0 : index
    %422 = vector.load %arg4[%c0_209, %c0_210] : memref<32x128xf32, #tpu.memory_space<vmem>>, vector<16x16xf32>
    %c720 = arith.constant 720 : index
    %c0_211 = arith.constant 0 : index
    %423 = vector.load %arg1[%c720, %c0_211] : memref<904x1xf32, #tpu.memory_space<vmem>>, vector<16x1xf32>
    %424 = vector.broadcast %423 : vector<16x1xf32> to vector<16x16xf32>
    %425 = arith.mulf %422, %424 : vector<16x16xf32>
    %c736 = arith.constant 736 : index
    %c0_212 = arith.constant 0 : index
    %426 = vector.load %arg1[%c736, %c0_212] : memref<904x1xf32, #tpu.memory_space<vmem>>, vector<16x1xf32>
    %427 = vector.broadcast %426 : vector<16x1xf32> to vector<16x16xf32>
    %428 = arith.addf %425, %427 : vector<16x16xf32>
    %cst_213 = arith.constant 0.000000e+00 : f32
    %429 = vector.broadcast %cst_213 : f32 to vector<16x16xf32>
    %430 = arith.maximumf %428, %429 : vector<16x16xf32>
    %c384_214 = arith.constant 384 : index
    %c0_215 = arith.constant 0 : index
    %431 = vector.load %arg2[%c384_214, %c0_215] : memref<472x128xf32, #tpu.memory_space<vmem>>, vector<8x16xf32>
    %cst_216 = arith.constant dense<0.000000e+00> : vector<8x16xf32>
    %432 = tpu.matmul %431, %430, %cst_216 {dimension_numbers = #tpu.dot_dimension_numbers<[1], [0], [0], [1], [0, 0, 1, 1], [], []>} : vector<8x16xf32>, vector<16x16xf32>, vector<8x16xf32> -> vector<8x16xf32>
    %c752 = arith.constant 752 : index
    %c0_217 = arith.constant 0 : index
    %433 = vector.load %arg1[%c752, %c0_217] : memref<904x1xf32, #tpu.memory_space<vmem>>, vector<8x1xf32>
    %434 = vector.broadcast %433 : vector<8x1xf32> to vector<8x16xf32>
    %435 = arith.addf %432, %434 : vector<8x16xf32>
    %c760 = arith.constant 760 : index
    %c0_218 = arith.constant 0 : index
    %436 = vector.load %arg1[%c760, %c0_218] : memref<904x1xf32, #tpu.memory_space<vmem>>, vector<8x1xf32>
    %437 = vector.broadcast %436 : vector<8x1xf32> to vector<8x16xf32>
    %438 = arith.mulf %435, %437 : vector<8x16xf32>
    %c768 = arith.constant 768 : index
    %c0_219 = arith.constant 0 : index
    %439 = vector.load %arg1[%c768, %c0_219] : memref<904x1xf32, #tpu.memory_space<vmem>>, vector<8x1xf32>
    %440 = vector.broadcast %439 : vector<8x1xf32> to vector<8x16xf32>
    %441 = arith.addf %438, %440 : vector<8x16xf32>
    %cst_220 = arith.constant 0.000000e+00 : f32
    %442 = vector.broadcast %cst_220 : f32 to vector<8x16xf32>
    %443 = arith.maximumf %441, %442 : vector<8x16xf32>
    %c392_221 = arith.constant 392 : index
    %c0_222 = arith.constant 0 : index
    %444 = vector.load %arg2[%c392_221, %c0_222] : memref<472x128xf32, #tpu.memory_space<vmem>>, vector<8x24xf32>
    %c1_i32_223 = arith.constant 1 : i32
    %445 = tpu.dynamic_rotate %443 by %c1_i32_223 dim 1 : vector<8x16xf32>, i32 -> vector<8x16xf32>
    %cst_224 = arith.constant 0.000000e+00 : f32
    %446 = vector.shape_cast %419 : vector<1x16xi1> to vector<1x16xi1>
    %447 = vector.broadcast %446 : vector<1x16xi1> to vector<8x16xi1>
    %448 = vector.broadcast %cst_224 : f32 to vector<8x16xf32>
    %449 = arith.select %447, %445, %448 : vector<8x16xi1>, vector<8x16xf32>
    %c15_i32_225 = arith.constant 15 : i32
    %450 = tpu.dynamic_rotate %443 by %c15_i32_225 dim 1 : vector<8x16xf32>, i32 -> vector<8x16xf32>
    %cst_226 = arith.constant 0.000000e+00 : f32
    %451 = vector.shape_cast %421 : vector<1x16xi1> to vector<1x16xi1>
    %452 = vector.broadcast %451 : vector<1x16xi1> to vector<8x16xi1>
    %453 = vector.broadcast %cst_226 : f32 to vector<8x16xf32>
    %454 = arith.select %452, %450, %453 : vector<8x16xi1>, vector<8x16xf32>
    %455 = tpu.concatenate %449, %443, %454 in 0 : vector<8x16xf32>, vector<8x16xf32>, vector<8x16xf32> -> vector<24x16xf32>
    %cst_227 = arith.constant dense<0.000000e+00> : vector<8x16xf32>
    %456 = tpu.matmul %444, %455, %cst_227 {dimension_numbers = #tpu.dot_dimension_numbers<[1], [0], [0], [1], [0, 0, 1, 1], [], []>} : vector<8x24xf32>, vector<24x16xf32>, vector<8x16xf32> -> vector<8x16xf32>
    %c776 = arith.constant 776 : index
    %c0_228 = arith.constant 0 : index
    %457 = vector.load %arg1[%c776, %c0_228] : memref<904x1xf32, #tpu.memory_space<vmem>>, vector<8x1xf32>
    %458 = vector.broadcast %457 : vector<8x1xf32> to vector<8x16xf32>
    %459 = arith.addf %456, %458 : vector<8x16xf32>
    %c16_229 = arith.constant 16 : index
    %c0_230 = arith.constant 0 : index
    %460 = vector.load %arg4[%c16_229, %c0_230] : memref<32x128xf32, #tpu.memory_space<vmem>>, vector<8x16xf32>
    tpu.vector_store %arg4[%c16_229, %c0_230], %459 {strides = array<i32>} : memref<32x128xf32, #tpu.memory_space<vmem>>, vector<8x16xf32>,
    %c0_231 = arith.constant 0 : index
    %c0_232 = arith.constant 0 : index
    %461 = vector.load %arg4[%c0_231, %c0_232] : memref<32x128xf32, #tpu.memory_space<vmem>>, vector<24x16xf32>
    %c784 = arith.constant 784 : index
    %c0_233 = arith.constant 0 : index
    %462 = vector.load %arg1[%c784, %c0_233] : memref<904x1xf32, #tpu.memory_space<vmem>>, vector<24x1xf32>
    %463 = vector.broadcast %462 : vector<24x1xf32> to vector<24x16xf32>
    %464 = arith.mulf %461, %463 : vector<24x16xf32>
    %c808 = arith.constant 808 : index
    %c0_234 = arith.constant 0 : index
    %465 = vector.load %arg1[%c808, %c0_234] : memref<904x1xf32, #tpu.memory_space<vmem>>, vector<24x1xf32>
    %466 = vector.broadcast %465 : vector<24x1xf32> to vector<24x16xf32>
    %467 = arith.addf %464, %466 : vector<24x16xf32>
    %cst_235 = arith.constant 0.000000e+00 : f32
    %468 = vector.broadcast %cst_235 : f32 to vector<24x16xf32>
    %469 = arith.maximumf %467, %468 : vector<24x16xf32>
    %c400_236 = arith.constant 400 : index
    %c0_237 = arith.constant 0 : index
    %470 = vector.load %arg2[%c400_236, %c0_237] : memref<472x128xf32, #tpu.memory_space<vmem>>, vector<8x24xf32>
    %cst_238 = arith.constant dense<0.000000e+00> : vector<8x16xf32>
    %471 = tpu.matmul %470, %469, %cst_238 {dimension_numbers = #tpu.dot_dimension_numbers<[1], [0], [0], [1], [0, 0, 1, 1], [], []>} : vector<8x24xf32>, vector<24x16xf32>, vector<8x16xf32> -> vector<8x16xf32>
    %c832 = arith.constant 832 : index
    %c0_239 = arith.constant 0 : index
    %472 = vector.load %arg1[%c832, %c0_239] : memref<904x1xf32, #tpu.memory_space<vmem>>, vector<8x1xf32>
    %473 = vector.broadcast %472 : vector<8x1xf32> to vector<8x16xf32>
    %474 = arith.addf %471, %473 : vector<8x16xf32>
    %c840 = arith.constant 840 : index
    %c0_240 = arith.constant 0 : index
    %475 = vector.load %arg1[%c840, %c0_240] : memref<904x1xf32, #tpu.memory_space<vmem>>, vector<8x1xf32>
    %476 = vector.broadcast %475 : vector<8x1xf32> to vector<8x16xf32>
    %477 = arith.mulf %474, %476 : vector<8x16xf32>
    %c848 = arith.constant 848 : index
    %c0_241 = arith.constant 0 : index
    %478 = vector.load %arg1[%c848, %c0_241] : memref<904x1xf32, #tpu.memory_space<vmem>>, vector<8x1xf32>
    %479 = vector.broadcast %478 : vector<8x1xf32> to vector<8x16xf32>
    %480 = arith.addf %477, %479 : vector<8x16xf32>
    %cst_242 = arith.constant 0.000000e+00 : f32
    %481 = vector.broadcast %cst_242 : f32 to vector<8x16xf32>
    %482 = arith.maximumf %480, %481 : vector<8x16xf32>
    %c408_243 = arith.constant 408 : index
    %c0_244 = arith.constant 0 : index
    %483 = vector.load %arg2[%c408_243, %c0_244] : memref<472x128xf32, #tpu.memory_space<vmem>>, vector<8x24xf32>
    %c1_i32_245 = arith.constant 1 : i32
    %484 = tpu.dynamic_rotate %482 by %c1_i32_245 dim 1 : vector<8x16xf32>, i32 -> vector<8x16xf32>
    %cst_246 = arith.constant 0.000000e+00 : f32
    %485 = vector.shape_cast %419 : vector<1x16xi1> to vector<1x16xi1>
    %486 = vector.broadcast %485 : vector<1x16xi1> to vector<8x16xi1>
    %487 = vector.broadcast %cst_246 : f32 to vector<8x16xf32>
    %488 = arith.select %486, %484, %487 : vector<8x16xi1>, vector<8x16xf32>
    %c15_i32_247 = arith.constant 15 : i32
    %489 = tpu.dynamic_rotate %482 by %c15_i32_247 dim 1 : vector<8x16xf32>, i32 -> vector<8x16xf32>
    %cst_248 = arith.constant 0.000000e+00 : f32
    %490 = vector.shape_cast %421 : vector<1x16xi1> to vector<1x16xi1>
    %491 = vector.broadcast %490 : vector<1x16xi1> to vector<8x16xi1>
    %492 = vector.broadcast %cst_248 : f32 to vector<8x16xf32>
    %493 = arith.select %491, %489, %492 : vector<8x16xi1>, vector<8x16xf32>
    %494 = tpu.concatenate %488, %482, %493 in 0 : vector<8x16xf32>, vector<8x16xf32>, vector<8x16xf32> -> vector<24x16xf32>
    %cst_249 = arith.constant dense<0.000000e+00> : vector<8x16xf32>
    %495 = tpu.matmul %483, %494, %cst_249 {dimension_numbers = #tpu.dot_dimension_numbers<[1], [0], [0], [1], [0, 0, 1, 1], [], []>} : vector<8x24xf32>, vector<24x16xf32>, vector<8x16xf32> -> vector<8x16xf32>
    %c856 = arith.constant 856 : index
    %c0_250 = arith.constant 0 : index
    %496 = vector.load %arg1[%c856, %c0_250] : memref<904x1xf32, #tpu.memory_space<vmem>>, vector<8x1xf32>
    %497 = vector.broadcast %496 : vector<8x1xf32> to vector<8x16xf32>
    %498 = arith.addf %495, %497 : vector<8x16xf32>
    %c24_251 = arith.constant 24 : index
    %c0_252 = arith.constant 0 : index
    %499 = vector.load %arg4[%c24_251, %c0_252] : memref<32x128xf32, #tpu.memory_space<vmem>>, vector<8x16xf32>
    tpu.vector_store %arg4[%c24_251, %c0_252], %498 {strides = array<i32>} : memref<32x128xf32, #tpu.memory_space<vmem>>, vector<8x16xf32>,
    %c0_253 = arith.constant 0 : index
    %c0_254 = arith.constant 0 : index
    %500 = vector.load %arg4[%c0_253, %c0_254] : memref<32x128xf32, #tpu.memory_space<vmem>>, vector<32x16xf32>
    %c416_255 = arith.constant 416 : index
    %c0_256 = arith.constant 0 : index
    %501 = vector.load %arg2[%c416_255, %c0_256] : memref<472x128xf32, #tpu.memory_space<vmem>>, vector<16x4xf32>
    %cst_257 = arith.constant dense<0.000000e+00> : vector<32x4xf32>
    %502 = tpu.matmul %500, %501, %cst_257 {dimension_numbers = #tpu.dot_dimension_numbers<[1], [0], [0], [1], [0, 0, 1, 1], [], []>} : vector<32x16xf32>, vector<16x4xf32>, vector<32x4xf32> -> vector<32x4xf32>
    %cst_258 = arith.constant 0.000000e+00 : f32
    %503 = vector.broadcast %cst_258 : f32 to vector<32x4xf32>
    %504 = arith.subf %503, %502 : vector<32x4xf32>
    %505 = math.exp %504 : vector<32x4xf32>
    %cst_259 = arith.constant 1.000000e+00 : f32
    %506 = vector.broadcast %cst_259 : f32 to vector<32x4xf32>
    %507 = arith.addf %506, %505 : vector<32x4xf32>
    %cst_260 = arith.constant 1.000000e+00 : f32
    %508 = vector.broadcast %cst_260 : f32 to vector<32x4xf32>
    %509 = arith.divf %508, %507 : vector<32x4xf32>
    %c432 = arith.constant 432 : index
    %c0_261 = arith.constant 0 : index
    %510 = vector.load %arg2[%c432, %c0_261] : memref<472x128xf32, #tpu.memory_space<vmem>>, vector<32x32xf32>
    %cst_262 = arith.constant dense<0.000000e+00> : vector<32x4xf32>
    %511 = tpu.matmul %510, %509, %cst_262 {dimension_numbers = #tpu.dot_dimension_numbers<[1], [0], [0], [1], [0, 0, 1, 1], [], []>} : vector<32x32xf32>, vector<32x4xf32>, vector<32x4xf32> -> vector<32x4xf32>
    %c864 = arith.constant 864 : index
    %c0_263 = arith.constant 0 : index
    %512 = vector.load %arg1[%c864, %c0_263] : memref<904x1xf32, #tpu.memory_space<vmem>>, vector<32x1xf32>
    %513 = vector.broadcast %512 : vector<32x1xf32> to vector<32x4xf32>
    %514 = arith.addf %511, %513 : vector<32x4xf32>
    %cst_264 = arith.constant 0.000000e+00 : f32
    %515 = vector.broadcast %cst_264 : f32 to vector<32x4xf32>
    %516 = arith.maximumf %514, %515 : vector<32x4xf32>
    %c464 = arith.constant 464 : index
    %c0_265 = arith.constant 0 : index
    %517 = vector.load %arg2[%c464, %c0_265] : memref<472x128xf32, #tpu.memory_space<vmem>>, vector<2x32xf32>
    %cst_266 = arith.constant dense<0.000000e+00> : vector<2x4xf32>
    %518 = tpu.matmul %517, %516, %cst_266 {dimension_numbers = #tpu.dot_dimension_numbers<[1], [0], [0], [1], [0, 0, 1, 1], [], []>} : vector<2x32xf32>, vector<32x4xf32>, vector<2x4xf32> -> vector<2x4xf32>
    %c896 = arith.constant 896 : index
    %c0_267 = arith.constant 0 : index
    %519 = vector.load %arg1[%c896, %c0_267] : memref<904x1xf32, #tpu.memory_space<vmem>>, vector<2x1xf32>
    %520 = vector.broadcast %519 : vector<2x1xf32> to vector<2x4xf32>
    %521 = arith.addf %518, %520 : vector<2x4xf32>
    %c0_268 = arith.constant 0 : index
    %c0_269 = arith.constant 0 : index
    %522 = vector.load %arg3[%c0_268, %c0_269] : memref<2x4xf32, #tpu.memory_space<vmem>>, vector<2x4xf32>
    tpu.vector_store %arg3[%c0_268, %c0_269], %521 {strides = array<i32>} : memref<2x4xf32, #tpu.memory_space<vmem>>, vector<2x4xf32>,
    return
  }
}

</mosaic_0001>

<llo_original>
// kernel: forward.1
$region0: #{forward.1}
  #allocation0 [shape = 'u32[]', space=smem, size = 0x4, offset = 0x4, fixed_abs, tag = 'smem constant byte address 0x4 - core index']
  #allocation1 [shape = 'u32[144,128]{1,0:T(1,128)}', space=vmem, size = 0x12000, scoped, tag = 'internal scratch']
  #allocation2 [shape = 'f32[32,128]{1,0:T(8,128)}', space=vmem, size = 0x4000, scoped, tag = 'scratch operand']
  %s0 = inlined_call_operand.vmem [shape: f32[21,384], index: 0, kind: input, shape index: {}]
  %s1 = inlined_call_operand.vmem [shape: f32[904,1], index: 1, kind: input, shape index: {}]
  %s2 = inlined_call_operand.hbm [shape: f32[472,128], index: 2, kind: input, shape index: {}]
  %s3 = inlined_call_operand.hbm [shape: f32[2,4], index: 3, kind: output, shape index: {}]
  %s4 = sld [smem:[#allocation0]]
  $region26: #{forward.1} parent=0
    _
  %s6 = ssub.s32 1, %s4
  %s7 = scalar_select 0, %s6, %s4
  $region1: #{forward.1} parent=0
    #allocation3 [shape = 'u8[241664]{0}', space=vmem, size = 0x3b000, scoped, tag = 'input window, operand 2, single buffered']
    #allocation4 [shape = 's32[1]{0}', space=sflag, size = 0x4, scoped, tag = 'scoped memory for forward.1']
    #allocation5 [shape = 's32[1]{0}', space=sflag, size = 0x4, scoped, tag = 'scoped memory for forward.1']
    #allocation6 [shape = 'u8[1024]{0}', space=vmem, size = 0x400, scoped, tag = 'output window, operand 0, single buffered']
    %8 = vsyncpa [#allocation4], 0
    %9 = vsyncpa [#allocation5], 0
    // Predicated region
    $region2: #{forward.1} parent=1 // pred_check
      _
    $region3: #{forward.1} parent=1 // pred_check_branch
      %11 = sbr.rel (0) target = $region5
    $region4: #{forward.1} parent=1 // pred_region
      _
    $region5: #{forward.1} parent=1 // pred_fallthru
      _
    // Predicated region
    $region6: #{forward.1} parent=1 // pred_check
      _
    $region7: #{forward.1} parent=1 // pred_check_branch
      %13 = sbr.rel (0) target = $region9
    $region8: #{forward.1} parent=1 // pred_region
      _
    $region9: #{forward.1} parent=1 // pred_fallthru
      _
    // Predicated region
    $region10: #{forward.1} parent=1 // pred_check
      _
    $region11: #{forward.1} parent=1 // pred_check_branch
      %15 = sbr.rel (0) target = $region13
    $region12: #{forward.1} parent=1 // pred_region
      %s17 = ssub.s32 7552, 7552
      %18 = vsyncadd [#allocation4], %s17
      %s19 = sshll.u32 [#allocation3], 4
      %s20 = int_to_ptr.vmem [resolvable:$true] %s19
      %25 = dma.hbm_to_vmem [thread:$0]  %s2, 7552, %s20, [#allocation4], 128, 128, 8
    $region13: #{forward.1} parent=1 // pred_fallthru
      _
    // Predicated region
    $region14: #{forward.1} parent=1 // pred_check
      _
    $region15: #{forward.1} parent=1 // pred_check_branch
      %27 = sbr.rel (0) target = $region17
    $region16: #{forward.1} parent=1 // pred_region
      %28 = dma.done [#allocation4], 7552
    $region17: #{forward.1} parent=1 // pred_fallthru
      _
    %v29 = vld [vmem:[#allocation3] sm:$0xff]
    %v30 = vld [vmem:[#allocation3 + $0x8] sm:$0xff]
    %v31 = vld [vmem:[%s0] sm:$0xff]
    %v32 = vld [vmem:[%s0 + $0x8] sm:$0xff]
    %v33 = vld [vmem:[%s0 + $0x10] sm:$0xff]
    %v34 = vld [vmem:[%s0 + $0x18] sm:$0xff]
    %v35 = vld [vmem:[%s0 + $0x20] sm:$0xff]
    %v36 = vld [vmem:[%s0 + $0x28] sm:$0xff]
    %v37 = vld [vmem:[%s0 + $0x30] sm:$0x1f]
    %v38 = vld [vmem:[%s0 + $0x38] sm:$0x1f]
    %v39 = vld [vmem:[%s0 + $0x40] sm:$0x1f]
    %v40 = vld [vmem:[%s1] sm:$0xff]
    %v41 = vld [vmem:[%s1 + $0x8] sm:$0xff]
    %43 = vset.pattern.permute.xlu0 0
    %44 = vperm.xlu0 %43, %v40
    %v45 = vpop.permute.xlu0 %44
    %48 = vset.pattern.permute.xlu0 0
    %49 = vperm.xlu0 %48, %v41
    %v50 = vpop.permute.xlu0 %49
    %vm52 = vcmask 171008
    %v54 = vsel %vm52, %v29, 0
    %v57 = vsel %vm52, %v30, 0
    %vm59 = vcmask 1044480
    %v61 = vsel %vm59, %v37, 0
    %v64 = vsel %vm59, %v38, 0
    %v67 = vsel %vm59, %v39, 0
    %69 = vmatprep.subr.mxu0 %v32
    %70 = vmatpush1.msra.mxu0 %v31
    %71 = vmatprep.subr.mxu0 %v35
    %72 = vmatpush1.msra.mxu0 %v34
    %73 = vmatprep.subr.mxu0 %v64
    %74 = vmatpush1.msra.mxu0 %v61
    %75 = vmatprep.subr.mxu0 0.0
    %76 = vmatpush1.msra.mxu0 0.0
    %77 = vmatprep.subr.mxu0 0.0
    %78 = vmatpush1.msra.mxu0 0.0
    %79 = vmatprep.subr.mxu0 0.0
    %80 = vmatpush1.msra.mxu0 0.0
    %81 = vmatprep.subr.mxu0 0.0
    %82 = vmatpush1.msra.mxu0 0.0
    %83 = vmatprep.subr.mxu0 0.0
    %84 = vmatpush1.msra.mxu0 0.0
    %85 = vmatprep.subr.mxu0 0.0
    %86 = vmatpush1.msra.mxu0 0.0
    %87 = vmatprep.subr.mxu0 0.0
    %88 = vmatpush1.msra.mxu0 0.0
    %89 = vmatprep.subr.mxu0 0.0
    %90 = vmatpush1.msra.mxu0 0.0
    %91 = vmatprep.subr.mxu0 0.0
    %92 = vmatpush1.msra.mxu0 0.0
    %93 = vmatprep.subr.mxu0 0.0
    %94 = vmatpush1.msra.mxu0 0.0
    %95 = vmatprep.subr.mxu0 0.0
    %96 = vmatpush1.msra.mxu0 0.0
    %97 = vmatprep.subr.mxu0 0.0
    %98 = vmatpush1.msra.mxu0 0.0
    %99 = vmatprep.subr.mxu0 0.0
    %100 = vmatpush1.msra.mxu0 0.0
    %101 = vmatprep.subr.mxu0 0.0
    %102 = vmatpush1.msra.mxu0 0.0
    %103 = vmatprep.subr.mxu0 0.0
    %104 = vmatpush1.msra.mxu0 0.0
    %105 = vmatprep.subr.mxu0 0.0
    %106 = vmatpush1.msra.mxu0 0.0
    %107 = vmatprep.subr.mxu0 0.0
    %108 = vmatpush1.msra.mxu0 0.0
    %109 = vmatprep.subr.mxu0 0.0
    %110 = vmatpush1.msra.mxu0 0.0
    %111 = vmatprep.subr.mxu0 0.0
    %112 = vmatpush1.msra.mxu0 0.0
    %113 = vmatprep.subr.mxu0 0.0
    %114 = vmatpush1.msra.mxu0 0.0
    %115 = vmatprep.subr.mxu0 0.0
    %116 = vmatpush1.msra.mxu0 0.0
    %117 = vmatprep.subr.mxu0 0.0
    %118 = vmatpush1.msra.mxu0 0.0
    %119 = vmatprep.subr.mxu0 0.0
    %120 = vmatpush1.msra.mxu0 0.0
    %121 = vmatprep.subr.mxu0 0.0
    %122 = vmatpush1.msra.mxu0 0.0
    %123 = vmatprep.subr.mxu0 0.0
    %124 = vmatpush1.msra.mxu0 0.0
    %125 = vmatprep.subr.mxu0 0.0
    %126 = vmatpush1.msra.mxu0 0.0
    %127 = vmatprep.subr.mxu0 0.0
    %128 = vmatpush1.msra.mxu0 0.0
    %129 = vmatprep.subr.mxu0 0.0
    %130 = vmatpush1.msra.mxu0 0.0
    %131 = vmatprep.subr.mxu0 0.0
    %132 = vmatpush1.msra.mxu0 0.0
    %133 = vmatprep.mubr.f32.mxu0 0.0
    %134 = vmatmul.mubr.f32.gmra.mrb[0].mxu0 %v54
    %v135 = vpop.f32.mrb[0].mxu0
    %v136 = vadd.f32 %v45, %v135
    %v137 = vpop.f32.mrb[0].mxu0
    %v138 = vadd.f32 %v45, %v137
    %139 = vmatprep.mubr.f32.mxu0 0.0
    %140 = vmatmul.mubr.f32.gmra.mrb[0].mxu0 %v57
    %v141 = vpop.f32.mrb[0].mxu0
    %v142 = vadd.f32 %v50, %v141
    %v143 = vpop.f32.mrb[0].mxu0
    %v144 = vadd.f32 %v50, %v143
    %145 = vdwg.mxu0
    %146 = vmatprep.subr.mxu0 0.0
    %147 = vmatpush1.msra.mxu0 %v33
    %148 = vmatprep.subr.mxu0 0.0
    %149 = vmatpush1.msra.mxu0 %v36
    %150 = vmatprep.subr.mxu0 0.0
    %151 = vmatpush1.msra.mxu0 %v67
    %152 = vmatprep.subr.mxu0 0.0
    %153 = vmatpush1.msra.mxu0 0.0
    %154 = vmatprep.subr.mxu0 0.0
    %155 = vmatpush1.msra.mxu0 0.0
    %156 = vmatprep.subr.mxu0 0.0
    %157 = vmatpush1.msra.mxu0 0.0
    %158 = vmatprep.subr.mxu0 0.0
    %159 = vmatpush1.msra.mxu0 0.0
    %160 = vmatprep.subr.mxu0 0.0
    %161 = vmatpush1.msra.mxu0 0.0
    %162 = vmatprep.subr.mxu0 0.0
    %163 = vmatpush1.msra.mxu0 0.0
    %164 = vmatprep.subr.mxu0 0.0
    %165 = vmatpush1.msra.mxu0 0.0
    %166 = vmatprep.subr.mxu0 0.0
    %167 = vmatpush1.msra.mxu0 0.0
    %168 = vmatprep.subr.mxu0 0.0
    %169 = vmatpush1.msra.mxu0 0.0
    %170 = vmatprep.subr.mxu0 0.0
    %171 = vmatpush1.msra.mxu0 0.0
    %172 = vmatprep.subr.mxu0 0.0
    %173 = vmatpush1.msra.mxu0 0.0
    %174 = vmatprep.subr.mxu0 0.0
    %175 = vmatpush1.msra.mxu0 0.0
    %176 = vmatprep.subr.mxu0 0.0
    %177 = vmatpush1.msra.mxu0 0.0
    %178 = vmatprep.subr.mxu0 0.0
    %179 = vmatpush1.msra.mxu0 0.0
    %180 = vmatprep.subr.mxu0 0.0
    %181 = vmatpush1.msra.mxu0 0.0
    %182 = vmatprep.subr.mxu0 0.0
    %183 = vmatpush1.msra.mxu0 0.0
    %184 = vmatprep.subr.mxu0 0.0
    %185 = vmatpush1.msra.mxu0 0.0
    %186 = vmatprep.subr.mxu0 0.0
    %187 = vmatpush1.msra.mxu0 0.0
    %188 = vmatprep.subr.mxu0 0.0
    %189 = vmatpush1.msra.mxu0 0.0
    %190 = vmatprep.subr.mxu0 0.0
    %191 = vmatpush1.msra.mxu0 0.0
    %192 = vmatprep.subr.mxu0 0.0
    %193 = vmatpush1.msra.mxu0 0.0
    %194 = vmatprep.subr.mxu0 0.0
    %195 = vmatpush1.msra.mxu0 0.0
    %196 = vmatprep.subr.mxu0 0.0
    %197 = vmatpush1.msra.mxu0 0.0
    %198 = vmatprep.subr.mxu0 0.0
    %199 = vmatpush1.msra.mxu0 0.0
    %200 = vmatprep.subr.mxu0 0.0
    %201 = vmatpush1.msra.mxu0 0.0
    %202 = vmatprep.subr.mxu0 0.0
    %203 = vmatpush1.msra.mxu0 0.0
    %204 = vmatprep.subr.mxu0 0.0
    %205 = vmatpush1.msra.mxu0 0.0
    %206 = vmatprep.subr.mxu0 0.0
    %207 = vmatpush1.msra.mxu0 0.0
    %208 = vmatprep.subr.mxu0 0.0
    %209 = vmatpush1.msra.mxu0 0.0
    %210 = vmatprep.mubr.f32.mxu0 0.0
    %211 = vmatmul.mubr.f32.gmra.mrb[0].mxu0 %v54
    %v212 = vpop.f32.mrb[0].mxu0
    %v213 = vadd.f32 %v45, %v212
    %v214 = vpop.f32.mrb[0].mxu0
    %215 = vmatprep.mubr.f32.mxu0 0.0
    %216 = vmatmul.mubr.f32.gmra.mrb[0].mxu0 %v57
    %v217 = vpop.f32.mrb[0].mxu0
    %v218 = vadd.f32 %v50, %v217
    %v219 = vpop.f32.mrb[0].mxu0
    %220 = vdwg.mxu0
    %v221 = vld [vmem:[%s1 + $0x10] sm:$0xff]
    %v222 = vld [vmem:[%s1 + $0x18] sm:$0xff]
    %224 = vset.pattern.permute.xlu0 0
    %225 = vperm.xlu0 %224, %v221
    %v226 = vpop.permute.xlu0 %225
    %229 = vset.pattern.permute.xlu0 0
    %230 = vperm.xlu0 %229, %v222
    %v231 = vpop.permute.xlu0 %230
    %v233 = vmul.f32 %v136, %v226
    %v234 = vmul.f32 %v138, %v226
    %v235 = vmul.f32 %v213, %v226
    %v236 = vmul.f32 %v142, %v231
    %v237 = vmul.f32 %v144, %v231
    %v238 = vmul.f32 %v218, %v231
    %v239 = vld [vmem:[%s1 + $0x20] sm:$0xff]
    %v240 = vld [vmem:[%s1 + $0x28] sm:$0xff]
    %242 = vset.pattern.permute.xlu0 0
    %243 = vperm.xlu0 %242, %v239
    %v244 = vpop.permute.xlu0 %243
    %247 = vset.pattern.permute.xlu0 0
    %248 = vperm.xlu0 %247, %v240
    %v249 = vpop.permute.xlu0 %248
    %v251 = vadd.f32 %v233, %v244
    %v252 = vadd.f32 %v234, %v244
    %v253 = vadd.f32 %v235, %v244
    %v254 = vadd.f32 %v236, %v249
    %v255 = vadd.f32 %v237, %v249
    %v256 = vadd.f32 %v238, %v249
    %v257 = vmax.f32 %v251, 0.0
    %v258 = vmax.f32 %v252, 0.0
    %v259 = vmax.f32 %v253, 0.0
    %v260 = vmax.f32 %v254, 0.0
    %v261 = vmax.f32 %v255, 0.0
    %v262 = vmax.f32 %v256, 0.0
    %v263 = vmax.f32 %v257, %v258
    %v264 = vmax.f32 %v260, %v261
    %v265 = vmax.f32 %v263, %v259
    %v266 = vmax.f32 %v264, %v262
    %267 = vst [vmem:[#allocation2] sm:$0xff] %v265
    %268 = vst [vmem:[#allocation2 + $0x8] sm:$0xff] %v266
    %v269 = vlaneseq
    %v270 = vand.u32 %v269, 127
    %vm271 = vcmp.lt.s32.totalorder %v270, 0
    %v272 = vsub.s32 0, %v270
    %v273 = vsel %vm271, %v272, %v270
    %v274 = vshrl.u32 %v273, 5
    %v275 = vand.u32 %v273, 31
    %v276 = vsub.s32 0, %v275
    %v277 = vsel %vm271, %v276, %v275
    %vm278 = vcmp.ne.s32.totalorder %v277, 0
    %vm279 = vcmp.lt.s32.totalorder %v277, 0
    %vm280 = vmand %vm279, %vm278
    %v281 = vadd.s32 %v277, 32
    %v282 = vsel %vm280, %v281, %v277
    %vm283 = vcmp.ne.s32.totalorder %v282, 0
    %vm284 = vcmp.ne.s32.totalorder %v282, 31
    %v285 = vld [vmem:[#allocation2] sm:$0xff]
    %v286 = vld [vmem:[#allocation2 + $0x8] sm:$0xff]
    %v287 = vld [vmem:[%s1 + $0x30] sm:$0xff]
    %v288 = vld [vmem:[%s1 + $0x38] sm:$0xff]
    %290 = vset.pattern.permute.xlu0 0
    %291 = vperm.xlu0 %290, %v287
    %v292 = vpop.permute.xlu0 %291
    %295 = vset.pattern.permute.xlu0 0
    %296 = vperm.xlu0 %295, %v288
    %v297 = vpop.permute.xlu0 %296
    %v299 = vmul.f32 %v285, %v292
    %v300 = vmul.f32 %v286, %v297
    %v301 = vld [vmem:[%s1 + $0x40] sm:$0xff]
    %v302 = vld [vmem:[%s1 + $0x48] sm:$0xff]
    %304 = vset.pattern.permute.xlu0 0
    %305 = vperm.xlu0 %304, %v301
    %v306 = vpop.permute.xlu0 %305
    %309 = vset.pattern.permute.xlu0 0
    %310 = vperm.xlu0 %309, %v302
    %v311 = vpop.permute.xlu0 %310
    %v313 = vadd.f32 %v299, %v306
    %v314 = vadd.f32 %v300, %v311
    %v315 = vmax.f32 %v313, 0.0
    %v316 = vmax.f32 %v314, 0.0
    %v317 = vld [vmem:[#allocation3 + $0x10] sm:$0xff]
    %v318 = vld [vmem:[%s1 + $0x50] sm:$0xff]
    %320 = vset.pattern.permute.xlu0 0
    %321 = vperm.xlu0 %320, %v318
    %v322 = vpop.permute.xlu0 %321
    %vm324 = vcmask 130048
    %v326 = vsel %vm324, %v317, 0
    %328 = vmatprep.subr.mxu0 0.0
    %329 = vmatpush1.msra.mxu0 %v315
    %330 = vmatprep.subr.mxu0 0.0
    %331 = vmatpush1.msra.mxu0 %v316
    %332 = vmatprep.subr.mxu0 0.0
    %333 = vmatpush1.msra.mxu0 0.0
    %334 = vmatprep.subr.mxu0 0.0
    %335 = vmatpush1.msra.mxu0 0.0
    %336 = vmatprep.subr.mxu0 0.0
    %337 = vmatpush1.msra.mxu0 0.0
    %338 = vmatprep.subr.mxu0 0.0
    %339 = vmatpush1.msra.mxu0 0.0
    %340 = vmatprep.subr.mxu0 0.0
    %341 = vmatpush1.msra.mxu0 0.0
    %342 = vmatprep.subr.mxu0 0.0
    %343 = vmatpush1.msra.mxu0 0.0
    %344 = vmatprep.subr.mxu0 0.0
    %345 = vmatpush1.msra.mxu0 0.0
    %346 = vmatprep.subr.mxu0 0.0
    %347 = vmatpush1.msra.mxu0 0.0
    %348 = vmatprep.subr.mxu0 0.0
    %349 = vmatpush1.msra.mxu0 0.0
    %350 = vmatprep.subr.mxu0 0.0
    %351 = vmatpush1.msra.mxu0 0.0
    %352 = vmatprep.subr.mxu0 0.0
    %353 = vmatpush1.msra.mxu0 0.0
    %354 = vmatprep.subr.mxu0 0.0
    %355 = vmatpush1.msra.mxu0 0.0
    %356 = vmatprep.subr.mxu0 0.0
    %357 = vmatpush1.msra.mxu0 0.0
    %358 = vmatprep.subr.mxu0 0.0
    %359 = vmatpush1.msra.mxu0 0.0
    %360 = vmatprep.subr.mxu0 0.0
    %361 = vmatpush1.msra.mxu0 0.0
    %362 = vmatprep.subr.mxu0 0.0
    %363 = vmatpush1.msra.mxu0 0.0
    %364 = vmatprep.subr.mxu0 0.0
    %365 = vmatpush1.msra.mxu0 0.0
    %366 = vmatprep.subr.mxu0 0.0
    %367 = vmatpush1.msra.mxu0 0.0
    %368 = vmatprep.subr.mxu0 0.0
    %369 = vmatpush1.msra.mxu0 0.0
    %370 = vmatprep.subr.mxu0 0.0
    %371 = vmatpush1.msra.mxu0 0.0
    %372 = vmatprep.subr.mxu0 0.0
    %373 = vmatpush1.msra.mxu0 0.0
    %374 = vmatprep.subr.mxu0 0.0
    %375 = vmatpush1.msra.mxu0 0.0
    %376 = vmatprep.subr.mxu0 0.0
    %377 = vmatpush1.msra.mxu0 0.0
    %378 = vmatprep.subr.mxu0 0.0
    %379 = vmatpush1.msra.mxu0 0.0
    %380 = vmatprep.subr.mxu0 0.0
    %381 = vmatpush1.msra.mxu0 0.0
    %382 = vmatprep.subr.mxu0 0.0
    %383 = vmatpush1.msra.mxu0 0.0
    %384 = vmatprep.subr.mxu0 0.0
    %385 = vmatpush1.msra.mxu0 0.0
    %386 = vmatprep.subr.mxu0 0.0
    %387 = vmatpush1.msra.mxu0 0.0
    %388 = vmatprep.subr.mxu0 0.0
    %389 = vmatpush1.msra.mxu0 0.0
    %390 = vmatprep.subr.mxu0 0.0
    %391 = vmatpush1.msra.mxu0 0.0
    %392 = vmatprep.mubr.f32.mxu0 0.0
    %393 = vmatmul.mubr.f32.gmra.mrb[0].mxu0 %v326
    %v394 = vpop.f32.mrb[0].mxu0
    %v395 = vadd.f32 %v322, %v394
    %v396 = vpop.f32.mrb[0].mxu0
    %397 = vdwg.mxu0
    %v398 = vld [vmem:[%s1 + $0x58] sm:$0xff]
    %400 = vset.pattern.permute.xlu0 0
    %401 = vperm.xlu0 %400, %v398
    %v402 = vpop.permute.xlu0 %401
    %v404 = vmul.f32 %v395, %v402
    %v405 = vld [vmem:[%s1 + $0x60] sm:$0xff]
    %407 = vset.pattern.permute.xlu0 0
    %408 = vperm.xlu0 %407, %v405
    %v409 = vpop.permute.xlu0 %408
    %v411 = vadd.f32 %v404, %v409
    %v412 = vmax.f32 %v411, 0.0
    %v413 = vld [vmem:[#allocation3 + $0x18] sm:$0xff]
    %414 = vrot.lane.b32.xlu0 %v412, 1
    %v415 = vpop.permute.xlu0 %414
    %v416 = vsel %vm283, 1, 0
    %vm417 = vcmp.eq.s32.totalorder %v416, 1
    %v418 = vsel %vm417, %v415, 0.0
    %419 = vrot.lane.b32.xlu0 %v412, 127
    %v420 = vpop.permute.xlu0 %419
    %v421 = vsel %vm284, 1, 0
    %vm422 = vcmp.eq.s32.totalorder %v421, 1
    %v423 = vsel %vm422, %v420, 0.0
    %v424 = vld [vmem:[%s1 + $0x68] sm:$0xff]
    %426 = vset.pattern.permute.xlu0 0
    %427 = vperm.xlu0 %426, %v424
    %v428 = vpop.permute.xlu0 %427
    %vm430 = vcmask 195584
    %v432 = vsel %vm430, %v413, 0
    %434 = vmatprep.subr.mxu0 0.0
    %435 = vmatpush1.msra.mxu0 %v418
    %436 = vmatprep.subr.mxu0 0.0
    %437 = vmatpush1.msra.mxu0 %v412
    %438 = vmatprep.subr.mxu0 0.0
    %439 = vmatpush1.msra.mxu0 %v423
    %440 = vmatprep.subr.mxu0 0.0
    %441 = vmatpush1.msra.mxu0 0.0
    %442 = vmatprep.subr.mxu0 0.0
    %443 = vmatpush1.msra.mxu0 0.0
    %444 = vmatprep.subr.mxu0 0.0
    %445 = vmatpush1.msra.mxu0 0.0
    %446 = vmatprep.subr.mxu0 0.0
    %447 = vmatpush1.msra.mxu0 0.0
    %448 = vmatprep.subr.mxu0 0.0
    %449 = vmatpush1.msra.mxu0 0.0
    %450 = vmatprep.subr.mxu0 0.0
    %451 = vmatpush1.msra.mxu0 0.0
    %452 = vmatprep.subr.mxu0 0.0
    %453 = vmatpush1.msra.mxu0 0.0
    %454 = vmatprep.subr.mxu0 0.0
    %455 = vmatpush1.msra.mxu0 0.0
    %456 = vmatprep.subr.mxu0 0.0
    %457 = vmatpush1.msra.mxu0 0.0
    %458 = vmatprep.subr.mxu0 0.0
    %459 = vmatpush1.msra.mxu0 0.0
    %460 = vmatprep.subr.mxu0 0.0
    %461 = vmatpush1.msra.mxu0 0.0
    %462 = vmatprep.subr.mxu0 0.0
    %463 = vmatpush1.msra.mxu0 0.0
    %464 = vmatprep.subr.mxu0 0.0
    %465 = vmatpush1.msra.mxu0 0.0
    %466 = vmatprep.subr.mxu0 0.0
    %467 = vmatpush1.msra.mxu0 0.0
    %468 = vmatprep.subr.mxu0 0.0
    %469 = vmatpush1.msra.mxu0 0.0
    %470 = vmatprep.subr.mxu0 0.0
    %471 = vmatpush1.msra.mxu0 0.0
    %472 = vmatprep.subr.mxu0 0.0
    %473 = vmatpush1.msra.mxu0 0.0
    %474 = vmatprep.subr.mxu0 0.0
    %475 = vmatpush1.msra.mxu0 0.0
    %476 = vmatprep.subr.mxu0 0.0
    %477 = vmatpush1.msra.mxu0 0.0
    %478 = vmatprep.subr.mxu0 0.0
    %479 = vmatpush1.msra.mxu0 0.0
    %480 = vmatprep.subr.mxu0 0.0
    %481 = vmatpush1.msra.mxu0 0.0
    %482 = vmatprep.subr.mxu0 0.0
    %483 = vmatpush1.msra.mxu0 0.0
    %484 = vmatprep.subr.mxu0 0.0
    %485 = vmatpush1.msra.mxu0 0.0
    %486 = vmatprep.subr.mxu0 0.0
    %487 = vmatpush1.msra.mxu0 0.0
    %488 = vmatprep.subr.mxu0 0.0
    %489 = vmatpush1.msra.mxu0 0.0
    %490 = vmatprep.subr.mxu0 0.0
    %491 = vmatpush1.msra.mxu0 0.0
    %492 = vmatprep.subr.mxu0 0.0
    %493 = vmatpush1.msra.mxu0 0.0
    %494 = vmatprep.subr.mxu0 0.0
    %495 = vmatpush1.msra.mxu0 0.0
    %496 = vmatprep.subr.mxu0 0.0
    %497 = vmatpush1.msra.mxu0 0.0
    %498 = vmatprep.mubr.f32.mxu0 0.0
    %499 = vmatmul.mubr.f32.gmra.mrb[0].mxu0 %v432
    %v500 = vpop.f32.mrb[0].mxu0
    %v501 = vadd.f32 %v428, %v500
    %v502 = vpop.f32.mrb[0].mxu0
    %503 = vdwg.mxu0
    %504 = vst [vmem:[#allocation2 + $0x10] sm:$0xff] %v501
    %v505 = vld [vmem:[#allocation2] sm:$0xff]
    %v506 = vld [vmem:[#allocation2 + $0x8] sm:$0xff]
    %v507 = vld [vmem:[#allocation2 + $0x10] sm:$0xff]
    %v508 = vld [vmem:[%s1 + $0x70] sm:$0xff]
    %v509 = vld [vmem:[%s1 + $0x78] sm:$0xff]
    %v510 = vld [vmem:[%s1 + $0x80] sm:$0xff]
    %512 = vset.pattern.permute.xlu0 0
    %513 = vperm.xlu0 %512, %v508
    %v514 = vpop.permute.xlu0 %513
    %517 = vset.pattern.permute.xlu0 0
    %518 = vperm.xlu0 %517, %v509
    %v519 = vpop.permute.xlu0 %518
    %522 = vset.pattern.permute.xlu0 0
    %523 = vperm.xlu0 %522, %v510
    %v524 = vpop.permute.xlu0 %523
    %v526 = vmul.f32 %v505, %v514
    %v527 = vmul.f32 %v506, %v519
    %v528 = vmul.f32 %v507, %v524
    %v529 = vld [vmem:[%s1 + $0x88] sm:$0xff]
    %v530 = vld [vmem:[%s1 + $0x90] sm:$0xff]
    %v531 = vld [vmem:[%s1 + $0x98] sm:$0xff]
    %533 = vset.pattern.permute.xlu0 0
    %534 = vperm.xlu0 %533, %v529
    %v535 = vpop.permute.xlu0 %534
    %538 = vset.pattern.permute.xlu0 0
    %539 = vperm.xlu0 %538, %v530
    %v540 = vpop.permute.xlu0 %539
    %543 = vset.pattern.permute.xlu0 0
    %544 = vperm.xlu0 %543, %v531
    %v545 = vpop.permute.xlu0 %544
    %v547 = vadd.f32 %v526, %v535
    %v548 = vadd.f32 %v527, %v540
    %v549 = vadd.f32 %v528, %v545
    %v550 = vmax.f32 %v547, 0.0
    %v551 = vmax.f32 %v548, 0.0
    %v552 = vmax.f32 %v549, 0.0
    %v553 = vld [vmem:[#allocation3 + $0x20] sm:$0xff]
    %v554 = vld [vmem:[%s1 + $0xa0] sm:$0xff]
    %556 = vset.pattern.permute.xlu0 0
    %557 = vperm.xlu0 %556, %v554
    %v558 = vpop.permute.xlu0 %557
    %v561 = vsel %vm430, %v553, 0
    %563 = vmatprep.subr.mxu0 0.0
    %564 = vmatpush1.msra.mxu0 %v550
    %565 = vmatprep.subr.mxu0 0.0
    %566 = vmatpush1.msra.mxu0 %v551
    %567 = vmatprep.subr.mxu0 0.0
    %568 = vmatpush1.msra.mxu0 %v552
    %569 = vmatprep.subr.mxu0 0.0
    %570 = vmatpush1.msra.mxu0 0.0
    %571 = vmatprep.subr.mxu0 0.0
    %572 = vmatpush1.msra.mxu0 0.0
    %573 = vmatprep.subr.mxu0 0.0
    %574 = vmatpush1.msra.mxu0 0.0
    %575 = vmatprep.subr.mxu0 0.0
    %576 = vmatpush1.msra.mxu0 0.0
    %577 = vmatprep.subr.mxu0 0.0
    %578 = vmatpush1.msra.mxu0 0.0
    %579 = vmatprep.subr.mxu0 0.0
    %580 = vmatpush1.msra.mxu0 0.0
    %581 = vmatprep.subr.mxu0 0.0
    %582 = vmatpush1.msra.mxu0 0.0
    %583 = vmatprep.subr.mxu0 0.0
    %584 = vmatpush1.msra.mxu0 0.0
    %585 = vmatprep.subr.mxu0 0.0
    %586 = vmatpush1.msra.mxu0 0.0
    %587 = vmatprep.subr.mxu0 0.0
    %588 = vmatpush1.msra.mxu0 0.0
    %589 = vmatprep.subr.mxu0 0.0
    %590 = vmatpush1.msra.mxu0 0.0
    %591 = vmatprep.subr.mxu0 0.0
    %592 = vmatpush1.msra.mxu0 0.0
    %593 = vmatprep.subr.mxu0 0.0
    %594 = vmatpush1.msra.mxu0 0.0
    %595 = vmatprep.subr.mxu0 0.0
    %596 = vmatpush1.msra.mxu0 0.0
    %597 = vmatprep.subr.mxu0 0.0
    %598 = vmatpush1.msra.mxu0 0.0
    %599 = vmatprep.subr.mxu0 0.0
    %600 = vmatpush1.msra.mxu0 0.0
    %601 = vmatprep.subr.mxu0 0.0
    %602 = vmatpush1.msra.mxu0 0.0
    %603 = vmatprep.subr.mxu0 0.0
    %604 = vmatpush1.msra.mxu0 0.0
    %605 = vmatprep.subr.mxu0 0.0
    %606 = vmatpush1.msra.mxu0 0.0
    %607 = vmatprep.subr.mxu0 0.0
    %608 = vmatpush1.msra.mxu0 0.0
    %609 = vmatprep.subr.mxu0 0.0
    %610 = vmatpush1.msra.mxu0 0.0
    %611 = vmatprep.subr.mxu0 0.0
    %612 = vmatpush1.msra.mxu0 0.0
    %613 = vmatprep.subr.mxu0 0.0
    %614 = vmatpush1.msra.mxu0 0.0
    %615 = vmatprep.subr.mxu0 0.0
    %616 = vmatpush1.msra.mxu0 0.0
    %617 = vmatprep.subr.mxu0 0.0
    %618 = vmatpush1.msra.mxu0 0.0
    %619 = vmatprep.subr.mxu0 0.0
    %620 = vmatpush1.msra.mxu0 0.0
    %621 = vmatprep.subr.mxu0 0.0
    %622 = vmatpush1.msra.mxu0 0.0
    %623 = vmatprep.subr.mxu0 0.0
    %624 = vmatpush1.msra.mxu0 0.0
    %625 = vmatprep.subr.mxu0 0.0
    %626 = vmatpush1.msra.mxu0 0.0
    %627 = vmatprep.mubr.f32.mxu0 0.0
    %628 = vmatmul.mubr.f32.gmra.mrb[0].mxu0 %v561
    %v629 = vpop.f32.mrb[0].mxu0
    %v630 = vadd.f32 %v558, %v629
    %v631 = vpop.f32.mrb[0].mxu0
    %632 = vdwg.mxu0
    %v633 = vld [vmem:[%s1 + $0xa8] sm:$0xff]
    %635 = vset.pattern.permute.xlu0 0
    %636 = vperm.xlu0 %635, %v633
    %v637 = vpop.permute.xlu0 %636
    %v639 = vmul.f32 %v630, %v637
    %v640 = vld [vmem:[%s1 + $0xb0] sm:$0xff]
    %642 = vset.pattern.permute.xlu0 0
    %643 = vperm.xlu0 %642, %v640
    %v644 = vpop.permute.xlu0 %643
    %v646 = vadd.f32 %v639, %v644
    %v647 = vmax.f32 %v646, 0.0
    %v648 = vld [vmem:[#allocation3 + $0x28] sm:$0xff]
    %649 = vrot.lane.b32.xlu0 %v647, 1
    %v650 = vpop.permute.xlu0 %649
    %v651 = vsel %vm417, %v650, 0.0
    %652 = vrot.lane.b32.xlu0 %v647, 127
    %v653 = vpop.permute.xlu0 %652
    %v654 = vsel %vm422, %v653, 0.0
    %v655 = vld [vmem:[%s1 + $0xb8] sm:$0xff]
    %657 = vset.pattern.permute.xlu0 0
    %658 = vperm.xlu0 %657, %v655
    %v659 = vpop.permute.xlu0 %658
    %v662 = vsel %vm430, %v648, 0
    %664 = vmatprep.subr.mxu0 0.0
    %665 = vmatpush1.msra.mxu0 %v651
    %666 = vmatprep.subr.mxu0 0.0
    %667 = vmatpush1.msra.mxu0 %v647
    %668 = vmatprep.subr.mxu0 0.0
    %669 = vmatpush1.msra.mxu0 %v654
    %670 = vmatprep.subr.mxu0 0.0
    %671 = vmatpush1.msra.mxu0 0.0
    %672 = vmatprep.subr.mxu0 0.0
    %673 = vmatpush1.msra.mxu0 0.0
    %674 = vmatprep.subr.mxu0 0.0
    %675 = vmatpush1.msra.mxu0 0.0
    %676 = vmatprep.subr.mxu0 0.0
    %677 = vmatpush1.msra.mxu0 0.0
    %678 = vmatprep.subr.mxu0 0.0
    %679 = vmatpush1.msra.mxu0 0.0
    %680 = vmatprep.subr.mxu0 0.0
    %681 = vmatpush1.msra.mxu0 0.0
    %682 = vmatprep.subr.mxu0 0.0
    %683 = vmatpush1.msra.mxu0 0.0
    %684 = vmatprep.subr.mxu0 0.0
    %685 = vmatpush1.msra.mxu0 0.0
    %686 = vmatprep.subr.mxu0 0.0
    %687 = vmatpush1.msra.mxu0 0.0
    %688 = vmatprep.subr.mxu0 0.0
    %689 = vmatpush1.msra.mxu0 0.0
    %690 = vmatprep.subr.mxu0 0.0
    %691 = vmatpush1.msra.mxu0 0.0
    %692 = vmatprep.subr.mxu0 0.0
    %693 = vmatpush1.msra.mxu0 0.0
    %694 = vmatprep.subr.mxu0 0.0
    %695 = vmatpush1.msra.mxu0 0.0
    %696 = vmatprep.subr.mxu0 0.0
    %697 = vmatpush1.msra.mxu0 0.0
    %698 = vmatprep.subr.mxu0 0.0
    %699 = vmatpush1.msra.mxu0 0.0
    %700 = vmatprep.subr.mxu0 0.0
    %701 = vmatpush1.msra.mxu0 0.0
    %702 = vmatprep.subr.mxu0 0.0
    %703 = vmatpush1.msra.mxu0 0.0
    %704 = vmatprep.subr.mxu0 0.0
    %705 = vmatpush1.msra.mxu0 0.0
    %706 = vmatprep.subr.mxu0 0.0
    %707 = vmatpush1.msra.mxu0 0.0
    %708 = vmatprep.subr.mxu0 0.0
    %709 = vmatpush1.msra.mxu0 0.0
    %710 = vmatprep.subr.mxu0 0.0
    %711 = vmatpush1.msra.mxu0 0.0
    %712 = vmatprep.subr.mxu0 0.0
    %713 = vmatpush1.msra.mxu0 0.0
    %714 = vmatprep.subr.mxu0 0.0
    %715 = vmatpush1.msra.mxu0 0.0
    %716 = vmatprep.subr.mxu0 0.0
    %717 = vmatpush1.msra.mxu0 0.0
    %718 = vmatprep.subr.mxu0 0.0
    %719 = vmatpush1.msra.mxu0 0.0
    %720 = vmatprep.subr.mxu0 0.0
    %721 = vmatpush1.msra.mxu0 0.0
    %722 = vmatprep.subr.mxu0 0.0
    %723 = vmatpush1.msra.mxu0 0.0
    %724 = vmatprep.subr.mxu0 0.0
    %725 = vmatpush1.msra.mxu0 0.0
    %726 = vmatprep.subr.mxu0 0.0
    %727 = vmatpush1.msra.mxu0 0.0
    %728 = vmatprep.mubr.f32.mxu0 0.0
    %729 = vmatmul.mubr.f32.gmra.mrb[0].mxu0 %v662
    %v730 = vpop.f32.mrb[0].mxu0
    %v731 = vadd.f32 %v659, %v730
    %v732 = vpop.f32.mrb[0].mxu0
    %733 = vdwg.mxu0
    %734 = vst [vmem:[#allocation2 + $0x18] sm:$0xff] %v731
    %v735 = vld [vmem:[#allocation2] sm:$0xff]
    %v736 = vld [vmem:[#allocation2 + $0x8] sm:$0xff]
    %v737 = vld [vmem:[#allocation2 + $0x10] sm:$0xff]
    %v738 = vld [vmem:[#allocation2 + $0x18] sm:$0xff]
    %v739 = vld [vmem:[%s1 + $0xc0] sm:$0xff]
    %v740 = vld [vmem:[%s1 + $0xc8] sm:$0xff]
    %v741 = vld [vmem:[%s1 + $0xd0] sm:$0xff]
    %v742 = vld [vmem:[%s1 + $0xd8] sm:$0xff]
    %744 = vset.pattern.permute.xlu0 0
    %745 = vperm.xlu0 %744, %v739
    %v746 = vpop.permute.xlu0 %745
    %749 = vset.pattern.permute.xlu0 0
    %750 = vperm.xlu0 %749, %v740
    %v751 = vpop.permute.xlu0 %750
    %754 = vset.pattern.permute.xlu0 0
    %755 = vperm.xlu0 %754, %v741
    %v756 = vpop.permute.xlu0 %755
    %759 = vset.pattern.permute.xlu0 0
    %760 = vperm.xlu0 %759, %v742
    %v761 = vpop.permute.xlu0 %760
    %v763 = vmul.f32 %v735, %v746
    %v764 = vmul.f32 %v736, %v751
    %v765 = vmul.f32 %v737, %v756
    %v766 = vmul.f32 %v738, %v761
    %v767 = vld [vmem:[%s1 + $0xe0] sm:$0xff]
    %v768 = vld [vmem:[%s1 + $0xe8] sm:$0xff]
    %v769 = vld [vmem:[%s1 + $0xf0] sm:$0xff]
    %v770 = vld [vmem:[%s1 + $0xf8] sm:$0xff]
    %772 = vset.pattern.permute.xlu0 0
    %773 = vperm.xlu0 %772, %v767
    %v774 = vpop.permute.xlu0 %773
    %777 = vset.pattern.permute.xlu0 0
    %778 = vperm.xlu0 %777, %v768
    %v779 = vpop.permute.xlu0 %778
    %782 = vset.pattern.permute.xlu0 0
    %783 = vperm.xlu0 %782, %v769
    %v784 = vpop.permute.xlu0 %783
    %787 = vset.pattern.permute.xlu0 0
    %788 = vperm.xlu0 %787, %v770
    %v789 = vpop.permute.xlu0 %788
    %v791 = vadd.f32 %v763, %v774
    %v792 = vadd.f32 %v764, %v779
    %v793 = vadd.f32 %v765, %v784
    %v794 = vadd.f32 %v766, %v789
    %v795 = vmax.f32 %v791, 0.0
    %v796 = vmax.f32 %v792, 0.0
    %v797 = vmax.f32 %v793, 0.0
    %v798 = vmax.f32 %v794, 0.0
    %v799 = vld [vmem:[#allocation3 + $0x30] sm:$0xff]
    %v800 = vld [vmem:[#allocation3 + $0x38] sm:$0xff]
    %801 = vrot.lane.b32.xlu0 %v795, 1
    %v802 = vpop.permute.xlu0 %801
    %803 = vrot.lane.b32.xlu0 %v796, 1
    %v804 = vpop.permute.xlu0 %803
    %805 = vrot.lane.b32.xlu0 %v797, 1
    %v806 = vpop.permute.xlu0 %805
    %807 = vrot.lane.b32.xlu0 %v798, 1
    %v808 = vpop.permute.xlu0 %807
    %v809 = vsel %vm417, %v802, 0.0
    %v810 = vsel %vm417, %v804, 0.0
    %v811 = vsel %vm417, %v806, 0.0
    %v812 = vsel %vm417, %v808, 0.0
    %813 = vrot.lane.b32.xlu0 %v795, 127
    %v814 = vpop.permute.xlu0 %813
    %815 = vrot.lane.b32.xlu0 %v796, 127
    %v816 = vpop.permute.xlu0 %815
    %817 = vrot.lane.b32.xlu0 %v797, 127
    %v818 = vpop.permute.xlu0 %817
    %819 = vrot.lane.b32.xlu0 %v798, 127
    %v820 = vpop.permute.xlu0 %819
    %v821 = vsel %vm422, %v814, 0.0
    %v822 = vsel %vm422, %v816, 0.0
    %v823 = vsel %vm422, %v818, 0.0
    %v824 = vsel %vm422, %v820, 0.0
    %v825 = vld [vmem:[%s1 + $0x100] sm:$0xff]
    %v826 = vld [vmem:[%s1 + $0x108] sm:$0xff]
    %828 = vset.pattern.permute.xlu0 0
    %829 = vperm.xlu0 %828, %v825
    %v830 = vpop.permute.xlu0 %829
    %833 = vset.pattern.permute.xlu0 0
    %834 = vperm.xlu0 %833, %v826
    %v835 = vpop.permute.xlu0 %834
    %vm837 = vcmask 785408
    %v839 = vsel %vm837, %v799, 0
    %v842 = vsel %vm837, %v800, 0
    %844 = vmatprep.subr.mxu0 0.0
    %845 = vmatpush1.msra.mxu0 %v809
    %846 = vmatprep.subr.mxu0 0.0
    %847 = vmatpush1.msra.mxu0 %v810
    %848 = vmatprep.subr.mxu0 0.0
    %849 = vmatpush1.msra.mxu0 %v811
    %850 = vmatprep.subr.mxu0 0.0
    %851 = vmatpush1.msra.mxu0 %v812
    %852 = vmatprep.subr.mxu0 0.0
    %853 = vmatpush1.msra.mxu0 %v795
    %854 = vmatprep.subr.mxu0 0.0
    %855 = vmatpush1.msra.mxu0 %v796
    %856 = vmatprep.subr.mxu0 0.0
    %857 = vmatpush1.msra.mxu0 %v797
    %858 = vmatprep.subr.mxu0 0.0
    %859 = vmatpush1.msra.mxu0 %v798
    %860 = vmatprep.subr.mxu0 0.0
    %861 = vmatpush1.msra.mxu0 %v821
    %862 = vmatprep.subr.mxu0 0.0
    %863 = vmatpush1.msra.mxu0 %v822
    %864 = vmatprep.subr.mxu0 0.0
    %865 = vmatpush1.msra.mxu0 %v823
    %866 = vmatprep.subr.mxu0 0.0
    %867 = vmatpush1.msra.mxu0 %v824
    %868 = vmatprep.subr.mxu0 0.0
    %869 = vmatpush1.msra.mxu0 0.0
    %870 = vmatprep.subr.mxu0 0.0
    %871 = vmatpush1.msra.mxu0 0.0
    %872 = vmatprep.subr.mxu0 0.0
    %873 = vmatpush1.msra.mxu0 0.0
    %874 = vmatprep.subr.mxu0 0.0
    %875 = vmatpush1.msra.mxu0 0.0
    %876 = vmatprep.subr.mxu0 0.0
    %877 = vmatpush1.msra.mxu0 0.0
    %878 = vmatprep.subr.mxu0 0.0
    %879 = vmatpush1.msra.mxu0 0.0
    %880 = vmatprep.subr.mxu0 0.0
    %881 = vmatpush1.msra.mxu0 0.0
    %882 = vmatprep.subr.mxu0 0.0
    %883 = vmatpush1.msra.mxu0 0.0
    %884 = vmatprep.subr.mxu0 0.0
    %885 = vmatpush1.msra.mxu0 0.0
    %886 = vmatprep.subr.mxu0 0.0
    %887 = vmatpush1.msra.mxu0 0.0
    %888 = vmatprep.subr.mxu0 0.0
    %889 = vmatpush1.msra.mxu0 0.0
    %890 = vmatprep.subr.mxu0 0.0
    %891 = vmatpush1.msra.mxu0 0.0
    %892 = vmatprep.subr.mxu0 0.0
    %893 = vmatpush1.msra.mxu0 0.0
    %894 = vmatprep.subr.mxu0 0.0
    %895 = vmatpush1.msra.mxu0 0.0
    %896 = vmatprep.subr.mxu0 0.0
    %897 = vmatpush1.msra.mxu0 0.0
    %898 = vmatprep.subr.mxu0 0.0
    %899 = vmatpush1.msra.mxu0 0.0
    %900 = vmatprep.subr.mxu0 0.0
    %901 = vmatpush1.msra.mxu0 0.0
    %902 = vmatprep.subr.mxu0 0.0
    %903 = vmatpush1.msra.mxu0 0.0
    %904 = vmatprep.subr.mxu0 0.0
    %905 = vmatpush1.msra.mxu0 0.0
    %906 = vmatprep.subr.mxu0 0.0
    %907 = vmatpush1.msra.mxu0 0.0
    %908 = vmatprep.mubr.f32.mxu0 0.0
    %909 = vmatmul.mubr.f32.gmra.mrb[0].mxu0 %v839
    %v910 = vpop.f32.mrb[0].mxu0
    %v911 = vadd.f32 %v830, %v910
    %v912 = vpop.f32.mrb[0].mxu0
    %913 = vmatprep.mubr.f32.mxu0 0.0
    %914 = vmatmul.mubr.f32.gmra.mrb[0].mxu0 %v842
    %v915 = vpop.f32.mrb[0].mxu0
    %v916 = vadd.f32 %v835, %v915
    %v917 = vpop.f32.mrb[0].mxu0
    %918 = vdwg.mxu0
    %v919 = vld [vmem:[#allocation3 + $0x40] sm:$0xff]
    %v920 = vld [vmem:[#allocation3 + $0x48] sm:$0xff]
    %v921 = vld [vmem:[#allocation3 + $0x50] sm:$0xff]
    %v922 = vld [vmem:[#allocation3 + $0x58] sm:$0xff]
    %v923 = vld [vmem:[#allocation3 + $0x60] sm:$0xff]
    %v924 = vld [vmem:[#allocation3 + $0x68] sm:$0xff]
    %v925 = vld [vmem:[#allocation3 + $0x70] sm:$0xff]
    %v926 = vld [vmem:[#allocation3 + $0x78] sm:$0xff]
    %v927 = vld [vmem:[#allocation3 + $0x80] sm:$0xff]
    %v928 = vld [vmem:[#allocation3 + $0x88] sm:$0xff]
    %v929 = vld [vmem:[#allocation3 + $0x90] sm:$0xff]
    %v930 = vld [vmem:[#allocation3 + $0x98] sm:$0xff]
    %v931 = vld [vmem:[#allocation3 + $0xa0] sm:$0xff]
    %v932 = vld [vmem:[#allocation3 + $0xa8] sm:$0xff]
    %v933 = vld [vmem:[#allocation3 + $0xb0] sm:$0xff]
    %v934 = vld [vmem:[#allocation3 + $0xb8] sm:$0xff]
    %935 = vmatprep.subr.mxu0 0.0
    %936 = vmatpush1.msra.mxu0 %v919
    %937 = vmatprep.subr.mxu0 0.0
    %938 = vmatpush1.msra.mxu0 %v920
    %939 = vmatprep.subr.mxu0 0.0
    %940 = vmatpush1.msra.mxu0 %v921
    %941 = vmatprep.subr.mxu0 0.0
    %942 = vmatpush1.msra.mxu0 %v922
    %943 = vmatprep.subr.mxu0 0.0
    %944 = vmatpush1.msra.mxu0 %v923
    %945 = vmatprep.subr.mxu0 0.0
    %946 = vmatpush1.msra.mxu0 %v924
    %947 = vmatprep.subr.mxu0 0.0
    %948 = vmatpush1.msra.mxu0 %v925
    %949 = vmatprep.subr.mxu0 0.0
    %950 = vmatpush1.msra.mxu0 %v926
    %951 = vmatprep.subr.mxu0 0.0
    %952 = vmatpush1.msra.mxu0 %v927
    %953 = vmatprep.subr.mxu0 0.0
    %954 = vmatpush1.msra.mxu0 %v928
    %955 = vmatprep.subr.mxu0 0.0
    %956 = vmatpush1.msra.mxu0 %v929
    %957 = vmatprep.subr.mxu0 0.0
    %958 = vmatpush1.msra.mxu0 %v930
    %959 = vmatprep.subr.mxu0 0.0
    %960 = vmatpush1.msra.mxu0 %v931
    %961 = vmatprep.subr.mxu0 0.0
    %962 = vmatpush1.msra.mxu0 %v932
    %963 = vmatprep.subr.mxu0 0.0
    %964 = vmatpush1.msra.mxu0 %v933
    %965 = vmatprep.subr.mxu0 0.0
    %966 = vmatpush1.msra.mxu0 %v934
    %967 = vmatprep.subr.mxu0 0.0
    %968 = vmatpush1.msra.mxu0 0.0
    %969 = vmatprep.subr.mxu0 0.0
    %970 = vmatpush1.msra.mxu0 0.0
    %971 = vmatprep.subr.mxu0 0.0
    %972 = vmatpush1.msra.mxu0 0.0
    %973 = vmatprep.subr.mxu0 0.0
    %974 = vmatpush1.msra.mxu0 0.0
    %975 = vmatprep.subr.mxu0 0.0
    %976 = vmatpush1.msra.mxu0 0.0
    %977 = vmatprep.subr.mxu0 0.0
    %978 = vmatpush1.msra.mxu0 0.0
    %979 = vmatprep.subr.mxu0 0.0
    %980 = vmatpush1.msra.mxu0 0.0
    %981 = vmatprep.subr.mxu0 0.0
    %982 = vmatpush1.msra.mxu0 0.0
    %983 = vmatprep.subr.mxu0 0.0
    %984 = vmatpush1.msra.mxu0 0.0
    %985 = vmatprep.subr.mxu0 0.0
    %986 = vmatpush1.msra.mxu0 0.0
    %987 = vmatprep.subr.mxu0 0.0
    %988 = vmatpush1.msra.mxu0 0.0
    %989 = vmatprep.subr.mxu0 0.0
    %990 = vmatpush1.msra.mxu0 0.0
    %991 = vmatprep.subr.mxu0 0.0
    %992 = vmatpush1.msra.mxu0 0.0
    %993 = vmatprep.subr.mxu0 0.0
    %994 = vmatpush1.msra.mxu0 0.0
    %995 = vmatprep.subr.mxu0 0.0
    %996 = vmatpush1.msra.mxu0 0.0
    %997 = vmatprep.subr.mxu0 0.0
    %998 = vmatpush1.msra.mxu0 0.0
    %999 = vmatprep.mubr.f32.mxu0 0.0
    %1000 = vmatmul.mubr.f32.gmra.mrb[0].mxu0 %v911
    %v1001 = vpop.f32.mrb[0].mxu0
    %v1002 = vadd.f32 0.0, %v1001
    %v1003 = vpop.f32.mrb[0].mxu0
    %1004 = vmatprep.mubr.f32.mxu0 0.0
    %1005 = vmatmul.mubr.f32.gmra.mrb[0].mxu0 %v916
    %v1006 = vpop.f32.mrb[0].mxu0
    %v1007 = vadd.f32 0.0, %v1006
    %v1008 = vpop.f32.mrb[0].mxu0
    %1009 = vdwg.mxu0
    %vm1010 = vcmask 523264
    %1011 = vst.msk [vmem:[#allocation2] sm:$0xff] %vm1010, %v1002
    %1012 = vst.msk [vmem:[#allocation2 + $0x8] sm:$0xff] %vm1010, %v1007
    %vm1013 = vcmp.lt.s32.totalorder %v270, 0
    %v1014 = vsub.s32 0, %v270
    %v1015 = vsel %vm1013, %v1014, %v270
    %v1016 = vshrl.u32 %v1015, 4
    %v1017 = vand.u32 %v1015, 15
    %v1018 = vsub.s32 0, %v1017
    %v1019 = vsel %vm1013, %v1018, %v1017
    %vm1020 = vcmp.ne.s32.totalorder %v1019, 0
    %vm1021 = vcmp.lt.s32.totalorder %v1019, 0
    %vm1022 = vmand %vm1021, %vm1020
    %v1023 = vadd.s32 %v1019, 16
    %v1024 = vsel %vm1022, %v1023, %v1019
    %vm1025 = vcmp.ne.s32.totalorder %v1024, 0
    %vm1026 = vcmp.ne.s32.totalorder %v1024, 15
    %v1027 = vld [vmem:[#allocation2] sm:$0xff]
    %v1028 = vld [vmem:[#allocation2 + $0x8] sm:$0xff]
    %v1029 = vld [vmem:[%s1 + $0x110] sm:$0xff]
    %v1030 = vld [vmem:[%s1 + $0x118] sm:$0xff]
    %1032 = vset.pattern.permute.xlu0 0
    %1033 = vperm.xlu0 %1032, %v1029
    %v1034 = vpop.permute.xlu0 %1033
    %1037 = vset.pattern.permute.xlu0 0
    %1038 = vperm.xlu0 %1037, %v1030
    %v1039 = vpop.permute.xlu0 %1038
    %v1041 = vmul.f32 %v1027, %v1034
    %v1042 = vmul.f32 %v1028, %v1039
    %v1043 = vld [vmem:[%s1 + $0x120] sm:$0xff]
    %v1044 = vld [vmem:[%s1 + $0x128] sm:$0xff]
    %1046 = vset.pattern.permute.xlu0 0
    %1047 = vperm.xlu0 %1046, %v1043
    %v1048 = vpop.permute.xlu0 %1047
    %1051 = vset.pattern.permute.xlu0 0
    %1052 = vperm.xlu0 %1051, %v1044
    %v1053 = vpop.permute.xlu0 %1052
    %v1055 = vadd.f32 %v1041, %v1048
    %v1056 = vadd.f32 %v1042, %v1053
    %v1057 = vmax.f32 %v1055, 0.0
    %v1058 = vmax.f32 %v1056, 0.0
    %v1059 = vld [vmem:[#allocation3 + $0xc0] sm:$0xff]
    %v1060 = vld [vmem:[%s1 + $0x130] sm:$0xff]
    %1062 = vset.pattern.permute.xlu0 0
    %1063 = vperm.xlu0 %1062, %v1060
    %v1064 = vpop.permute.xlu0 %1063
    %v1067 = vsel %vm324, %v1059, 0
    %1069 = vmatprep.subr.mxu0 0.0
    %1070 = vmatpush1.msra.mxu0 %v1057
    %1071 = vmatprep.subr.mxu0 0.0
    %1072 = vmatpush1.msra.mxu0 %v1058
    %1073 = vmatprep.subr.mxu0 0.0
    %1074 = vmatpush1.msra.mxu0 0.0
    %1075 = vmatprep.subr.mxu0 0.0
    %1076 = vmatpush1.msra.mxu0 0.0
    %1077 = vmatprep.subr.mxu0 0.0
    %1078 = vmatpush1.msra.mxu0 0.0
    %1079 = vmatprep.subr.mxu0 0.0
    %1080 = vmatpush1.msra.mxu0 0.0
    %1081 = vmatprep.subr.mxu0 0.0
    %1082 = vmatpush1.msra.mxu0 0.0
    %1083 = vmatprep.subr.mxu0 0.0
    %1084 = vmatpush1.msra.mxu0 0.0
    %1085 = vmatprep.subr.mxu0 0.0
    %1086 = vmatpush1.msra.mxu0 0.0
    %1087 = vmatprep.subr.mxu0 0.0
    %1088 = vmatpush1.msra.mxu0 0.0
    %1089 = vmatprep.subr.mxu0 0.0
    %1090 = vmatpush1.msra.mxu0 0.0
    %1091 = vmatprep.subr.mxu0 0.0
    %1092 = vmatpush1.msra.mxu0 0.0
    %1093 = vmatprep.subr.mxu0 0.0
    %1094 = vmatpush1.msra.mxu0 0.0
    %1095 = vmatprep.subr.mxu0 0.0
    %1096 = vmatpush1.msra.mxu0 0.0
    %1097 = vmatprep.subr.mxu0 0.0
    %1098 = vmatpush1.msra.mxu0 0.0
    %1099 = vmatprep.subr.mxu0 0.0
    %1100 = vmatpush1.msra.mxu0 0.0
    %1101 = vmatprep.subr.mxu0 0.0
    %1102 = vmatpush1.msra.mxu0 0.0
    %1103 = vmatprep.subr.mxu0 0.0
    %1104 = vmatpush1.msra.mxu0 0.0
    %1105 = vmatprep.subr.mxu0 0.0
    %1106 = vmatpush1.msra.mxu0 0.0
    %1107 = vmatprep.subr.mxu0 0.0
    %1108 = vmatpush1.msra.mxu0 0.0
    %1109 = vmatprep.subr.mxu0 0.0
    %1110 = vmatpush1.msra.mxu0 0.0
    %1111 = vmatprep.subr.mxu0 0.0
    %1112 = vmatpush1.msra.mxu0 0.0
    %1113 = vmatprep.subr.mxu0 0.0
    %1114 = vmatpush1.msra.mxu0 0.0
    %1115 = vmatprep.subr.mxu0 0.0
    %1116 = vmatpush1.msra.mxu0 0.0
    %1117 = vmatprep.subr.mxu0 0.0
    %1118 = vmatpush1.msra.mxu0 0.0
    %1119 = vmatprep.subr.mxu0 0.0
    %1120 = vmatpush1.msra.mxu0 0.0
    %1121 = vmatprep.subr.mxu0 0.0
    %1122 = vmatpush1.msra.mxu0 0.0
    %1123 = vmatprep.subr.mxu0 0.0
    %1124 = vmatpush1.msra.mxu0 0.0
    %1125 = vmatprep.subr.mxu0 0.0
    %1126 = vmatpush1.msra.mxu0 0.0
    %1127 = vmatprep.subr.mxu0 0.0
    %1128 = vmatpush1.msra.mxu0 0.0
    %1129 = vmatprep.subr.mxu0 0.0
    %1130 = vmatpush1.msra.mxu0 0.0
    %1131 = vmatprep.subr.mxu0 0.0
    %1132 = vmatpush1.msra.mxu0 0.0
    %1133 = vmatprep.mubr.f32.mxu0 0.0
    %1134 = vmatmul.mubr.f32.gmra.mrb[0].mxu0 %v1067
    %v1135 = vpop.f32.mrb[0].mxu0
    %v1136 = vadd.f32 %v1064, %v1135
    %v1137 = vpop.f32.mrb[0].mxu0
    %1138 = vdwg.mxu0
    %v1139 = vld [vmem:[%s1 + $0x138] sm:$0xff]
    %1141 = vset.pattern.permute.xlu0 0
    %1142 = vperm.xlu0 %1141, %v1139
    %v1143 = vpop.permute.xlu0 %1142
    %v1145 = vmul.f32 %v1136, %v1143
    %v1146 = vld [vmem:[%s1 + $0x140] sm:$0xff]
    %1148 = vset.pattern.permute.xlu0 0
    %1149 = vperm.xlu0 %1148, %v1146
    %v1150 = vpop.permute.xlu0 %1149
    %v1152 = vadd.f32 %v1145, %v1150
    %v1153 = vmax.f32 %v1152, 0.0
    %v1154 = vld [vmem:[#allocation3 + $0xc8] sm:$0xff]
    %vm1155 = vcmask 1048064
    %1156 = vrot.lane.b32.xlu0 %v1153, 64
    %v1157 = vpop.permute.xlu0 %1156
    %v1158 = vsel %vm1155, %v1157, %v1153
    %1159 = vrot.lane.b32.xlu0 %v1158, 64
    %v1160 = vpop.permute.xlu0 %1159
    %v1161 = vsel %vm1155, %v1160, %v1153
    %v1162 = vsel %vm1025, 1, 0
    %vm1163 = vcmp.eq.s32.totalorder %v1162, 1
    %1165 = vrot.lane.b32.xlu0 %v1161, 65
    %v1166 = vpop.permute.xlu0 %1165
    %v1168 = vsel %vm1163, %v1166, 0.0
    %v1169 = vsel %vm1026, 1, 0
    %vm1170 = vcmp.eq.s32.totalorder %v1169, 1
    %1171 = vrot.lane.b32.xlu0 %v1161, 127
    %v1172 = vpop.permute.xlu0 %1171
    %v1174 = vsel %vm1170, %v1172, 0.0
    %v1175 = vld [vmem:[%s1 + $0x148] sm:$0xff]
    %1177 = vset.pattern.permute.xlu0 0
    %1178 = vperm.xlu0 %1177, %v1175
    %v1179 = vpop.permute.xlu0 %1178
    %v1182 = vsel %vm430, %v1154, 0
    %1184 = vmatprep.subr.mxu0 0.0
    %1185 = vmatpush1.msra.mxu0 %v1168
    %1186 = vmatprep.subr.mxu0 0.0
    %1187 = vmatpush1.msra.mxu0 %v1153
    %1188 = vmatprep.subr.mxu0 0.0
    %1189 = vmatpush1.msra.mxu0 %v1174
    %1190 = vmatprep.subr.mxu0 0.0
    %1191 = vmatpush1.msra.mxu0 0.0
    %1192 = vmatprep.subr.mxu0 0.0
    %1193 = vmatpush1.msra.mxu0 0.0
    %1194 = vmatprep.subr.mxu0 0.0
    %1195 = vmatpush1.msra.mxu0 0.0
    %1196 = vmatprep.subr.mxu0 0.0
    %1197 = vmatpush1.msra.mxu0 0.0
    %1198 = vmatprep.subr.mxu0 0.0
    %1199 = vmatpush1.msra.mxu0 0.0
    %1200 = vmatprep.subr.mxu0 0.0
    %1201 = vmatpush1.msra.mxu0 0.0
    %1202 = vmatprep.subr.mxu0 0.0
    %1203 = vmatpush1.msra.mxu0 0.0
    %1204 = vmatprep.subr.mxu0 0.0
    %1205 = vmatpush1.msra.mxu0 0.0
    %1206 = vmatprep.subr.mxu0 0.0
    %1207 = vmatpush1.msra.mxu0 0.0
    %1208 = vmatprep.subr.mxu0 0.0
    %1209 = vmatpush1.msra.mxu0 0.0
    %1210 = vmatprep.subr.mxu0 0.0
    %1211 = vmatpush1.msra.mxu0 0.0
    %1212 = vmatprep.subr.mxu0 0.0
    %1213 = vmatpush1.msra.mxu0 0.0
    %1214 = vmatprep.subr.mxu0 0.0
    %1215 = vmatpush1.msra.mxu0 0.0
    %1216 = vmatprep.subr.mxu0 0.0
    %1217 = vmatpush1.msra.mxu0 0.0
    %1218 = vmatprep.subr.mxu0 0.0
    %1219 = vmatpush1.msra.mxu0 0.0
    %1220 = vmatprep.subr.mxu0 0.0
    %1221 = vmatpush1.msra.mxu0 0.0
    %1222 = vmatprep.subr.mxu0 0.0
    %1223 = vmatpush1.msra.mxu0 0.0
    %1224 = vmatprep.subr.mxu0 0.0
    %1225 = vmatpush1.msra.mxu0 0.0
    %1226 = vmatprep.subr.mxu0 0.0
    %1227 = vmatpush1.msra.mxu0 0.0
    %1228 = vmatprep.subr.mxu0 0.0
    %1229 = vmatpush1.msra.mxu0 0.0
    %1230 = vmatprep.subr.mxu0 0.0
    %1231 = vmatpush1.msra.mxu0 0.0
    %1232 = vmatprep.subr.mxu0 0.0
    %1233 = vmatpush1.msra.mxu0 0.0
    %1234 = vmatprep.subr.mxu0 0.0
    %1235 = vmatpush1.msra.mxu0 0.0
    %1236 = vmatprep.subr.mxu0 0.0
    %1237 = vmatpush1.msra.mxu0 0.0
    %1238 = vmatprep.subr.mxu0 0.0
    %1239 = vmatpush1.msra.mxu0 0.0
    %1240 = vmatprep.subr.mxu0 0.0
    %1241 = vmatpush1.msra.mxu0 0.0
    %1242 = vmatprep.subr.mxu0 0.0
    %1243 = vmatpush1.msra.mxu0 0.0
    %1244 = vmatprep.subr.mxu0 0.0
    %1245 = vmatpush1.msra.mxu0 0.0
    %1246 = vmatprep.subr.mxu0 0.0
    %1247 = vmatpush1.msra.mxu0 0.0
    %1248 = vmatprep.mubr.f32.mxu0 0.0
    %1249 = vmatmul.mubr.f32.gmra.mrb[0].mxu0 %v1182
    %v1250 = vpop.f32.mrb[0].mxu0
    %v1251 = vadd.f32 %v1179, %v1250
    %v1252 = vpop.f32.mrb[0].mxu0
    %1253 = vdwg.mxu0
    %1254 = vst.msk [vmem:[#allocation2 + $0x10] sm:$0xff] %vm1010, %v1251
    %v1255 = vld [vmem:[#allocation2] sm:$0xff]
    %v1256 = vld [vmem:[#allocation2 + $0x8] sm:$0xff]
    %v1257 = vld [vmem:[#allocation2 + $0x10] sm:$0xff]
    %v1258 = vld [vmem:[%s1 + $0x150] sm:$0xff]
    %v1259 = vld [vmem:[%s1 + $0x158] sm:$0xff]
    %v1260 = vld [vmem:[%s1 + $0x160] sm:$0xff]
    %1262 = vset.pattern.permute.xlu0 0
    %1263 = vperm.xlu0 %1262, %v1258
    %v1264 = vpop.permute.xlu0 %1263
    %1267 = vset.pattern.permute.xlu0 0
    %1268 = vperm.xlu0 %1267, %v1259
    %v1269 = vpop.permute.xlu0 %1268
    %1272 = vset.pattern.permute.xlu0 0
    %1273 = vperm.xlu0 %1272, %v1260
    %v1274 = vpop.permute.xlu0 %1273
    %v1276 = vmul.f32 %v1255, %v1264
    %v1277 = vmul.f32 %v1256, %v1269
    %v1278 = vmul.f32 %v1257, %v1274
    %v1279 = vld [vmem:[%s1 + $0x168] sm:$0xff]
    %v1280 = vld [vmem:[%s1 + $0x170] sm:$0xff]
    %v1281 = vld [vmem:[%s1 + $0x178] sm:$0xff]
    %1283 = vset.pattern.permute.xlu0 0
    %1284 = vperm.xlu0 %1283, %v1279
    %v1285 = vpop.permute.xlu0 %1284
    %1288 = vset.pattern.permute.xlu0 0
    %1289 = vperm.xlu0 %1288, %v1280
    %v1290 = vpop.permute.xlu0 %1289
    %1293 = vset.pattern.permute.xlu0 0
    %1294 = vperm.xlu0 %1293, %v1281
    %v1295 = vpop.permute.xlu0 %1294
    %v1297 = vadd.f32 %v1276, %v1285
    %v1298 = vadd.f32 %v1277, %v1290
    %v1299 = vadd.f32 %v1278, %v1295
    %v1300 = vmax.f32 %v1297, 0.0
    %v1301 = vmax.f32 %v1298, 0.0
    %v1302 = vmax.f32 %v1299, 0.0
    %v1303 = vld [vmem:[#allocation3 + $0xd0] sm:$0xff]
    %v1304 = vld [vmem:[%s1 + $0x180] sm:$0xff]
    %1306 = vset.pattern.permute.xlu0 0
    %1307 = vperm.xlu0 %1306, %v1304
    %v1308 = vpop.permute.xlu0 %1307
    %v1311 = vsel %vm430, %v1303, 0
    %1313 = vmatprep.subr.mxu0 0.0
    %1314 = vmatpush1.msra.mxu0 %v1300
    %1315 = vmatprep.subr.mxu0 0.0
    %1316 = vmatpush1.msra.mxu0 %v1301
    %1317 = vmatprep.subr.mxu0 0.0
    %1318 = vmatpush1.msra.mxu0 %v1302
    %1319 = vmatprep.subr.mxu0 0.0
    %1320 = vmatpush1.msra.mxu0 0.0
    %1321 = vmatprep.subr.mxu0 0.0
    %1322 = vmatpush1.msra.mxu0 0.0
    %1323 = vmatprep.subr.mxu0 0.0
    %1324 = vmatpush1.msra.mxu0 0.0
    %1325 = vmatprep.subr.mxu0 0.0
    %1326 = vmatpush1.msra.mxu0 0.0
    %1327 = vmatprep.subr.mxu0 0.0
    %1328 = vmatpush1.msra.mxu0 0.0
    %1329 = vmatprep.subr.mxu0 0.0
    %1330 = vmatpush1.msra.mxu0 0.0
    %1331 = vmatprep.subr.mxu0 0.0
    %1332 = vmatpush1.msra.mxu0 0.0
    %1333 = vmatprep.subr.mxu0 0.0
    %1334 = vmatpush1.msra.mxu0 0.0
    %1335 = vmatprep.subr.mxu0 0.0
    %1336 = vmatpush1.msra.mxu0 0.0
    %1337 = vmatprep.subr.mxu0 0.0
    %1338 = vmatpush1.msra.mxu0 0.0
    %1339 = vmatprep.subr.mxu0 0.0
    %1340 = vmatpush1.msra.mxu0 0.0
    %1341 = vmatprep.subr.mxu0 0.0
    %1342 = vmatpush1.msra.mxu0 0.0
    %1343 = vmatprep.subr.mxu0 0.0
    %1344 = vmatpush1.msra.mxu0 0.0
    %1345 = vmatprep.subr.mxu0 0.0
    %1346 = vmatpush1.msra.mxu0 0.0
    %1347 = vmatprep.subr.mxu0 0.0
    %1348 = vmatpush1.msra.mxu0 0.0
    %1349 = vmatprep.subr.mxu0 0.0
    %1350 = vmatpush1.msra.mxu0 0.0
    %1351 = vmatprep.subr.mxu0 0.0
    %1352 = vmatpush1.msra.mxu0 0.0
    %1353 = vmatprep.subr.mxu0 0.0
    %1354 = vmatpush1.msra.mxu0 0.0
    %1355 = vmatprep.subr.mxu0 0.0
    %1356 = vmatpush1.msra.mxu0 0.0
    %1357 = vmatprep.subr.mxu0 0.0
    %1358 = vmatpush1.msra.mxu0 0.0
    %1359 = vmatprep.subr.mxu0 0.0
    %1360 = vmatpush1.msra.mxu0 0.0
    %1361 = vmatprep.subr.mxu0 0.0
    %1362 = vmatpush1.msra.mxu0 0.0
    %1363 = vmatprep.subr.mxu0 0.0
    %1364 = vmatpush1.msra.mxu0 0.0
    %1365 = vmatprep.subr.mxu0 0.0
    %1366 = vmatpush1.msra.mxu0 0.0
    %1367 = vmatprep.subr.mxu0 0.0
    %1368 = vmatpush1.msra.mxu0 0.0
    %1369 = vmatprep.subr.mxu0 0.0
    %1370 = vmatpush1.msra.mxu0 0.0
    %1371 = vmatprep.subr.mxu0 0.0
    %1372 = vmatpush1.msra.mxu0 0.0
    %1373 = vmatprep.subr.mxu0 0.0
    %1374 = vmatpush1.msra.mxu0 0.0
    %1375 = vmatprep.subr.mxu0 0.0
    %1376 = vmatpush1.msra.mxu0 0.0
    %1377 = vmatprep.mubr.f32.mxu0 0.0
    %1378 = vmatmul.mubr.f32.gmra.mrb[0].mxu0 %v1311
    %v1379 = vpop.f32.mrb[0].mxu0
    %v1380 = vadd.f32 %v1308, %v1379
    %v1381 = vpop.f32.mrb[0].mxu0
    %1382 = vdwg.mxu0
    %v1383 = vld [vmem:[%s1 + $0x188] sm:$0xff]
    %1385 = vset.pattern.permute.xlu0 0
    %1386 = vperm.xlu0 %1385, %v1383
    %v1387 = vpop.permute.xlu0 %1386
    %v1389 = vmul.f32 %v1380, %v1387
    %v1390 = vld [vmem:[%s1 + $0x190] sm:$0xff]
    %1392 = vset.pattern.permute.xlu0 0
    %1393 = vperm.xlu0 %1392, %v1390
    %v1394 = vpop.permute.xlu0 %1393
    %v1396 = vadd.f32 %v1389, %v1394
    %v1397 = vmax.f32 %v1396, 0.0
    %v1398 = vld [vmem:[#allocation3 + $0xd8] sm:$0xff]
    %1399 = vrot.lane.b32.xlu0 %v1397, 64
    %v1400 = vpop.permute.xlu0 %1399
    %v1401 = vsel %vm1155, %v1400, %v1397
    %1402 = vrot.lane.b32.xlu0 %v1401, 64
    %v1403 = vpop.permute.xlu0 %1402
    %v1404 = vsel %vm1155, %v1403, %v1397
    %1406 = vrot.lane.b32.xlu0 %v1404, 65
    %v1407 = vpop.permute.xlu0 %1406
    %v1409 = vsel %vm1163, %v1407, 0.0
    %1410 = vrot.lane.b32.xlu0 %v1404, 127
    %v1411 = vpop.permute.xlu0 %1410
    %v1413 = vsel %vm1170, %v1411, 0.0
    %v1414 = vld [vmem:[%s1 + $0x198] sm:$0xff]
    %1416 = vset.pattern.permute.xlu0 0
    %1417 = vperm.xlu0 %1416, %v1414
    %v1418 = vpop.permute.xlu0 %1417
    %v1421 = vsel %vm430, %v1398, 0
    %1423 = vmatprep.subr.mxu0 0.0
    %1424 = vmatpush1.msra.mxu0 %v1409
    %1425 = vmatprep.subr.mxu0 0.0
    %1426 = vmatpush1.msra.mxu0 %v1397
    %1427 = vmatprep.subr.mxu0 0.0
    %1428 = vmatpush1.msra.mxu0 %v1413
    %1429 = vmatprep.subr.mxu0 0.0
    %1430 = vmatpush1.msra.mxu0 0.0
    %1431 = vmatprep.subr.mxu0 0.0
    %1432 = vmatpush1.msra.mxu0 0.0
    %1433 = vmatprep.subr.mxu0 0.0
    %1434 = vmatpush1.msra.mxu0 0.0
    %1435 = vmatprep.subr.mxu0 0.0
    %1436 = vmatpush1.msra.mxu0 0.0
    %1437 = vmatprep.subr.mxu0 0.0
    %1438 = vmatpush1.msra.mxu0 0.0
    %1439 = vmatprep.subr.mxu0 0.0
    %1440 = vmatpush1.msra.mxu0 0.0
    %1441 = vmatprep.subr.mxu0 0.0
    %1442 = vmatpush1.msra.mxu0 0.0
    %1443 = vmatprep.subr.mxu0 0.0
    %1444 = vmatpush1.msra.mxu0 0.0
    %1445 = vmatprep.subr.mxu0 0.0
    %1446 = vmatpush1.msra.mxu0 0.0
    %1447 = vmatprep.subr.mxu0 0.0
    %1448 = vmatpush1.msra.mxu0 0.0
    %1449 = vmatprep.subr.mxu0 0.0
    %1450 = vmatpush1.msra.mxu0 0.0
    %1451 = vmatprep.subr.mxu0 0.0
    %1452 = vmatpush1.msra.mxu0 0.0
    %1453 = vmatprep.subr.mxu0 0.0
    %1454 = vmatpush1.msra.mxu0 0.0
    %1455 = vmatprep.subr.mxu0 0.0
    %1456 = vmatpush1.msra.mxu0 0.0
    %1457 = vmatprep.subr.mxu0 0.0
    %1458 = vmatpush1.msra.mxu0 0.0
    %1459 = vmatprep.subr.mxu0 0.0
    %1460 = vmatpush1.msra.mxu0 0.0
    %1461 = vmatprep.subr.mxu0 0.0
    %1462 = vmatpush1.msra.mxu0 0.0
    %1463 = vmatprep.subr.mxu0 0.0
    %1464 = vmatpush1.msra.mxu0 0.0
    %1465 = vmatprep.subr.mxu0 0.0
    %1466 = vmatpush1.msra.mxu0 0.0
    %1467 = vmatprep.subr.mxu0 0.0
    %1468 = vmatpush1.msra.mxu0 0.0
    %1469 = vmatprep.subr.mxu0 0.0
    %1470 = vmatpush1.msra.mxu0 0.0
    %1471 = vmatprep.subr.mxu0 0.0
    %1472 = vmatpush1.msra.mxu0 0.0
    %1473 = vmatprep.subr.mxu0 0.0
    %1474 = vmatpush1.msra.mxu0 0.0
    %1475 = vmatprep.subr.mxu0 0.0
    %1476 = vmatpush1.msra.mxu0 0.0
    %1477 = vmatprep.subr.mxu0 0.0
    %1478 = vmatpush1.msra.mxu0 0.0
    %1479 = vmatprep.subr.mxu0 0.0
    %1480 = vmatpush1.msra.mxu0 0.0
    %1481 = vmatprep.subr.mxu0 0.0
    %1482 = vmatpush1.msra.mxu0 0.0
    %1483 = vmatprep.subr.mxu0 0.0
    %1484 = vmatpush1.msra.mxu0 0.0
    %1485 = vmatprep.subr.mxu0 0.0
    %1486 = vmatpush1.msra.mxu0 0.0
    %1487 = vmatprep.mubr.f32.mxu0 0.0
    %1488 = vmatmul.mubr.f32.gmra.mrb[0].mxu0 %v1421
    %v1489 = vpop.f32.mrb[0].mxu0
    %v1490 = vadd.f32 %v1418, %v1489
    %v1491 = vpop.f32.mrb[0].mxu0
    %1492 = vdwg.mxu0
    %1493 = vst.msk [vmem:[#allocation2 + $0x18] sm:$0xff] %vm1010, %v1490
    %v1494 = vld [vmem:[#allocation2] sm:$0xff]
    %v1495 = vld [vmem:[#allocation2 + $0x8] sm:$0xff]
    %v1496 = vld [vmem:[#allocation2 + $0x10] sm:$0xff]
    %v1497 = vld [vmem:[#allocation2 + $0x18] sm:$0xff]
    %v1498 = vld [vmem:[%s1 + $0x1a0] sm:$0xff]
    %v1499 = vld [vmem:[%s1 + $0x1a8] sm:$0xff]
    %v1500 = vld [vmem:[%s1 + $0x1b0] sm:$0xff]
    %v1501 = vld [vmem:[%s1 + $0x1b8] sm:$0xff]
    %1503 = vset.pattern.permute.xlu0 0
    %1504 = vperm.xlu0 %1503, %v1498
    %v1505 = vpop.permute.xlu0 %1504
    %1508 = vset.pattern.permute.xlu0 0
    %1509 = vperm.xlu0 %1508, %v1499
    %v1510 = vpop.permute.xlu0 %1509
    %1513 = vset.pattern.permute.xlu0 0
    %1514 = vperm.xlu0 %1513, %v1500
    %v1515 = vpop.permute.xlu0 %1514
    %1518 = vset.pattern.permute.xlu0 0
    %1519 = vperm.xlu0 %1518, %v1501
    %v1520 = vpop.permute.xlu0 %1519
    %v1522 = vmul.f32 %v1494, %v1505
    %v1523 = vmul.f32 %v1495, %v1510
    %v1524 = vmul.f32 %v1496, %v1515
    %v1525 = vmul.f32 %v1497, %v1520
    %v1526 = vld [vmem:[%s1 + $0x1c0] sm:$0xff]
    %v1527 = vld [vmem:[%s1 + $0x1c8] sm:$0xff]
    %v1528 = vld [vmem:[%s1 + $0x1d0] sm:$0xff]
    %v1529 = vld [vmem:[%s1 + $0x1d8] sm:$0xff]
    %1531 = vset.pattern.permute.xlu0 0
    %1532 = vperm.xlu0 %1531, %v1526
    %v1533 = vpop.permute.xlu0 %1532
    %1536 = vset.pattern.permute.xlu0 0
    %1537 = vperm.xlu0 %1536, %v1527
    %v1538 = vpop.permute.xlu0 %1537
    %1541 = vset.pattern.permute.xlu0 0
    %1542 = vperm.xlu0 %1541, %v1528
    %v1543 = vpop.permute.xlu0 %1542
    %1546 = vset.pattern.permute.xlu0 0
    %1547 = vperm.xlu0 %1546, %v1529
    %v1548 = vpop.permute.xlu0 %1547
    %v1550 = vadd.f32 %v1522, %v1533
    %v1551 = vadd.f32 %v1523, %v1538
    %v1552 = vadd.f32 %v1524, %v1543
    %v1553 = vadd.f32 %v1525, %v1548
    %v1554 = vmax.f32 %v1550, 0.0
    %v1555 = vmax.f32 %v1551, 0.0
    %v1556 = vmax.f32 %v1552, 0.0
    %v1557 = vmax.f32 %v1553, 0.0
    %v1558 = vld [vmem:[#allocation3 + $0xe0] sm:$0xff]
    %v1559 = vld [vmem:[#allocation3 + $0xe8] sm:$0xff]
    %1560 = vrot.lane.b32.xlu0 %v1554, 64
    %v1561 = vpop.permute.xlu0 %1560
    %v1562 = vsel %vm1155, %v1561, %v1554
    %1563 = vrot.lane.b32.xlu0 %v1555, 64
    %v1564 = vpop.permute.xlu0 %1563
    %v1565 = vsel %vm1155, %v1564, %v1555
    %1566 = vrot.lane.b32.xlu0 %v1556, 64
    %v1567 = vpop.permute.xlu0 %1566
    %v1568 = vsel %vm1155, %v1567, %v1556
    %1569 = vrot.lane.b32.xlu0 %v1557, 64
    %v1570 = vpop.permute.xlu0 %1569
    %v1571 = vsel %vm1155, %v1570, %v1557
    %1572 = vrot.lane.b32.xlu0 %v1562, 64
    %v1573 = vpop.permute.xlu0 %1572
    %1574 = vrot.lane.b32.xlu0 %v1565, 64
    %v1575 = vpop.permute.xlu0 %1574
    %1576 = vrot.lane.b32.xlu0 %v1568, 64
    %v1577 = vpop.permute.xlu0 %1576
    %1578 = vrot.lane.b32.xlu0 %v1571, 64
    %v1579 = vpop.permute.xlu0 %1578
    %v1580 = vsel %vm1155, %v1573, %v1554
    %v1581 = vsel %vm1155, %v1575, %v1555
    %v1582 = vsel %vm1155, %v1577, %v1556
    %v1583 = vsel %vm1155, %v1579, %v1557
    %1588 = vrot.lane.b32.xlu0 %v1580, 65
    %v1589 = vpop.permute.xlu0 %1588
    %1590 = vrot.lane.b32.xlu0 %v1581, 65
    %v1591 = vpop.permute.xlu0 %1590
    %1592 = vrot.lane.b32.xlu0 %v1582, 65
    %v1593 = vpop.permute.xlu0 %1592
    %1594 = vrot.lane.b32.xlu0 %v1583, 65
    %v1595 = vpop.permute.xlu0 %1594
    %v1600 = vsel %vm1163, %v1589, 0.0
    %v1601 = vsel %vm1163, %v1591, 0.0
    %v1602 = vsel %vm1163, %v1593, 0.0
    %v1603 = vsel %vm1163, %v1595, 0.0
    %1604 = vrot.lane.b32.xlu0 %v1580, 127
    %v1605 = vpop.permute.xlu0 %1604
    %1606 = vrot.lane.b32.xlu0 %v1581, 127
    %v1607 = vpop.permute.xlu0 %1606
    %1608 = vrot.lane.b32.xlu0 %v1582, 127
    %v1609 = vpop.permute.xlu0 %1608
    %1610 = vrot.lane.b32.xlu0 %v1583, 127
    %v1611 = vpop.permute.xlu0 %1610
    %v1616 = vsel %vm1170, %v1605, 0.0
    %v1617 = vsel %vm1170, %v1607, 0.0
    %v1618 = vsel %vm1170, %v1609, 0.0
    %v1619 = vsel %vm1170, %v1611, 0.0
    %v1620 = vld [vmem:[%s1 + $0x1e0] sm:$0xff]
    %v1621 = vld [vmem:[%s1 + $0x1e8] sm:$0xff]
    %1623 = vset.pattern.permute.xlu0 0
    %1624 = vperm.xlu0 %1623, %v1620
    %v1625 = vpop.permute.xlu0 %1624
    %1628 = vset.pattern.permute.xlu0 0
    %1629 = vperm.xlu0 %1628, %v1621
    %v1630 = vpop.permute.xlu0 %1629
    %v1633 = vsel %vm837, %v1558, 0
    %v1636 = vsel %vm837, %v1559, 0
    %1638 = vmatprep.subr.mxu0 0.0
    %1639 = vmatpush1.msra.mxu0 %v1600
    %1640 = vmatprep.subr.mxu0 0.0
    %1641 = vmatpush1.msra.mxu0 %v1601
    %1642 = vmatprep.subr.mxu0 0.0
    %1643 = vmatpush1.msra.mxu0 %v1602
    %1644 = vmatprep.subr.mxu0 0.0
    %1645 = vmatpush1.msra.mxu0 %v1603
    %1646 = vmatprep.subr.mxu0 0.0
    %1647 = vmatpush1.msra.mxu0 %v1554
    %1648 = vmatprep.subr.mxu0 0.0
    %1649 = vmatpush1.msra.mxu0 %v1555
    %1650 = vmatprep.subr.mxu0 0.0
    %1651 = vmatpush1.msra.mxu0 %v1556
    %1652 = vmatprep.subr.mxu0 0.0
    %1653 = vmatpush1.msra.mxu0 %v1557
    %1654 = vmatprep.subr.mxu0 0.0
    %1655 = vmatpush1.msra.mxu0 %v1616
    %1656 = vmatprep.subr.mxu0 0.0
    %1657 = vmatpush1.msra.mxu0 %v1617
    %1658 = vmatprep.subr.mxu0 0.0
    %1659 = vmatpush1.msra.mxu0 %v1618
    %1660 = vmatprep.subr.mxu0 0.0
    %1661 = vmatpush1.msra.mxu0 %v1619
    %1662 = vmatprep.subr.mxu0 0.0
    %1663 = vmatpush1.msra.mxu0 0.0
    %1664 = vmatprep.subr.mxu0 0.0
    %1665 = vmatpush1.msra.mxu0 0.0
    %1666 = vmatprep.subr.mxu0 0.0
    %1667 = vmatpush1.msra.mxu0 0.0
    %1668 = vmatprep.subr.mxu0 0.0
    %1669 = vmatpush1.msra.mxu0 0.0
    %1670 = vmatprep.subr.mxu0 0.0
    %1671 = vmatpush1.msra.mxu0 0.0
    %1672 = vmatprep.subr.mxu0 0.0
    %1673 = vmatpush1.msra.mxu0 0.0
    %1674 = vmatprep.subr.mxu0 0.0
    %1675 = vmatpush1.msra.mxu0 0.0
    %1676 = vmatprep.subr.mxu0 0.0
    %1677 = vmatpush1.msra.mxu0 0.0
    %1678 = vmatprep.subr.mxu0 0.0
    %1679 = vmatpush1.msra.mxu0 0.0
    %1680 = vmatprep.subr.mxu0 0.0
    %1681 = vmatpush1.msra.mxu0 0.0
    %1682 = vmatprep.subr.mxu0 0.0
    %1683 = vmatpush1.msra.mxu0 0.0
    %1684 = vmatprep.subr.mxu0 0.0
    %1685 = vmatpush1.msra.mxu0 0.0
    %1686 = vmatprep.subr.mxu0 0.0
    %1687 = vmatpush1.msra.mxu0 0.0
    %1688 = vmatprep.subr.mxu0 0.0
    %1689 = vmatpush1.msra.mxu0 0.0
    %1690 = vmatprep.subr.mxu0 0.0
    %1691 = vmatpush1.msra.mxu0 0.0
    %1692 = vmatprep.subr.mxu0 0.0
    %1693 = vmatpush1.msra.mxu0 0.0
    %1694 = vmatprep.subr.mxu0 0.0
    %1695 = vmatpush1.msra.mxu0 0.0
    %1696 = vmatprep.subr.mxu0 0.0
    %1697 = vmatpush1.msra.mxu0 0.0
    %1698 = vmatprep.subr.mxu0 0.0
    %1699 = vmatpush1.msra.mxu0 0.0
    %1700 = vmatprep.subr.mxu0 0.0
    %1701 = vmatpush1.msra.mxu0 0.0
    %1702 = vmatprep.mubr.f32.mxu0 0.0
    %1703 = vmatmul.mubr.f32.gmra.mrb[0].mxu0 %v1633
    %v1704 = vpop.f32.mrb[0].mxu0
    %v1705 = vadd.f32 %v1625, %v1704
    %v1706 = vpop.f32.mrb[0].mxu0
    %1707 = vmatprep.mubr.f32.mxu0 0.0
    %1708 = vmatmul.mubr.f32.gmra.mrb[0].mxu0 %v1636
    %v1709 = vpop.f32.mrb[0].mxu0
    %v1710 = vadd.f32 %v1630, %v1709
    %v1711 = vpop.f32.mrb[0].mxu0
    %1712 = vdwg.mxu0
    %v1713 = vld [vmem:[#allocation3 + $0xf0] sm:$0xff]
    %v1714 = vld [vmem:[#allocation3 + $0xf8] sm:$0xff]
    %v1715 = vld [vmem:[#allocation3 + $0x100] sm:$0xff]
    %v1716 = vld [vmem:[#allocation3 + $0x108] sm:$0xff]
    %v1717 = vld [vmem:[#allocation3 + $0x110] sm:$0xff]
    %v1718 = vld [vmem:[#allocation3 + $0x118] sm:$0xff]
    %v1719 = vld [vmem:[#allocation3 + $0x120] sm:$0xff]
    %v1720 = vld [vmem:[#allocation3 + $0x128] sm:$0xff]
    %v1722 = vsel %vm1010, %v1705, 0
    %v1725 = vsel %vm1010, %v1710, 0
    %1727 = vmatprep.subr.mxu0 0.0
    %1728 = vmatpush1.msra.mxu0 %v1713
    %1729 = vmatprep.subr.mxu0 0.0
    %1730 = vmatpush1.msra.mxu0 %v1714
    %1731 = vmatprep.subr.mxu0 0.0
    %1732 = vmatpush1.msra.mxu0 %v1715
    %1733 = vmatprep.subr.mxu0 0.0
    %1734 = vmatpush1.msra.mxu0 %v1716
    %1735 = vmatprep.subr.mxu0 0.0
    %1736 = vmatpush1.msra.mxu0 %v1717
    %1737 = vmatprep.subr.mxu0 0.0
    %1738 = vmatpush1.msra.mxu0 %v1718
    %1739 = vmatprep.subr.mxu0 0.0
    %1740 = vmatpush1.msra.mxu0 %v1719
    %1741 = vmatprep.subr.mxu0 0.0
    %1742 = vmatpush1.msra.mxu0 %v1720
    %1743 = vmatprep.subr.mxu0 0.0
    %1744 = vmatpush1.msra.mxu0 0.0
    %1745 = vmatprep.subr.mxu0 0.0
    %1746 = vmatpush1.msra.mxu0 0.0
    %1747 = vmatprep.subr.mxu0 0.0
    %1748 = vmatpush1.msra.mxu0 0.0
    %1749 = vmatprep.subr.mxu0 0.0
    %1750 = vmatpush1.msra.mxu0 0.0
    %1751 = vmatprep.subr.mxu0 0.0
    %1752 = vmatpush1.msra.mxu0 0.0
    %1753 = vmatprep.subr.mxu0 0.0
    %1754 = vmatpush1.msra.mxu0 0.0
    %1755 = vmatprep.subr.mxu0 0.0
    %1756 = vmatpush1.msra.mxu0 0.0
    %1757 = vmatprep.subr.mxu0 0.0
    %1758 = vmatpush1.msra.mxu0 0.0
    %1759 = vmatprep.subr.mxu0 0.0
    %1760 = vmatpush1.msra.mxu0 0.0
    %1761 = vmatprep.subr.mxu0 0.0
    %1762 = vmatpush1.msra.mxu0 0.0
    %1763 = vmatprep.subr.mxu0 0.0
    %1764 = vmatpush1.msra.mxu0 0.0
    %1765 = vmatprep.subr.mxu0 0.0
    %1766 = vmatpush1.msra.mxu0 0.0
    %1767 = vmatprep.subr.mxu0 0.0
    %1768 = vmatpush1.msra.mxu0 0.0
    %1769 = vmatprep.subr.mxu0 0.0
    %1770 = vmatpush1.msra.mxu0 0.0
    %1771 = vmatprep.subr.mxu0 0.0
    %1772 = vmatpush1.msra.mxu0 0.0
    %1773 = vmatprep.subr.mxu0 0.0
    %1774 = vmatpush1.msra.mxu0 0.0
    %1775 = vmatprep.subr.mxu0 0.0
    %1776 = vmatpush1.msra.mxu0 0.0
    %1777 = vmatprep.subr.mxu0 0.0
    %1778 = vmatpush1.msra.mxu0 0.0
    %1779 = vmatprep.subr.mxu0 0.0
    %1780 = vmatpush1.msra.mxu0 0.0
    %1781 = vmatprep.subr.mxu0 0.0
    %1782 = vmatpush1.msra.mxu0 0.0
    %1783 = vmatprep.subr.mxu0 0.0
    %1784 = vmatpush1.msra.mxu0 0.0
    %1785 = vmatprep.subr.mxu0 0.0
    %1786 = vmatpush1.msra.mxu0 0.0
    %1787 = vmatprep.subr.mxu0 0.0
    %1788 = vmatpush1.msra.mxu0 0.0
    %1789 = vmatprep.subr.mxu0 0.0
    %1790 = vmatpush1.msra.mxu0 0.0
    %1791 = vmatprep.mubr.f32.mxu0 0.0
    %1792 = vmatmul.mubr.f32.gmra.mrb[0].mxu0 %v1722
    %v1793 = vpop.f32.mrb[0].mxu0
    %v1794 = vadd.f32 0.0, %v1793
    %v1795 = vpop.f32.mrb[0].mxu0
    %1796 = vmatprep.mubr.f32.mxu0 0.0
    %1797 = vmatmul.mubr.f32.gmra.mrb[0].mxu0 %v1725
    %v1798 = vpop.f32.mrb[0].mxu0
    %v1799 = vadd.f32 0.0, %v1798
    %v1800 = vpop.f32.mrb[0].mxu0
    %1801 = vdwg.mxu0
    %vm1802 = vcmask 261120
    %1803 = vst.msk [vmem:[#allocation2] sm:$0xff] %vm1802, %v1794
    %1804 = vst.msk [vmem:[#allocation2 + $0x8] sm:$0xff] %vm1802, %v1799
    %vm1805 = vcmp.lt.s32.totalorder %v270, 0
    %v1806 = vsub.s32 0, %v270
    %v1807 = vsel %vm1805, %v1806, %v270
    %v1808 = vshrl.u32 %v1807, 3
    %v1809 = vand.u32 %v1807, 7
    %v1810 = vsub.s32 0, %v1809
    %v1811 = vsel %vm1805, %v1810, %v1809
    %vm1812 = vcmp.ne.s32.totalorder %v1811, 0
    %vm1813 = vcmp.lt.s32.totalorder %v1811, 0
    %vm1814 = vmand %vm1813, %vm1812
    %v1815 = vadd.s32 %v1811, 8
    %v1816 = vsel %vm1814, %v1815, %v1811
    %vm1817 = vcmp.ne.s32.totalorder %v1816, 0
    %vm1818 = vcmp.ne.s32.totalorder %v1816, 7
    %v1819 = vld [vmem:[#allocation2] sm:$0xff]
    %v1820 = vld [vmem:[#allocation2 + $0x8] sm:$0xff]
    %v1821 = vld [vmem:[%s1 + $0x1f0] sm:$0xff]
    %v1822 = vld [vmem:[%s1 + $0x1f8] sm:$0xff]
    %1824 = vset.pattern.permute.xlu0 0
    %1825 = vperm.xlu0 %1824, %v1821
    %v1826 = vpop.permute.xlu0 %1825
    %1829 = vset.pattern.permute.xlu0 0
    %1830 = vperm.xlu0 %1829, %v1822
    %v1831 = vpop.permute.xlu0 %1830
    %v1833 = vmul.f32 %v1819, %v1826
    %v1834 = vmul.f32 %v1820, %v1831
    %v1835 = vld [vmem:[%s1 + $0x200] sm:$0xff]
    %v1836 = vld [vmem:[%s1 + $0x208] sm:$0xff]
    %1838 = vset.pattern.permute.xlu0 0
    %1839 = vperm.xlu0 %1838, %v1835
    %v1840 = vpop.permute.xlu0 %1839
    %1843 = vset.pattern.permute.xlu0 0
    %1844 = vperm.xlu0 %1843, %v1836
    %v1845 = vpop.permute.xlu0 %1844
    %v1847 = vadd.f32 %v1833, %v1840
    %v1848 = vadd.f32 %v1834, %v1845
    %v1849 = vmax.f32 %v1847, 0.0
    %v1850 = vmax.f32 %v1848, 0.0
    %v1851 = vld [vmem:[#allocation3 + $0x130] sm:$0xff]
    %v1852 = vld [vmem:[%s1 + $0x210] sm:$0xff]
    %1854 = vset.pattern.permute.xlu0 0
    %1855 = vperm.xlu0 %1854, %v1852
    %v1856 = vpop.permute.xlu0 %1855
    %v1859 = vsel %vm324, %v1851, 0
    %1861 = vmatprep.subr.mxu0 0.0
    %1862 = vmatpush1.msra.mxu0 %v1849
    %1863 = vmatprep.subr.mxu0 0.0
    %1864 = vmatpush1.msra.mxu0 %v1850
    %1865 = vmatprep.subr.mxu0 0.0
    %1866 = vmatpush1.msra.mxu0 0.0
    %1867 = vmatprep.subr.mxu0 0.0
    %1868 = vmatpush1.msra.mxu0 0.0
    %1869 = vmatprep.subr.mxu0 0.0
    %1870 = vmatpush1.msra.mxu0 0.0
    %1871 = vmatprep.subr.mxu0 0.0
    %1872 = vmatpush1.msra.mxu0 0.0
    %1873 = vmatprep.subr.mxu0 0.0
    %1874 = vmatpush1.msra.mxu0 0.0
    %1875 = vmatprep.subr.mxu0 0.0
    %1876 = vmatpush1.msra.mxu0 0.0
    %1877 = vmatprep.subr.mxu0 0.0
    %1878 = vmatpush1.msra.mxu0 0.0
    %1879 = vmatprep.subr.mxu0 0.0
    %1880 = vmatpush1.msra.mxu0 0.0
    %1881 = vmatprep.subr.mxu0 0.0
    %1882 = vmatpush1.msra.mxu0 0.0
    %1883 = vmatprep.subr.mxu0 0.0
    %1884 = vmatpush1.msra.mxu0 0.0
    %1885 = vmatprep.subr.mxu0 0.0
    %1886 = vmatpush1.msra.mxu0 0.0
    %1887 = vmatprep.subr.mxu0 0.0
    %1888 = vmatpush1.msra.mxu0 0.0
    %1889 = vmatprep.subr.mxu0 0.0
    %1890 = vmatpush1.msra.mxu0 0.0
    %1891 = vmatprep.subr.mxu0 0.0
    %1892 = vmatpush1.msra.mxu0 0.0
    %1893 = vmatprep.subr.mxu0 0.0
    %1894 = vmatpush1.msra.mxu0 0.0
    %1895 = vmatprep.subr.mxu0 0.0
    %1896 = vmatpush1.msra.mxu0 0.0
    %1897 = vmatprep.subr.mxu0 0.0
    %1898 = vmatpush1.msra.mxu0 0.0
    %1899 = vmatprep.subr.mxu0 0.0
    %1900 = vmatpush1.msra.mxu0 0.0
    %1901 = vmatprep.subr.mxu0 0.0
    %1902 = vmatpush1.msra.mxu0 0.0
    %1903 = vmatprep.subr.mxu0 0.0
    %1904 = vmatpush1.msra.mxu0 0.0
    %1905 = vmatprep.subr.mxu0 0.0
    %1906 = vmatpush1.msra.mxu0 0.0
    %1907 = vmatprep.subr.mxu0 0.0
    %1908 = vmatpush1.msra.mxu0 0.0
    %1909 = vmatprep.subr.mxu0 0.0
    %1910 = vmatpush1.msra.mxu0 0.0
    %1911 = vmatprep.subr.mxu0 0.0
    %1912 = vmatpush1.msra.mxu0 0.0
    %1913 = vmatprep.subr.mxu0 0.0
    %1914 = vmatpush1.msra.mxu0 0.0
    %1915 = vmatprep.subr.mxu0 0.0
    %1916 = vmatpush1.msra.mxu0 0.0
    %1917 = vmatprep.subr.mxu0 0.0
    %1918 = vmatpush1.msra.mxu0 0.0
    %1919 = vmatprep.subr.mxu0 0.0
    %1920 = vmatpush1.msra.mxu0 0.0
    %1921 = vmatprep.subr.mxu0 0.0
    %1922 = vmatpush1.msra.mxu0 0.0
    %1923 = vmatprep.subr.mxu0 0.0
    %1924 = vmatpush1.msra.mxu0 0.0
    %1925 = vmatprep.mubr.f32.mxu0 0.0
    %1926 = vmatmul.mubr.f32.gmra.mrb[0].mxu0 %v1859
    %v1927 = vpop.f32.mrb[0].mxu0
    %v1928 = vadd.f32 %v1856, %v1927
    %v1929 = vpop.f32.mrb[0].mxu0
    %1930 = vdwg.mxu0
    %v1931 = vld [vmem:[%s1 + $0x218] sm:$0xff]
    %1933 = vset.pattern.permute.xlu0 0
    %1934 = vperm.xlu0 %1933, %v1931
    %v1935 = vpop.permute.xlu0 %1934
    %v1937 = vmul.f32 %v1928, %v1935
    %v1938 = vld [vmem:[%s1 + $0x220] sm:$0xff]
    %1940 = vset.pattern.permute.xlu0 0
    %1941 = vperm.xlu0 %1940, %v1938
    %v1942 = vpop.permute.xlu0 %1941
    %v1944 = vadd.f32 %v1937, %v1942
    %v1945 = vmax.f32 %v1944, 0.0
    %v1946 = vld [vmem:[#allocation3 + $0x138] sm:$0xff]
    %vm1947 = vcmask 1047808
    %1948 = vrot.lane.b32.xlu0 %v1945, 32
    %v1949 = vpop.permute.xlu0 %1948
    %v1950 = vsel %vm1947, %v1949, %v1945
    %1951 = vrot.lane.b32.xlu0 %v1950, 32
    %v1952 = vpop.permute.xlu0 %1951
    %v1953 = vsel %vm1947, %v1952, %v1945
    %v1954 = vsel %vm1817, 1, 0
    %vm1955 = vcmp.eq.s32.totalorder %v1954, 1
    %1957 = vrot.lane.b32.xlu0 %v1953, 97
    %v1958 = vpop.permute.xlu0 %1957
    %v1960 = vsel %vm1955, %v1958, 0.0
    %v1961 = vsel %vm1818, 1, 0
    %vm1962 = vcmp.eq.s32.totalorder %v1961, 1
    %1963 = vrot.lane.b32.xlu0 %v1953, 127
    %v1964 = vpop.permute.xlu0 %1963
    %v1966 = vsel %vm1962, %v1964, 0.0
    %v1967 = vld [vmem:[%s1 + $0x228] sm:$0xff]
    %1969 = vset.pattern.permute.xlu0 0
    %1970 = vperm.xlu0 %1969, %v1967
    %v1971 = vpop.permute.xlu0 %1970
    %v1974 = vsel %vm430, %v1946, 0
    %1976 = vmatprep.subr.mxu0 0.0
    %1977 = vmatpush1.msra.mxu0 %v1960
    %1978 = vmatprep.subr.mxu0 0.0
    %1979 = vmatpush1.msra.mxu0 %v1945
    %1980 = vmatprep.subr.mxu0 0.0
    %1981 = vmatpush1.msra.mxu0 %v1966
    %1982 = vmatprep.subr.mxu0 0.0
    %1983 = vmatpush1.msra.mxu0 0.0
    %1984 = vmatprep.subr.mxu0 0.0
    %1985 = vmatpush1.msra.mxu0 0.0
    %1986 = vmatprep.subr.mxu0 0.0
    %1987 = vmatpush1.msra.mxu0 0.0
    %1988 = vmatprep.subr.mxu0 0.0
    %1989 = vmatpush1.msra.mxu0 0.0
    %1990 = vmatprep.subr.mxu0 0.0
    %1991 = vmatpush1.msra.mxu0 0.0
    %1992 = vmatprep.subr.mxu0 0.0
    %1993 = vmatpush1.msra.mxu0 0.0
    %1994 = vmatprep.subr.mxu0 0.0
    %1995 = vmatpush1.msra.mxu0 0.0
    %1996 = vmatprep.subr.mxu0 0.0
    %1997 = vmatpush1.msra.mxu0 0.0
    %1998 = vmatprep.subr.mxu0 0.0
    %1999 = vmatpush1.msra.mxu0 0.0
    %2000 = vmatprep.subr.mxu0 0.0
    %2001 = vmatpush1.msra.mxu0 0.0
    %2002 = vmatprep.subr.mxu0 0.0
    %2003 = vmatpush1.msra.mxu0 0.0
    %2004 = vmatprep.subr.mxu0 0.0
    %2005 = vmatpush1.msra.mxu0 0.0
    %2006 = vmatprep.subr.mxu0 0.0
    %2007 = vmatpush1.msra.mxu0 0.0
    %2008 = vmatprep.subr.mxu0 0.0
    %2009 = vmatpush1.msra.mxu0 0.0
    %2010 = vmatprep.subr.mxu0 0.0
    %2011 = vmatpush1.msra.mxu0 0.0
    %2012 = vmatprep.subr.mxu0 0.0
    %2013 = vmatpush1.msra.mxu0 0.0
    %2014 = vmatprep.subr.mxu0 0.0
    %2015 = vmatpush1.msra.mxu0 0.0
    %2016 = vmatprep.subr.mxu0 0.0
    %2017 = vmatpush1.msra.mxu0 0.0
    %2018 = vmatprep.subr.mxu0 0.0
    %2019 = vmatpush1.msra.mxu0 0.0
    %2020 = vmatprep.subr.mxu0 0.0
    %2021 = vmatpush1.msra.mxu0 0.0
    %2022 = vmatprep.subr.mxu0 0.0
    %2023 = vmatpush1.msra.mxu0 0.0
    %2024 = vmatprep.subr.mxu0 0.0
    %2025 = vmatpush1.msra.mxu0 0.0
    %2026 = vmatprep.subr.mxu0 0.0
    %2027 = vmatpush1.msra.mxu0 0.0
    %2028 = vmatprep.subr.mxu0 0.0
    %2029 = vmatpush1.msra.mxu0 0.0
    %2030 = vmatprep.subr.mxu0 0.0
    %2031 = vmatpush1.msra.mxu0 0.0
    %2032 = vmatprep.subr.mxu0 0.0
    %2033 = vmatpush1.msra.mxu0 0.0
    %2034 = vmatprep.subr.mxu0 0.0
    %2035 = vmatpush1.msra.mxu0 0.0
    %2036 = vmatprep.subr.mxu0 0.0
    %2037 = vmatpush1.msra.mxu0 0.0
    %2038 = vmatprep.subr.mxu0 0.0
    %2039 = vmatpush1.msra.mxu0 0.0
    %2040 = vmatprep.mubr.f32.mxu0 0.0
    %2041 = vmatmul.mubr.f32.gmra.mrb[0].mxu0 %v1974
    %v2042 = vpop.f32.mrb[0].mxu0
    %v2043 = vadd.f32 %v1971, %v2042
    %v2044 = vpop.f32.mrb[0].mxu0
    %2045 = vdwg.mxu0
    %2046 = vst.msk [vmem:[#allocation2 + $0x10] sm:$0xff] %vm1802, %v2043
    %v2047 = vld [vmem:[#allocation2] sm:$0xff]
    %v2048 = vld [vmem:[#allocation2 + $0x8] sm:$0xff]
    %v2049 = vld [vmem:[#allocation2 + $0x10] sm:$0xff]
    %v2050 = vld [vmem:[%s1 + $0x230] sm:$0xff]
    %v2051 = vld [vmem:[%s1 + $0x238] sm:$0xff]
    %v2052 = vld [vmem:[%s1 + $0x240] sm:$0xff]
    %2054 = vset.pattern.permute.xlu0 0
    %2055 = vperm.xlu0 %2054, %v2050
    %v2056 = vpop.permute.xlu0 %2055
    %2059 = vset.pattern.permute.xlu0 0
    %2060 = vperm.xlu0 %2059, %v2051
    %v2061 = vpop.permute.xlu0 %2060
    %2064 = vset.pattern.permute.xlu0 0
    %2065 = vperm.xlu0 %2064, %v2052
    %v2066 = vpop.permute.xlu0 %2065
    %v2068 = vmul.f32 %v2047, %v2056
    %v2069 = vmul.f32 %v2048, %v2061
    %v2070 = vmul.f32 %v2049, %v2066
    %v2071 = vld [vmem:[%s1 + $0x248] sm:$0xff]
    %v2072 = vld [vmem:[%s1 + $0x250] sm:$0xff]
    %v2073 = vld [vmem:[%s1 + $0x258] sm:$0xff]
    %2075 = vset.pattern.permute.xlu0 0
    %2076 = vperm.xlu0 %2075, %v2071
    %v2077 = vpop.permute.xlu0 %2076
    %2080 = vset.pattern.permute.xlu0 0
    %2081 = vperm.xlu0 %2080, %v2072
    %v2082 = vpop.permute.xlu0 %2081
    %2085 = vset.pattern.permute.xlu0 0
    %2086 = vperm.xlu0 %2085, %v2073
    %v2087 = vpop.permute.xlu0 %2086
    %v2089 = vadd.f32 %v2068, %v2077
    %v2090 = vadd.f32 %v2069, %v2082
    %v2091 = vadd.f32 %v2070, %v2087
    %v2092 = vmax.f32 %v2089, 0.0
    %v2093 = vmax.f32 %v2090, 0.0
    %v2094 = vmax.f32 %v2091, 0.0
    %v2095 = vld [vmem:[#allocation3 + $0x140] sm:$0xff]
    %v2096 = vld [vmem:[%s1 + $0x260] sm:$0xff]
    %2098 = vset.pattern.permute.xlu0 0
    %2099 = vperm.xlu0 %2098, %v2096
    %v2100 = vpop.permute.xlu0 %2099
    %v2103 = vsel %vm430, %v2095, 0
    %2105 = vmatprep.subr.mxu0 0.0
    %2106 = vmatpush1.msra.mxu0 %v2092
    %2107 = vmatprep.subr.mxu0 0.0
    %2108 = vmatpush1.msra.mxu0 %v2093
    %2109 = vmatprep.subr.mxu0 0.0
    %2110 = vmatpush1.msra.mxu0 %v2094
    %2111 = vmatprep.subr.mxu0 0.0
    %2112 = vmatpush1.msra.mxu0 0.0
    %2113 = vmatprep.subr.mxu0 0.0
    %2114 = vmatpush1.msra.mxu0 0.0
    %2115 = vmatprep.subr.mxu0 0.0
    %2116 = vmatpush1.msra.mxu0 0.0
    %2117 = vmatprep.subr.mxu0 0.0
    %2118 = vmatpush1.msra.mxu0 0.0
    %2119 = vmatprep.subr.mxu0 0.0
    %2120 = vmatpush1.msra.mxu0 0.0
    %2121 = vmatprep.subr.mxu0 0.0
    %2122 = vmatpush1.msra.mxu0 0.0
    %2123 = vmatprep.subr.mxu0 0.0
    %2124 = vmatpush1.msra.mxu0 0.0
    %2125 = vmatprep.subr.mxu0 0.0
    %2126 = vmatpush1.msra.mxu0 0.0
    %2127 = vmatprep.subr.mxu0 0.0
    %2128 = vmatpush1.msra.mxu0 0.0
    %2129 = vmatprep.subr.mxu0 0.0
    %2130 = vmatpush1.msra.mxu0 0.0
    %2131 = vmatprep.subr.mxu0 0.0
    %2132 = vmatpush1.msra.mxu0 0.0
    %2133 = vmatprep.subr.mxu0 0.0
    %2134 = vmatpush1.msra.mxu0 0.0
    %2135 = vmatprep.subr.mxu0 0.0
    %2136 = vmatpush1.msra.mxu0 0.0
    %2137 = vmatprep.subr.mxu0 0.0
    %2138 = vmatpush1.msra.mxu0 0.0
    %2139 = vmatprep.subr.mxu0 0.0
    %2140 = vmatpush1.msra.mxu0 0.0
    %2141 = vmatprep.subr.mxu0 0.0
    %2142 = vmatpush1.msra.mxu0 0.0
    %2143 = vmatprep.subr.mxu0 0.0
    %2144 = vmatpush1.msra.mxu0 0.0
    %2145 = vmatprep.subr.mxu0 0.0
    %2146 = vmatpush1.msra.mxu0 0.0
    %2147 = vmatprep.subr.mxu0 0.0
    %2148 = vmatpush1.msra.mxu0 0.0
    %2149 = vmatprep.subr.mxu0 0.0
    %2150 = vmatpush1.msra.mxu0 0.0
    %2151 = vmatprep.subr.mxu0 0.0
    %2152 = vmatpush1.msra.mxu0 0.0
    %2153 = vmatprep.subr.mxu0 0.0
    %2154 = vmatpush1.msra.mxu0 0.0
    %2155 = vmatprep.subr.mxu0 0.0
    %2156 = vmatpush1.msra.mxu0 0.0
    %2157 = vmatprep.subr.mxu0 0.0
    %2158 = vmatpush1.msra.mxu0 0.0
    %2159 = vmatprep.subr.mxu0 0.0
    %2160 = vmatpush1.msra.mxu0 0.0
    %2161 = vmatprep.subr.mxu0 0.0
    %2162 = vmatpush1.msra.mxu0 0.0
    %2163 = vmatprep.subr.mxu0 0.0
    %2164 = vmatpush1.msra.mxu0 0.0
    %2165 = vmatprep.subr.mxu0 0.0
    %2166 = vmatpush1.msra.mxu0 0.0
    %2167 = vmatprep.subr.mxu0 0.0
    %2168 = vmatpush1.msra.mxu0 0.0
    %2169 = vmatprep.mubr.f32.mxu0 0.0
    %2170 = vmatmul.mubr.f32.gmra.mrb[0].mxu0 %v2103
    %v2171 = vpop.f32.mrb[0].mxu0
    %v2172 = vadd.f32 %v2100, %v2171
    %v2173 = vpop.f32.mrb[0].mxu0
    %2174 = vdwg.mxu0
    %v2175 = vld [vmem:[%s1 + $0x268] sm:$0xff]
    %2177 = vset.pattern.permute.xlu0 0
    %2178 = vperm.xlu0 %2177, %v2175
    %v2179 = vpop.permute.xlu0 %2178
    %v2181 = vmul.f32 %v2172, %v2179
    %v2182 = vld [vmem:[%s1 + $0x270] sm:$0xff]
    %2184 = vset.pattern.permute.xlu0 0
    %2185 = vperm.xlu0 %2184, %v2182
    %v2186 = vpop.permute.xlu0 %2185
    %v2188 = vadd.f32 %v2181, %v2186
    %v2189 = vmax.f32 %v2188, 0.0
    %v2190 = vld [vmem:[#allocation3 + $0x148] sm:$0xff]
    %2191 = vrot.lane.b32.xlu0 %v2189, 32
    %v2192 = vpop.permute.xlu0 %2191
    %v2193 = vsel %vm1947, %v2192, %v2189
    %2194 = vrot.lane.b32.xlu0 %v2193, 32
    %v2195 = vpop.permute.xlu0 %2194
    %v2196 = vsel %vm1947, %v2195, %v2189
    %2198 = vrot.lane.b32.xlu0 %v2196, 97
    %v2199 = vpop.permute.xlu0 %2198
    %v2201 = vsel %vm1955, %v2199, 0.0
    %2202 = vrot.lane.b32.xlu0 %v2196, 127
    %v2203 = vpop.permute.xlu0 %2202
    %v2205 = vsel %vm1962, %v2203, 0.0
    %v2206 = vld [vmem:[%s1 + $0x278] sm:$0xff]
    %2208 = vset.pattern.permute.xlu0 0
    %2209 = vperm.xlu0 %2208, %v2206
    %v2210 = vpop.permute.xlu0 %2209
    %v2213 = vsel %vm430, %v2190, 0
    %2215 = vmatprep.subr.mxu0 0.0
    %2216 = vmatpush1.msra.mxu0 %v2201
    %2217 = vmatprep.subr.mxu0 0.0
    %2218 = vmatpush1.msra.mxu0 %v2189
    %2219 = vmatprep.subr.mxu0 0.0
    %2220 = vmatpush1.msra.mxu0 %v2205
    %2221 = vmatprep.subr.mxu0 0.0
    %2222 = vmatpush1.msra.mxu0 0.0
    %2223 = vmatprep.subr.mxu0 0.0
    %2224 = vmatpush1.msra.mxu0 0.0
    %2225 = vmatprep.subr.mxu0 0.0
    %2226 = vmatpush1.msra.mxu0 0.0
    %2227 = vmatprep.subr.mxu0 0.0
    %2228 = vmatpush1.msra.mxu0 0.0
    %2229 = vmatprep.subr.mxu0 0.0
    %2230 = vmatpush1.msra.mxu0 0.0
    %2231 = vmatprep.subr.mxu0 0.0
    %2232 = vmatpush1.msra.mxu0 0.0
    %2233 = vmatprep.subr.mxu0 0.0
    %2234 = vmatpush1.msra.mxu0 0.0
    %2235 = vmatprep.subr.mxu0 0.0
    %2236 = vmatpush1.msra.mxu0 0.0
    %2237 = vmatprep.subr.mxu0 0.0
    %2238 = vmatpush1.msra.mxu0 0.0
    %2239 = vmatprep.subr.mxu0 0.0
    %2240 = vmatpush1.msra.mxu0 0.0
    %2241 = vmatprep.subr.mxu0 0.0
    %2242 = vmatpush1.msra.mxu0 0.0
    %2243 = vmatprep.subr.mxu0 0.0
    %2244 = vmatpush1.msra.mxu0 0.0
    %2245 = vmatprep.subr.mxu0 0.0
    %2246 = vmatpush1.msra.mxu0 0.0
    %2247 = vmatprep.subr.mxu0 0.0
    %2248 = vmatpush1.msra.mxu0 0.0
    %2249 = vmatprep.subr.mxu0 0.0
    %2250 = vmatpush1.msra.mxu0 0.0
    %2251 = vmatprep.subr.mxu0 0.0
    %2252 = vmatpush1.msra.mxu0 0.0
    %2253 = vmatprep.subr.mxu0 0.0
    %2254 = vmatpush1.msra.mxu0 0.0
    %2255 = vmatprep.subr.mxu0 0.0
    %2256 = vmatpush1.msra.mxu0 0.0
    %2257 = vmatprep.subr.mxu0 0.0
    %2258 = vmatpush1.msra.mxu0 0.0
    %2259 = vmatprep.subr.mxu0 0.0
    %2260 = vmatpush1.msra.mxu0 0.0
    %2261 = vmatprep.subr.mxu0 0.0
    %2262 = vmatpush1.msra.mxu0 0.0
    %2263 = vmatprep.subr.mxu0 0.0
    %2264 = vmatpush1.msra.mxu0 0.0
    %2265 = vmatprep.subr.mxu0 0.0
    %2266 = vmatpush1.msra.mxu0 0.0
    %2267 = vmatprep.subr.mxu0 0.0
    %2268 = vmatpush1.msra.mxu0 0.0
    %2269 = vmatprep.subr.mxu0 0.0
    %2270 = vmatpush1.msra.mxu0 0.0
    %2271 = vmatprep.subr.mxu0 0.0
    %2272 = vmatpush1.msra.mxu0 0.0
    %2273 = vmatprep.subr.mxu0 0.0
    %2274 = vmatpush1.msra.mxu0 0.0
    %2275 = vmatprep.subr.mxu0 0.0
    %2276 = vmatpush1.msra.mxu0 0.0
    %2277 = vmatprep.subr.mxu0 0.0
    %2278 = vmatpush1.msra.mxu0 0.0
    %2279 = vmatprep.mubr.f32.mxu0 0.0
    %2280 = vmatmul.mubr.f32.gmra.mrb[0].mxu0 %v2213
    %v2281 = vpop.f32.mrb[0].mxu0
    %v2282 = vadd.f32 %v2210, %v2281
    %v2283 = vpop.f32.mrb[0].mxu0
    %2284 = vdwg.mxu0
    %2285 = vst.msk [vmem:[#allocation2 + $0x18] sm:$0xff] %vm1802, %v2282
    %v2286 = vld [vmem:[#allocation2] sm:$0xff]
    %v2287 = vld [vmem:[#allocation2 + $0x8] sm:$0xff]
    %v2288 = vld [vmem:[#allocation2 + $0x10] sm:$0xff]
    %v2289 = vld [vmem:[#allocation2 + $0x18] sm:$0xff]
    %v2290 = vld [vmem:[%s1 + $0x280] sm:$0xff]
    %v2291 = vld [vmem:[%s1 + $0x288] sm:$0xff]
    %v2292 = vld [vmem:[%s1 + $0x290] sm:$0xff]
    %v2293 = vld [vmem:[%s1 + $0x298] sm:$0xff]
    %2295 = vset.pattern.permute.xlu0 0
    %2296 = vperm.xlu0 %2295, %v2290
    %v2297 = vpop.permute.xlu0 %2296
    %2300 = vset.pattern.permute.xlu0 0
    %2301 = vperm.xlu0 %2300, %v2291
    %v2302 = vpop.permute.xlu0 %2301
    %2305 = vset.pattern.permute.xlu0 0
    %2306 = vperm.xlu0 %2305, %v2292
    %v2307 = vpop.permute.xlu0 %2306
    %2310 = vset.pattern.permute.xlu0 0
    %2311 = vperm.xlu0 %2310, %v2293
    %v2312 = vpop.permute.xlu0 %2311
    %v2314 = vmul.f32 %v2286, %v2297
    %v2315 = vmul.f32 %v2287, %v2302
    %v2316 = vmul.f32 %v2288, %v2307
    %v2317 = vmul.f32 %v2289, %v2312
    %v2318 = vld [vmem:[%s1 + $0x2a0] sm:$0xff]
    %v2319 = vld [vmem:[%s1 + $0x2a8] sm:$0xff]
    %v2320 = vld [vmem:[%s1 + $0x2b0] sm:$0xff]
    %v2321 = vld [vmem:[%s1 + $0x2b8] sm:$0xff]
    %2323 = vset.pattern.permute.xlu0 0
    %2324 = vperm.xlu0 %2323, %v2318
    %v2325 = vpop.permute.xlu0 %2324
    %2328 = vset.pattern.permute.xlu0 0
    %2329 = vperm.xlu0 %2328, %v2319
    %v2330 = vpop.permute.xlu0 %2329
    %2333 = vset.pattern.permute.xlu0 0
    %2334 = vperm.xlu0 %2333, %v2320
    %v2335 = vpop.permute.xlu0 %2334
    %2338 = vset.pattern.permute.xlu0 0
    %2339 = vperm.xlu0 %2338, %v2321
    %v2340 = vpop.permute.xlu0 %2339
    %v2342 = vadd.f32 %v2314, %v2325
    %v2343 = vadd.f32 %v2315, %v2330
    %v2344 = vadd.f32 %v2316, %v2335
    %v2345 = vadd.f32 %v2317, %v2340
    %v2346 = vmax.f32 %v2342, 0.0
    %v2347 = vmax.f32 %v2343, 0.0
    %v2348 = vmax.f32 %v2344, 0.0
    %v2349 = vmax.f32 %v2345, 0.0
    %v2350 = vld [vmem:[#allocation3 + $0x150] sm:$0xff]
    %v2351 = vld [vmem:[#allocation3 + $0x158] sm:$0xff]
    %2352 = vrot.lane.b32.xlu0 %v2346, 32
    %v2353 = vpop.permute.xlu0 %2352
    %v2354 = vsel %vm1947, %v2353, %v2346
    %2355 = vrot.lane.b32.xlu0 %v2347, 32
    %v2356 = vpop.permute.xlu0 %2355
    %v2357 = vsel %vm1947, %v2356, %v2347
    %2358 = vrot.lane.b32.xlu0 %v2348, 32
    %v2359 = vpop.permute.xlu0 %2358
    %v2360 = vsel %vm1947, %v2359, %v2348
    %2361 = vrot.lane.b32.xlu0 %v2349, 32
    %v2362 = vpop.permute.xlu0 %2361
    %v2363 = vsel %vm1947, %v2362, %v2349
    %2364 = vrot.lane.b32.xlu0 %v2354, 32
    %v2365 = vpop.permute.xlu0 %2364
    %2366 = vrot.lane.b32.xlu0 %v2357, 32
    %v2367 = vpop.permute.xlu0 %2366
    %2368 = vrot.lane.b32.xlu0 %v2360, 32
    %v2369 = vpop.permute.xlu0 %2368
    %2370 = vrot.lane.b32.xlu0 %v2363, 32
    %v2371 = vpop.permute.xlu0 %2370
    %v2372 = vsel %vm1947, %v2365, %v2346
    %v2373 = vsel %vm1947, %v2367, %v2347
    %v2374 = vsel %vm1947, %v2369, %v2348
    %v2375 = vsel %vm1947, %v2371, %v2349
    %2380 = vrot.lane.b32.xlu0 %v2372, 97
    %v2381 = vpop.permute.xlu0 %2380
    %2382 = vrot.lane.b32.xlu0 %v2373, 97
    %v2383 = vpop.permute.xlu0 %2382
    %2384 = vrot.lane.b32.xlu0 %v2374, 97
    %v2385 = vpop.permute.xlu0 %2384
    %2386 = vrot.lane.b32.xlu0 %v2375, 97
    %v2387 = vpop.permute.xlu0 %2386
    %v2392 = vsel %vm1955, %v2381, 0.0
    %v2393 = vsel %vm1955, %v2383, 0.0
    %v2394 = vsel %vm1955, %v2385, 0.0
    %v2395 = vsel %vm1955, %v2387, 0.0
    %2396 = vrot.lane.b32.xlu0 %v2372, 127
    %v2397 = vpop.permute.xlu0 %2396
    %2398 = vrot.lane.b32.xlu0 %v2373, 127
    %v2399 = vpop.permute.xlu0 %2398
    %2400 = vrot.lane.b32.xlu0 %v2374, 127
    %v2401 = vpop.permute.xlu0 %2400
    %2402 = vrot.lane.b32.xlu0 %v2375, 127
    %v2403 = vpop.permute.xlu0 %2402
    %v2408 = vsel %vm1962, %v2397, 0.0
    %v2409 = vsel %vm1962, %v2399, 0.0
    %v2410 = vsel %vm1962, %v2401, 0.0
    %v2411 = vsel %vm1962, %v2403, 0.0
    %v2412 = vld [vmem:[%s1 + $0x2c0] sm:$0xff]
    %v2413 = vld [vmem:[%s1 + $0x2c8] sm:$0xff]
    %2415 = vset.pattern.permute.xlu0 0
    %2416 = vperm.xlu0 %2415, %v2412
    %v2417 = vpop.permute.xlu0 %2416
    %2420 = vset.pattern.permute.xlu0 0
    %2421 = vperm.xlu0 %2420, %v2413
    %v2422 = vpop.permute.xlu0 %2421
    %v2425 = vsel %vm837, %v2350, 0
    %v2428 = vsel %vm837, %v2351, 0
    %2430 = vmatprep.subr.mxu0 0.0
    %2431 = vmatpush1.msra.mxu0 %v2392
    %2432 = vmatprep.subr.mxu0 0.0
    %2433 = vmatpush1.msra.mxu0 %v2393
    %2434 = vmatprep.subr.mxu0 0.0
    %2435 = vmatpush1.msra.mxu0 %v2394
    %2436 = vmatprep.subr.mxu0 0.0
    %2437 = vmatpush1.msra.mxu0 %v2395
    %2438 = vmatprep.subr.mxu0 0.0
    %2439 = vmatpush1.msra.mxu0 %v2346
    %2440 = vmatprep.subr.mxu0 0.0
    %2441 = vmatpush1.msra.mxu0 %v2347
    %2442 = vmatprep.subr.mxu0 0.0
    %2443 = vmatpush1.msra.mxu0 %v2348
    %2444 = vmatprep.subr.mxu0 0.0
    %2445 = vmatpush1.msra.mxu0 %v2349
    %2446 = vmatprep.subr.mxu0 0.0
    %2447 = vmatpush1.msra.mxu0 %v2408
    %2448 = vmatprep.subr.mxu0 0.0
    %2449 = vmatpush1.msra.mxu0 %v2409
    %2450 = vmatprep.subr.mxu0 0.0
    %2451 = vmatpush1.msra.mxu0 %v2410
    %2452 = vmatprep.subr.mxu0 0.0
    %2453 = vmatpush1.msra.mxu0 %v2411
    %2454 = vmatprep.subr.mxu0 0.0
    %2455 = vmatpush1.msra.mxu0 0.0
    %2456 = vmatprep.subr.mxu0 0.0
    %2457 = vmatpush1.msra.mxu0 0.0
    %2458 = vmatprep.subr.mxu0 0.0
    %2459 = vmatpush1.msra.mxu0 0.0
    %2460 = vmatprep.subr.mxu0 0.0
    %2461 = vmatpush1.msra.mxu0 0.0
    %2462 = vmatprep.subr.mxu0 0.0
    %2463 = vmatpush1.msra.mxu0 0.0
    %2464 = vmatprep.subr.mxu0 0.0
    %2465 = vmatpush1.msra.mxu0 0.0
    %2466 = vmatprep.subr.mxu0 0.0
    %2467 = vmatpush1.msra.mxu0 0.0
    %2468 = vmatprep.subr.mxu0 0.0
    %2469 = vmatpush1.msra.mxu0 0.0
    %2470 = vmatprep.subr.mxu0 0.0
    %2471 = vmatpush1.msra.mxu0 0.0
    %2472 = vmatprep.subr.mxu0 0.0
    %2473 = vmatpush1.msra.mxu0 0.0
    %2474 = vmatprep.subr.mxu0 0.0
    %2475 = vmatpush1.msra.mxu0 0.0
    %2476 = vmatprep.subr.mxu0 0.0
    %2477 = vmatpush1.msra.mxu0 0.0
    %2478 = vmatprep.subr.mxu0 0.0
    %2479 = vmatpush1.msra.mxu0 0.0
    %2480 = vmatprep.subr.mxu0 0.0
    %2481 = vmatpush1.msra.mxu0 0.0
    %2482 = vmatprep.subr.mxu0 0.0
    %2483 = vmatpush1.msra.mxu0 0.0
    %2484 = vmatprep.subr.mxu0 0.0
    %2485 = vmatpush1.msra.mxu0 0.0
    %2486 = vmatprep.subr.mxu0 0.0
    %2487 = vmatpush1.msra.mxu0 0.0
    %2488 = vmatprep.subr.mxu0 0.0
    %2489 = vmatpush1.msra.mxu0 0.0
    %2490 = vmatprep.subr.mxu0 0.0
    %2491 = vmatpush1.msra.mxu0 0.0
    %2492 = vmatprep.subr.mxu0 0.0
    %2493 = vmatpush1.msra.mxu0 0.0
    %2494 = vmatprep.mubr.f32.mxu0 0.0
    %2495 = vmatmul.mubr.f32.gmra.mrb[0].mxu0 %v2425
    %v2496 = vpop.f32.mrb[0].mxu0
    %v2497 = vadd.f32 %v2417, %v2496
    %v2498 = vpop.f32.mrb[0].mxu0
    %2499 = vmatprep.mubr.f32.mxu0 0.0
    %2500 = vmatmul.mubr.f32.gmra.mrb[0].mxu0 %v2428
    %v2501 = vpop.f32.mrb[0].mxu0
    %v2502 = vadd.f32 %v2422, %v2501
    %v2503 = vpop.f32.mrb[0].mxu0
    %2504 = vdwg.mxu0
    %v2505 = vld [vmem:[#allocation3 + $0x160] sm:$0xff]
    %v2506 = vld [vmem:[#allocation3 + $0x168] sm:$0xff]
    %v2507 = vld [vmem:[#allocation3 + $0x170] sm:$0xff]
    %v2508 = vld [vmem:[#allocation3 + $0x178] sm:$0xff]
    %v2510 = vsel %vm1802, %v2497, 0
    %v2513 = vsel %vm1802, %v2502, 0
    %2515 = vmatprep.subr.mxu0 0.0
    %2516 = vmatpush1.msra.mxu0 %v2505
    %2517 = vmatprep.subr.mxu0 0.0
    %2518 = vmatpush1.msra.mxu0 %v2506
    %2519 = vmatprep.subr.mxu0 0.0
    %2520 = vmatpush1.msra.mxu0 %v2507
    %2521 = vmatprep.subr.mxu0 0.0
    %2522 = vmatpush1.msra.mxu0 %v2508
    %2523 = vmatprep.subr.mxu0 0.0
    %2524 = vmatpush1.msra.mxu0 0.0
    %2525 = vmatprep.subr.mxu0 0.0
    %2526 = vmatpush1.msra.mxu0 0.0
    %2527 = vmatprep.subr.mxu0 0.0
    %2528 = vmatpush1.msra.mxu0 0.0
    %2529 = vmatprep.subr.mxu0 0.0
    %2530 = vmatpush1.msra.mxu0 0.0
    %2531 = vmatprep.subr.mxu0 0.0
    %2532 = vmatpush1.msra.mxu0 0.0
    %2533 = vmatprep.subr.mxu0 0.0
    %2534 = vmatpush1.msra.mxu0 0.0
    %2535 = vmatprep.subr.mxu0 0.0
    %2536 = vmatpush1.msra.mxu0 0.0
    %2537 = vmatprep.subr.mxu0 0.0
    %2538 = vmatpush1.msra.mxu0 0.0
    %2539 = vmatprep.subr.mxu0 0.0
    %2540 = vmatpush1.msra.mxu0 0.0
    %2541 = vmatprep.subr.mxu0 0.0
    %2542 = vmatpush1.msra.mxu0 0.0
    %2543 = vmatprep.subr.mxu0 0.0
    %2544 = vmatpush1.msra.mxu0 0.0
    %2545 = vmatprep.subr.mxu0 0.0
    %2546 = vmatpush1.msra.mxu0 0.0
    %2547 = vmatprep.subr.mxu0 0.0
    %2548 = vmatpush1.msra.mxu0 0.0
    %2549 = vmatprep.subr.mxu0 0.0
    %2550 = vmatpush1.msra.mxu0 0.0
    %2551 = vmatprep.subr.mxu0 0.0
    %2552 = vmatpush1.msra.mxu0 0.0
    %2553 = vmatprep.subr.mxu0 0.0
    %2554 = vmatpush1.msra.mxu0 0.0
    %2555 = vmatprep.subr.mxu0 0.0
    %2556 = vmatpush1.msra.mxu0 0.0
    %2557 = vmatprep.subr.mxu0 0.0
    %2558 = vmatpush1.msra.mxu0 0.0
    %2559 = vmatprep.subr.mxu0 0.0
    %2560 = vmatpush1.msra.mxu0 0.0
    %2561 = vmatprep.subr.mxu0 0.0
    %2562 = vmatpush1.msra.mxu0 0.0
    %2563 = vmatprep.subr.mxu0 0.0
    %2564 = vmatpush1.msra.mxu0 0.0
    %2565 = vmatprep.subr.mxu0 0.0
    %2566 = vmatpush1.msra.mxu0 0.0
    %2567 = vmatprep.subr.mxu0 0.0
    %2568 = vmatpush1.msra.mxu0 0.0
    %2569 = vmatprep.subr.mxu0 0.0
    %2570 = vmatpush1.msra.mxu0 0.0
    %2571 = vmatprep.subr.mxu0 0.0
    %2572 = vmatpush1.msra.mxu0 0.0
    %2573 = vmatprep.subr.mxu0 0.0
    %2574 = vmatpush1.msra.mxu0 0.0
    %2575 = vmatprep.subr.mxu0 0.0
    %2576 = vmatpush1.msra.mxu0 0.0
    %2577 = vmatprep.subr.mxu0 0.0
    %2578 = vmatpush1.msra.mxu0 0.0
    %2579 = vmatprep.mubr.f32.mxu0 0.0
    %2580 = vmatmul.mubr.f32.gmra.mrb[0].mxu0 %v2510
    %v2581 = vpop.f32.mrb[0].mxu0
    %v2582 = vadd.f32 0.0, %v2581
    %v2583 = vpop.f32.mrb[0].mxu0
    %2584 = vmatprep.mubr.f32.mxu0 0.0
    %2585 = vmatmul.mubr.f32.gmra.mrb[0].mxu0 %v2513
    %v2586 = vpop.f32.mrb[0].mxu0
    %v2587 = vadd.f32 0.0, %v2586
    %v2588 = vpop.f32.mrb[0].mxu0
    %2589 = vdwg.mxu0
    %2590 = vst.msk [vmem:[#allocation2] sm:$0xff] %vm324, %v2582
    %2591 = vst.msk [vmem:[#allocation2 + $0x8] sm:$0xff] %vm324, %v2587
    %vm2592 = vcmp.lt.s32.totalorder %v270, 0
    %v2593 = vsub.s32 0, %v270
    %v2594 = vsel %vm2592, %v2593, %v270
    %v2595 = vshrl.u32 %v2594, 2
    %v2596 = vand.u32 %v2594, 3
    %v2597 = vsub.s32 0, %v2596
    %v2598 = vsel %vm2592, %v2597, %v2596
    %vm2599 = vcmp.ne.s32.totalorder %v2598, 0
    %vm2600 = vcmp.lt.s32.totalorder %v2598, 0
    %vm2601 = vmand %vm2600, %vm2599
    %v2602 = vadd.s32 %v2598, 4
    %v2603 = vsel %vm2601, %v2602, %v2598
    %vm2604 = vcmp.ne.s32.totalorder %v2603, 0
    %vm2605 = vcmp.ne.s32.totalorder %v2603, 3
    %v2606 = vld [vmem:[#allocation2] sm:$0xff]
    %v2607 = vld [vmem:[#allocation2 + $0x8] sm:$0xff]
    %v2608 = vld [vmem:[%s1 + $0x2d0] sm:$0xff]
    %v2609 = vld [vmem:[%s1 + $0x2d8] sm:$0xff]
    %2611 = vset.pattern.permute.xlu0 0
    %2612 = vperm.xlu0 %2611, %v2608
    %v2613 = vpop.permute.xlu0 %2612
    %2616 = vset.pattern.permute.xlu0 0
    %2617 = vperm.xlu0 %2616, %v2609
    %v2618 = vpop.permute.xlu0 %2617
    %v2620 = vmul.f32 %v2606, %v2613
    %v2621 = vmul.f32 %v2607, %v2618
    %v2622 = vld [vmem:[%s1 + $0x2e0] sm:$0xff]
    %v2623 = vld [vmem:[%s1 + $0x2e8] sm:$0xff]
    %2625 = vset.pattern.permute.xlu0 0
    %2626 = vperm.xlu0 %2625, %v2622
    %v2627 = vpop.permute.xlu0 %2626
    %2630 = vset.pattern.permute.xlu0 0
    %2631 = vperm.xlu0 %2630, %v2623
    %v2632 = vpop.permute.xlu0 %2631
    %v2634 = vadd.f32 %v2620, %v2627
    %v2635 = vadd.f32 %v2621, %v2632
    %v2636 = vmax.f32 %v2634, 0.0
    %v2637 = vmax.f32 %v2635, 0.0
    %v2638 = vld [vmem:[#allocation3 + $0x180] sm:$0xff]
    %v2639 = vld [vmem:[%s1 + $0x2f0] sm:$0xff]
    %2641 = vset.pattern.permute.xlu0 0
    %2642 = vperm.xlu0 %2641, %v2639
    %v2643 = vpop.permute.xlu0 %2642
    %v2646 = vsel %vm324, %v2638, 0
    %2648 = vmatprep.subr.mxu0 0.0
    %2649 = vmatpush1.msra.mxu0 %v2636
    %2650 = vmatprep.subr.mxu0 0.0
    %2651 = vmatpush1.msra.mxu0 %v2637
    %2652 = vmatprep.subr.mxu0 0.0
    %2653 = vmatpush1.msra.mxu0 0.0
    %2654 = vmatprep.subr.mxu0 0.0
    %2655 = vmatpush1.msra.mxu0 0.0
    %2656 = vmatprep.subr.mxu0 0.0
    %2657 = vmatpush1.msra.mxu0 0.0
    %2658 = vmatprep.subr.mxu0 0.0
    %2659 = vmatpush1.msra.mxu0 0.0
    %2660 = vmatprep.subr.mxu0 0.0
    %2661 = vmatpush1.msra.mxu0 0.0
    %2662 = vmatprep.subr.mxu0 0.0
    %2663 = vmatpush1.msra.mxu0 0.0
    %2664 = vmatprep.subr.mxu0 0.0
    %2665 = vmatpush1.msra.mxu0 0.0
    %2666 = vmatprep.subr.mxu0 0.0
    %2667 = vmatpush1.msra.mxu0 0.0
    %2668 = vmatprep.subr.mxu0 0.0
    %2669 = vmatpush1.msra.mxu0 0.0
    %2670 = vmatprep.subr.mxu0 0.0
    %2671 = vmatpush1.msra.mxu0 0.0
    %2672 = vmatprep.subr.mxu0 0.0
    %2673 = vmatpush1.msra.mxu0 0.0
    %2674 = vmatprep.subr.mxu0 0.0
    %2675 = vmatpush1.msra.mxu0 0.0
    %2676 = vmatprep.subr.mxu0 0.0
    %2677 = vmatpush1.msra.mxu0 0.0
    %2678 = vmatprep.subr.mxu0 0.0
    %2679 = vmatpush1.msra.mxu0 0.0
    %2680 = vmatprep.subr.mxu0 0.0
    %2681 = vmatpush1.msra.mxu0 0.0
    %2682 = vmatprep.subr.mxu0 0.0
    %2683 = vmatpush1.msra.mxu0 0.0
    %2684 = vmatprep.subr.mxu0 0.0
    %2685 = vmatpush1.msra.mxu0 0.0
    %2686 = vmatprep.subr.mxu0 0.0
    %2687 = vmatpush1.msra.mxu0 0.0
    %2688 = vmatprep.subr.mxu0 0.0
    %2689 = vmatpush1.msra.mxu0 0.0
    %2690 = vmatprep.subr.mxu0 0.0
    %2691 = vmatpush1.msra.mxu0 0.0
    %2692 = vmatprep.subr.mxu0 0.0
    %2693 = vmatpush1.msra.mxu0 0.0
    %2694 = vmatprep.subr.mxu0 0.0
    %2695 = vmatpush1.msra.mxu0 0.0
    %2696 = vmatprep.subr.mxu0 0.0
    %2697 = vmatpush1.msra.mxu0 0.0
    %2698 = vmatprep.subr.mxu0 0.0
    %2699 = vmatpush1.msra.mxu0 0.0
    %2700 = vmatprep.subr.mxu0 0.0
    %2701 = vmatpush1.msra.mxu0 0.0
    %2702 = vmatprep.subr.mxu0 0.0
    %2703 = vmatpush1.msra.mxu0 0.0
    %2704 = vmatprep.subr.mxu0 0.0
    %2705 = vmatpush1.msra.mxu0 0.0
    %2706 = vmatprep.subr.mxu0 0.0
    %2707 = vmatpush1.msra.mxu0 0.0
    %2708 = vmatprep.subr.mxu0 0.0
    %2709 = vmatpush1.msra.mxu0 0.0
    %2710 = vmatprep.subr.mxu0 0.0
    %2711 = vmatpush1.msra.mxu0 0.0
    %2712 = vmatprep.mubr.f32.mxu0 0.0
    %2713 = vmatmul.mubr.f32.gmra.mrb[0].mxu0 %v2646
    %v2714 = vpop.f32.mrb[0].mxu0
    %v2715 = vadd.f32 %v2643, %v2714
    %v2716 = vpop.f32.mrb[0].mxu0
    %2717 = vdwg.mxu0
    %v2718 = vld [vmem:[%s1 + $0x2f8] sm:$0xff]
    %2720 = vset.pattern.permute.xlu0 0
    %2721 = vperm.xlu0 %2720, %v2718
    %v2722 = vpop.permute.xlu0 %2721
    %v2724 = vmul.f32 %v2715, %v2722
    %v2725 = vld [vmem:[%s1 + $0x300] sm:$0xff]
    %2727 = vset.pattern.permute.xlu0 0
    %2728 = vperm.xlu0 %2727, %v2725
    %v2729 = vpop.permute.xlu0 %2728
    %v2731 = vadd.f32 %v2724, %v2729
    %v2732 = vmax.f32 %v2731, 0.0
    %v2733 = vld [vmem:[#allocation3 + $0x188] sm:$0xff]
    %vm2734 = vcmask 1047680
    %2735 = vrot.lane.b32.xlu0 %v2732, 16
    %v2736 = vpop.permute.xlu0 %2735
    %v2737 = vsel %vm2734, %v2736, %v2732
    %2738 = vrot.lane.b32.xlu0 %v2737, 16
    %v2739 = vpop.permute.xlu0 %2738
    %v2740 = vsel %vm2734, %v2739, %v2732
    %v2741 = vsel %vm2604, 1, 0
    %vm2742 = vcmp.eq.s32.totalorder %v2741, 1
    %2744 = vrot.lane.b32.xlu0 %v2740, 113
    %v2745 = vpop.permute.xlu0 %2744
    %v2747 = vsel %vm2742, %v2745, 0.0
    %v2748 = vsel %vm2605, 1, 0
    %vm2749 = vcmp.eq.s32.totalorder %v2748, 1
    %2750 = vrot.lane.b32.xlu0 %v2740, 127
    %v2751 = vpop.permute.xlu0 %2750
    %v2753 = vsel %vm2749, %v2751, 0.0
    %v2754 = vld [vmem:[%s1 + $0x308] sm:$0xff]
    %2756 = vset.pattern.permute.xlu0 0
    %2757 = vperm.xlu0 %2756, %v2754
    %v2758 = vpop.permute.xlu0 %2757
    %v2761 = vsel %vm430, %v2733, 0
    %2763 = vmatprep.subr.mxu0 0.0
    %2764 = vmatpush1.msra.mxu0 %v2747
    %2765 = vmatprep.subr.mxu0 0.0
    %2766 = vmatpush1.msra.mxu0 %v2732
    %2767 = vmatprep.subr.mxu0 0.0
    %2768 = vmatpush1.msra.mxu0 %v2753
    %2769 = vmatprep.subr.mxu0 0.0
    %2770 = vmatpush1.msra.mxu0 0.0
    %2771 = vmatprep.subr.mxu0 0.0
    %2772 = vmatpush1.msra.mxu0 0.0
    %2773 = vmatprep.subr.mxu0 0.0
    %2774 = vmatpush1.msra.mxu0 0.0
    %2775 = vmatprep.subr.mxu0 0.0
    %2776 = vmatpush1.msra.mxu0 0.0
    %2777 = vmatprep.subr.mxu0 0.0
    %2778 = vmatpush1.msra.mxu0 0.0
    %2779 = vmatprep.subr.mxu0 0.0
    %2780 = vmatpush1.msra.mxu0 0.0
    %2781 = vmatprep.subr.mxu0 0.0
    %2782 = vmatpush1.msra.mxu0 0.0
    %2783 = vmatprep.subr.mxu0 0.0
    %2784 = vmatpush1.msra.mxu0 0.0
    %2785 = vmatprep.subr.mxu0 0.0
    %2786 = vmatpush1.msra.mxu0 0.0
    %2787 = vmatprep.subr.mxu0 0.0
    %2788 = vmatpush1.msra.mxu0 0.0
    %2789 = vmatprep.subr.mxu0 0.0
    %2790 = vmatpush1.msra.mxu0 0.0
    %2791 = vmatprep.subr.mxu0 0.0
    %2792 = vmatpush1.msra.mxu0 0.0
    %2793 = vmatprep.subr.mxu0 0.0
    %2794 = vmatpush1.msra.mxu0 0.0
    %2795 = vmatprep.subr.mxu0 0.0
    %2796 = vmatpush1.msra.mxu0 0.0
    %2797 = vmatprep.subr.mxu0 0.0
    %2798 = vmatpush1.msra.mxu0 0.0
    %2799 = vmatprep.subr.mxu0 0.0
    %2800 = vmatpush1.msra.mxu0 0.0
    %2801 = vmatprep.subr.mxu0 0.0
    %2802 = vmatpush1.msra.mxu0 0.0
    %2803 = vmatprep.subr.mxu0 0.0
    %2804 = vmatpush1.msra.mxu0 0.0
    %2805 = vmatprep.subr.mxu0 0.0
    %2806 = vmatpush1.msra.mxu0 0.0
    %2807 = vmatprep.subr.mxu0 0.0
    %2808 = vmatpush1.msra.mxu0 0.0
    %2809 = vmatprep.subr.mxu0 0.0
    %2810 = vmatpush1.msra.mxu0 0.0
    %2811 = vmatprep.subr.mxu0 0.0
    %2812 = vmatpush1.msra.mxu0 0.0
    %2813 = vmatprep.subr.mxu0 0.0
    %2814 = vmatpush1.msra.mxu0 0.0
    %2815 = vmatprep.subr.mxu0 0.0
    %2816 = vmatpush1.msra.mxu0 0.0
    %2817 = vmatprep.subr.mxu0 0.0
    %2818 = vmatpush1.msra.mxu0 0.0
    %2819 = vmatprep.subr.mxu0 0.0
    %2820 = vmatpush1.msra.mxu0 0.0
    %2821 = vmatprep.subr.mxu0 0.0
    %2822 = vmatpush1.msra.mxu0 0.0
    %2823 = vmatprep.subr.mxu0 0.0
    %2824 = vmatpush1.msra.mxu0 0.0
    %2825 = vmatprep.subr.mxu0 0.0
    %2826 = vmatpush1.msra.mxu0 0.0
    %2827 = vmatprep.mubr.f32.mxu0 0.0
    %2828 = vmatmul.mubr.f32.gmra.mrb[0].mxu0 %v2761
    %v2829 = vpop.f32.mrb[0].mxu0
    %v2830 = vadd.f32 %v2758, %v2829
    %v2831 = vpop.f32.mrb[0].mxu0
    %2832 = vdwg.mxu0
    %2833 = vst.msk [vmem:[#allocation2 + $0x10] sm:$0xff] %vm324, %v2830
    %v2834 = vld [vmem:[#allocation2] sm:$0xff]
    %v2835 = vld [vmem:[#allocation2 + $0x8] sm:$0xff]
    %v2836 = vld [vmem:[#allocation2 + $0x10] sm:$0xff]
    %v2837 = vld [vmem:[%s1 + $0x310] sm:$0xff]
    %v2838 = vld [vmem:[%s1 + $0x318] sm:$0xff]
    %v2839 = vld [vmem:[%s1 + $0x320] sm:$0xff]
    %2841 = vset.pattern.permute.xlu0 0
    %2842 = vperm.xlu0 %2841, %v2837
    %v2843 = vpop.permute.xlu0 %2842
    %2846 = vset.pattern.permute.xlu0 0
    %2847 = vperm.xlu0 %2846, %v2838
    %v2848 = vpop.permute.xlu0 %2847
    %2851 = vset.pattern.permute.xlu0 0
    %2852 = vperm.xlu0 %2851, %v2839
    %v2853 = vpop.permute.xlu0 %2852
    %v2855 = vmul.f32 %v2834, %v2843
    %v2856 = vmul.f32 %v2835, %v2848
    %v2857 = vmul.f32 %v2836, %v2853
    %v2858 = vld [vmem:[%s1 + $0x328] sm:$0xff]
    %v2859 = vld [vmem:[%s1 + $0x330] sm:$0xff]
    %v2860 = vld [vmem:[%s1 + $0x338] sm:$0xff]
    %2862 = vset.pattern.permute.xlu0 0
    %2863 = vperm.xlu0 %2862, %v2858
    %v2864 = vpop.permute.xlu0 %2863
    %2867 = vset.pattern.permute.xlu0 0
    %2868 = vperm.xlu0 %2867, %v2859
    %v2869 = vpop.permute.xlu0 %2868
    %2872 = vset.pattern.permute.xlu0 0
    %2873 = vperm.xlu0 %2872, %v2860
    %v2874 = vpop.permute.xlu0 %2873
    %v2876 = vadd.f32 %v2855, %v2864
    %v2877 = vadd.f32 %v2856, %v2869
    %v2878 = vadd.f32 %v2857, %v2874
    %v2879 = vmax.f32 %v2876, 0.0
    %v2880 = vmax.f32 %v2877, 0.0
    %v2881 = vmax.f32 %v2878, 0.0
    %v2882 = vld [vmem:[#allocation3 + $0x190] sm:$0xff]
    %v2883 = vld [vmem:[%s1 + $0x340] sm:$0xff]
    %2885 = vset.pattern.permute.xlu0 0
    %2886 = vperm.xlu0 %2885, %v2883
    %v2887 = vpop.permute.xlu0 %2886
    %v2890 = vsel %vm430, %v2882, 0
    %2892 = vmatprep.subr.mxu0 0.0
    %2893 = vmatpush1.msra.mxu0 %v2879
    %2894 = vmatprep.subr.mxu0 0.0
    %2895 = vmatpush1.msra.mxu0 %v2880
    %2896 = vmatprep.subr.mxu0 0.0
    %2897 = vmatpush1.msra.mxu0 %v2881
    %2898 = vmatprep.subr.mxu0 0.0
    %2899 = vmatpush1.msra.mxu0 0.0
    %2900 = vmatprep.subr.mxu0 0.0
    %2901 = vmatpush1.msra.mxu0 0.0
    %2902 = vmatprep.subr.mxu0 0.0
    %2903 = vmatpush1.msra.mxu0 0.0
    %2904 = vmatprep.subr.mxu0 0.0
    %2905 = vmatpush1.msra.mxu0 0.0
    %2906 = vmatprep.subr.mxu0 0.0
    %2907 = vmatpush1.msra.mxu0 0.0
    %2908 = vmatprep.subr.mxu0 0.0
    %2909 = vmatpush1.msra.mxu0 0.0
    %2910 = vmatprep.subr.mxu0 0.0
    %2911 = vmatpush1.msra.mxu0 0.0
    %2912 = vmatprep.subr.mxu0 0.0
    %2913 = vmatpush1.msra.mxu0 0.0
    %2914 = vmatprep.subr.mxu0 0.0
    %2915 = vmatpush1.msra.mxu0 0.0
    %2916 = vmatprep.subr.mxu0 0.0
    %2917 = vmatpush1.msra.mxu0 0.0
    %2918 = vmatprep.subr.mxu0 0.0
    %2919 = vmatpush1.msra.mxu0 0.0
    %2920 = vmatprep.subr.mxu0 0.0
    %2921 = vmatpush1.msra.mxu0 0.0
    %2922 = vmatprep.subr.mxu0 0.0
    %2923 = vmatpush1.msra.mxu0 0.0
    %2924 = vmatprep.subr.mxu0 0.0
    %2925 = vmatpush1.msra.mxu0 0.0
    %2926 = vmatprep.subr.mxu0 0.0
    %2927 = vmatpush1.msra.mxu0 0.0
    %2928 = vmatprep.subr.mxu0 0.0
    %2929 = vmatpush1.msra.mxu0 0.0
    %2930 = vmatprep.subr.mxu0 0.0
    %2931 = vmatpush1.msra.mxu0 0.0
    %2932 = vmatprep.subr.mxu0 0.0
    %2933 = vmatpush1.msra.mxu0 0.0
    %2934 = vmatprep.subr.mxu0 0.0
    %2935 = vmatpush1.msra.mxu0 0.0
    %2936 = vmatprep.subr.mxu0 0.0
    %2937 = vmatpush1.msra.mxu0 0.0
    %2938 = vmatprep.subr.mxu0 0.0
    %2939 = vmatpush1.msra.mxu0 0.0
    %2940 = vmatprep.subr.mxu0 0.0
    %2941 = vmatpush1.msra.mxu0 0.0
    %2942 = vmatprep.subr.mxu0 0.0
    %2943 = vmatpush1.msra.mxu0 0.0
    %2944 = vmatprep.subr.mxu0 0.0
    %2945 = vmatpush1.msra.mxu0 0.0
    %2946 = vmatprep.subr.mxu0 0.0
    %2947 = vmatpush1.msra.mxu0 0.0
    %2948 = vmatprep.subr.mxu0 0.0
    %2949 = vmatpush1.msra.mxu0 0.0
    %2950 = vmatprep.subr.mxu0 0.0
    %2951 = vmatpush1.msra.mxu0 0.0
    %2952 = vmatprep.subr.mxu0 0.0
    %2953 = vmatpush1.msra.mxu0 0.0
    %2954 = vmatprep.subr.mxu0 0.0
    %2955 = vmatpush1.msra.mxu0 0.0
    %2956 = vmatprep.mubr.f32.mxu0 0.0
    %2957 = vmatmul.mubr.f32.gmra.mrb[0].mxu0 %v2890
    %v2958 = vpop.f32.mrb[0].mxu0
    %v2959 = vadd.f32 %v2887, %v2958
    %v2960 = vpop.f32.mrb[0].mxu0
    %2961 = vdwg.mxu0
    %v2962 = vld [vmem:[%s1 + $0x348] sm:$0xff]
    %2964 = vset.pattern.permute.xlu0 0
    %2965 = vperm.xlu0 %2964, %v2962
    %v2966 = vpop.permute.xlu0 %2965
    %v2968 = vmul.f32 %v2959, %v2966
    %v2969 = vld [vmem:[%s1 + $0x350] sm:$0xff]
    %2971 = vset.pattern.permute.xlu0 0
    %2972 = vperm.xlu0 %2971, %v2969
    %v2973 = vpop.permute.xlu0 %2972
    %v2975 = vadd.f32 %v2968, %v2973
    %v2976 = vmax.f32 %v2975, 0.0
    %v2977 = vld [vmem:[#allocation3 + $0x198] sm:$0xff]
    %2978 = vrot.lane.b32.xlu0 %v2976, 16
    %v2979 = vpop.permute.xlu0 %2978
    %v2980 = vsel %vm2734, %v2979, %v2976
    %2981 = vrot.lane.b32.xlu0 %v2980, 16
    %v2982 = vpop.permute.xlu0 %2981
    %v2983 = vsel %vm2734, %v2982, %v2976
    %2985 = vrot.lane.b32.xlu0 %v2983, 113
    %v2986 = vpop.permute.xlu0 %2985
    %v2988 = vsel %vm2742, %v2986, 0.0
    %2989 = vrot.lane.b32.xlu0 %v2983, 127
    %v2990 = vpop.permute.xlu0 %2989
    %v2992 = vsel %vm2749, %v2990, 0.0
    %v2993 = vld [vmem:[%s1 + $0x358] sm:$0xff]
    %2995 = vset.pattern.permute.xlu0 0
    %2996 = vperm.xlu0 %2995, %v2993
    %v2997 = vpop.permute.xlu0 %2996
    %v3000 = vsel %vm430, %v2977, 0
    %3002 = vmatprep.subr.mxu0 0.0
    %3003 = vmatpush1.msra.mxu0 %v2988
    %3004 = vmatprep.subr.mxu0 0.0
    %3005 = vmatpush1.msra.mxu0 %v2976
    %3006 = vmatprep.subr.mxu0 0.0
    %3007 = vmatpush1.msra.mxu0 %v2992
    %3008 = vmatprep.subr.mxu0 0.0
    %3009 = vmatpush1.msra.mxu0 0.0
    %3010 = vmatprep.subr.mxu0 0.0
    %3011 = vmatpush1.msra.mxu0 0.0
    %3012 = vmatprep.subr.mxu0 0.0
    %3013 = vmatpush1.msra.mxu0 0.0
    %3014 = vmatprep.subr.mxu0 0.0
    %3015 = vmatpush1.msra.mxu0 0.0
    %3016 = vmatprep.subr.mxu0 0.0
    %3017 = vmatpush1.msra.mxu0 0.0
    %3018 = vmatprep.subr.mxu0 0.0
    %3019 = vmatpush1.msra.mxu0 0.0
    %3020 = vmatprep.subr.mxu0 0.0
    %3021 = vmatpush1.msra.mxu0 0.0
    %3022 = vmatprep.subr.mxu0 0.0
    %3023 = vmatpush1.msra.mxu0 0.0
    %3024 = vmatprep.subr.mxu0 0.0
    %3025 = vmatpush1.msra.mxu0 0.0
    %3026 = vmatprep.subr.mxu0 0.0
    %3027 = vmatpush1.msra.mxu0 0.0
    %3028 = vmatprep.subr.mxu0 0.0
    %3029 = vmatpush1.msra.mxu0 0.0
    %3030 = vmatprep.subr.mxu0 0.0
    %3031 = vmatpush1.msra.mxu0 0.0
    %3032 = vmatprep.subr.mxu0 0.0
    %3033 = vmatpush1.msra.mxu0 0.0
    %3034 = vmatprep.subr.mxu0 0.0
    %3035 = vmatpush1.msra.mxu0 0.0
    %3036 = vmatprep.subr.mxu0 0.0
    %3037 = vmatpush1.msra.mxu0 0.0
    %3038 = vmatprep.subr.mxu0 0.0
    %3039 = vmatpush1.msra.mxu0 0.0
    %3040 = vmatprep.subr.mxu0 0.0
    %3041 = vmatpush1.msra.mxu0 0.0
    %3042 = vmatprep.subr.mxu0 0.0
    %3043 = vmatpush1.msra.mxu0 0.0
    %3044 = vmatprep.subr.mxu0 0.0
    %3045 = vmatpush1.msra.mxu0 0.0
    %3046 = vmatprep.subr.mxu0 0.0
    %3047 = vmatpush1.msra.mxu0 0.0
    %3048 = vmatprep.subr.mxu0 0.0
    %3049 = vmatpush1.msra.mxu0 0.0
    %3050 = vmatprep.subr.mxu0 0.0
    %3051 = vmatpush1.msra.mxu0 0.0
    %3052 = vmatprep.subr.mxu0 0.0
    %3053 = vmatpush1.msra.mxu0 0.0
    %3054 = vmatprep.subr.mxu0 0.0
    %3055 = vmatpush1.msra.mxu0 0.0
    %3056 = vmatprep.subr.mxu0 0.0
    %3057 = vmatpush1.msra.mxu0 0.0
    %3058 = vmatprep.subr.mxu0 0.0
    %3059 = vmatpush1.msra.mxu0 0.0
    %3060 = vmatprep.subr.mxu0 0.0
    %3061 = vmatpush1.msra.mxu0 0.0
    %3062 = vmatprep.subr.mxu0 0.0
    %3063 = vmatpush1.msra.mxu0 0.0
    %3064 = vmatprep.subr.mxu0 0.0
    %3065 = vmatpush1.msra.mxu0 0.0
    %3066 = vmatprep.mubr.f32.mxu0 0.0
    %3067 = vmatmul.mubr.f32.gmra.mrb[0].mxu0 %v3000
    %v3068 = vpop.f32.mrb[0].mxu0
    %v3069 = vadd.f32 %v2997, %v3068
    %v3070 = vpop.f32.mrb[0].mxu0
    %3071 = vdwg.mxu0
    %3072 = vst.msk [vmem:[#allocation2 + $0x18] sm:$0xff] %vm324, %v3069
    %v3073 = vld [vmem:[#allocation2] sm:$0xff]
    %v3074 = vld [vmem:[#allocation2 + $0x8] sm:$0xff]
    %v3075 = vld [vmem:[#allocation2 + $0x10] sm:$0xff]
    %v3076 = vld [vmem:[#allocation2 + $0x18] sm:$0xff]
    %v3077 = vld [vmem:[#allocation3 + $0x1a0] sm:$0xff]
    %v3078 = vld [vmem:[#allocation3 + $0x1a8] sm:$0xff]
    %v3080 = vsel %vm324, %v3073, 0
    %v3083 = vsel %vm324, %v3074, 0
    %v3086 = vsel %vm324, %v3075, 0
    %v3089 = vsel %vm324, %v3076, 0
    %3091 = vmatprep.subr.mxu0 0.0
    %3092 = vmatpush1.msra.mxu0 %v3077
    %3093 = vmatprep.subr.mxu0 0.0
    %3094 = vmatpush1.msra.mxu0 %v3078
    %3095 = vmatprep.subr.mxu0 0.0
    %3096 = vmatpush1.msra.mxu0 0.0
    %3097 = vmatprep.subr.mxu0 0.0
    %3098 = vmatpush1.msra.mxu0 0.0
    %3099 = vmatprep.subr.mxu0 0.0
    %3100 = vmatpush1.msra.mxu0 0.0
    %3101 = vmatprep.subr.mxu0 0.0
    %3102 = vmatpush1.msra.mxu0 0.0
    %3103 = vmatprep.subr.mxu0 0.0
    %3104 = vmatpush1.msra.mxu0 0.0
    %3105 = vmatprep.subr.mxu0 0.0
    %3106 = vmatpush1.msra.mxu0 0.0
    %3107 = vmatprep.subr.mxu0 0.0
    %3108 = vmatpush1.msra.mxu0 0.0
    %3109 = vmatprep.subr.mxu0 0.0
    %3110 = vmatpush1.msra.mxu0 0.0
    %3111 = vmatprep.subr.mxu0 0.0
    %3112 = vmatpush1.msra.mxu0 0.0
    %3113 = vmatprep.subr.mxu0 0.0
    %3114 = vmatpush1.msra.mxu0 0.0
    %3115 = vmatprep.subr.mxu0 0.0
    %3116 = vmatpush1.msra.mxu0 0.0
    %3117 = vmatprep.subr.mxu0 0.0
    %3118 = vmatpush1.msra.mxu0 0.0
    %3119 = vmatprep.subr.mxu0 0.0
    %3120 = vmatpush1.msra.mxu0 0.0
    %3121 = vmatprep.subr.mxu0 0.0
    %3122 = vmatpush1.msra.mxu0 0.0
    %3123 = vmatprep.subr.mxu0 0.0
    %3124 = vmatpush1.msra.mxu0 0.0
    %3125 = vmatprep.subr.mxu0 0.0
    %3126 = vmatpush1.msra.mxu0 0.0
    %3127 = vmatprep.subr.mxu0 0.0
    %3128 = vmatpush1.msra.mxu0 0.0
    %3129 = vmatprep.subr.mxu0 0.0
    %3130 = vmatpush1.msra.mxu0 0.0
    %3131 = vmatprep.subr.mxu0 0.0
    %3132 = vmatpush1.msra.mxu0 0.0
    %3133 = vmatprep.subr.mxu0 0.0
    %3134 = vmatpush1.msra.mxu0 0.0
    %3135 = vmatprep.subr.mxu0 0.0
    %3136 = vmatpush1.msra.mxu0 0.0
    %3137 = vmatprep.subr.mxu0 0.0
    %3138 = vmatpush1.msra.mxu0 0.0
    %3139 = vmatprep.subr.mxu0 0.0
    %3140 = vmatpush1.msra.mxu0 0.0
    %3141 = vmatprep.subr.mxu0 0.0
    %3142 = vmatpush1.msra.mxu0 0.0
    %3143 = vmatprep.subr.mxu0 0.0
    %3144 = vmatpush1.msra.mxu0 0.0
    %3145 = vmatprep.subr.mxu0 0.0
    %3146 = vmatpush1.msra.mxu0 0.0
    %3147 = vmatprep.subr.mxu0 0.0
    %3148 = vmatpush1.msra.mxu0 0.0
    %3149 = vmatprep.subr.mxu0 0.0
    %3150 = vmatpush1.msra.mxu0 0.0
    %3151 = vmatprep.subr.mxu0 0.0
    %3152 = vmatpush1.msra.mxu0 0.0
    %3153 = vmatprep.subr.mxu0 0.0
    %3154 = vmatpush1.msra.mxu0 0.0
    %3155 = vmatprep.mubr.f32.mxu0 0.0
    %3156 = vmatmul.mubr.f32.gmra.mrb[0].mxu0 %v3080
    %v3157 = vpop.f32.mrb[0].mxu0
    %v3158 = vadd.f32 0.0, %v3157
    %v3159 = vpop.f32.mrb[0].mxu0
    %3160 = vmatprep.mubr.f32.mxu0 0.0
    %3161 = vmatmul.mubr.f32.gmra.mrb[0].mxu0 %v3083
    %v3162 = vpop.f32.mrb[0].mxu0
    %v3163 = vadd.f32 0.0, %v3162
    %v3164 = vpop.f32.mrb[0].mxu0
    %3165 = vmatprep.mubr.f32.mxu0 0.0
    %3166 = vmatmul.mubr.f32.gmra.mrb[0].mxu0 %v3086
    %v3167 = vpop.f32.mrb[0].mxu0
    %v3168 = vadd.f32 0.0, %v3167
    %v3169 = vpop.f32.mrb[0].mxu0
    %3170 = vmatprep.mubr.f32.mxu0 0.0
    %3171 = vmatmul.mubr.f32.gmra.mrb[0].mxu0 %v3089
    %v3172 = vpop.f32.mrb[0].mxu0
    %v3173 = vadd.f32 0.0, %v3172
    %v3174 = vpop.f32.mrb[0].mxu0
    %3175 = vdwg.mxu0
    %v3176 = vsub.f32 0.0, %v3158
    %v3177 = vsub.f32 0.0, %v3163
    %v3178 = vsub.f32 0.0, %v3168
    %v3179 = vsub.f32 0.0, %v3173
    %v3180 = vmul.f32 %v3176, 1.442695
    %v3181 = vpow.pop %v3180
    %v3182 = vmul.f32 %v3177, 1.442695
    %v3183 = vpow.pop %v3182
    %v3184 = vmul.f32 %v3178, 1.442695
    %v3185 = vpow.pop %v3184
    %v3186 = vmul.f32 %v3179, 1.442695
    %v3187 = vpow.pop %v3186
    %v3188 = vadd.f32 %v3181, 1.0
    %v3189 = vadd.f32 %v3183, 1.0
    %v3190 = vadd.f32 %v3185, 1.0
    %v3191 = vadd.f32 %v3187, 1.0
    %v3192 = vrcp.pop %v3188
    %v3193 = vmul.f32 1.0, %v3192
    %v3194 = vrcp.pop %v3189
    %v3195 = vmul.f32 1.0, %v3194
    %v3196 = vrcp.pop %v3190
    %v3197 = vmul.f32 1.0, %v3196
    %v3198 = vrcp.pop %v3191
    %v3199 = vmul.f32 1.0, %v3198
    %v3200 = vld [vmem:[#allocation3 + $0x1b0] sm:$0xff]
    %v3201 = vld [vmem:[#allocation3 + $0x1b8] sm:$0xff]
    %v3202 = vld [vmem:[#allocation3 + $0x1c0] sm:$0xff]
    %v3203 = vld [vmem:[#allocation3 + $0x1c8] sm:$0xff]
    %v3204 = vld [vmem:[%s1 + $0x360] sm:$0xff]
    %v3205 = vld [vmem:[%s1 + $0x368] sm:$0xff]
    %v3206 = vld [vmem:[%s1 + $0x370] sm:$0xff]
    %v3207 = vld [vmem:[%s1 + $0x378] sm:$0xff]
    %3209 = vset.pattern.permute.xlu0 0
    %3210 = vperm.xlu0 %3209, %v3204
    %v3211 = vpop.permute.xlu0 %3210
    %3214 = vset.pattern.permute.xlu0 0
    %3215 = vperm.xlu0 %3214, %v3205
    %v3216 = vpop.permute.xlu0 %3215
    %3219 = vset.pattern.permute.xlu0 0
    %3220 = vperm.xlu0 %3219, %v3206
    %v3221 = vpop.permute.xlu0 %3220
    %3224 = vset.pattern.permute.xlu0 0
    %3225 = vperm.xlu0 %3224, %v3207
    %v3226 = vpop.permute.xlu0 %3225
    %v3229 = vsel %vm1802, %v3200, 0
    %v3232 = vsel %vm1802, %v3201, 0
    %v3235 = vsel %vm1802, %v3202, 0
    %v3238 = vsel %vm1802, %v3203, 0
    %3240 = vmatprep.subr.mxu0 0.0
    %3241 = vmatpush1.msra.mxu0 %v3193
    %3242 = vmatprep.subr.mxu0 0.0
    %3243 = vmatpush1.msra.mxu0 %v3195
    %3244 = vmatprep.subr.mxu0 0.0
    %3245 = vmatpush1.msra.mxu0 %v3197
    %3246 = vmatprep.subr.mxu0 0.0
    %3247 = vmatpush1.msra.mxu0 %v3199
    %3248 = vmatprep.subr.mxu0 0.0
    %3249 = vmatpush1.msra.mxu0 0.0
    %3250 = vmatprep.subr.mxu0 0.0
    %3251 = vmatpush1.msra.mxu0 0.0
    %3252 = vmatprep.subr.mxu0 0.0
    %3253 = vmatpush1.msra.mxu0 0.0
    %3254 = vmatprep.subr.mxu0 0.0
    %3255 = vmatpush1.msra.mxu0 0.0
    %3256 = vmatprep.subr.mxu0 0.0
    %3257 = vmatpush1.msra.mxu0 0.0
    %3258 = vmatprep.subr.mxu0 0.0
    %3259 = vmatpush1.msra.mxu0 0.0
    %3260 = vmatprep.subr.mxu0 0.0
    %3261 = vmatpush1.msra.mxu0 0.0
    %3262 = vmatprep.subr.mxu0 0.0
    %3263 = vmatpush1.msra.mxu0 0.0
    %3264 = vmatprep.subr.mxu0 0.0
    %3265 = vmatpush1.msra.mxu0 0.0
    %3266 = vmatprep.subr.mxu0 0.0
    %3267 = vmatpush1.msra.mxu0 0.0
    %3268 = vmatprep.subr.mxu0 0.0
    %3269 = vmatpush1.msra.mxu0 0.0
    %3270 = vmatprep.subr.mxu0 0.0
    %3271 = vmatpush1.msra.mxu0 0.0
    %3272 = vmatprep.subr.mxu0 0.0
    %3273 = vmatpush1.msra.mxu0 0.0
    %3274 = vmatprep.subr.mxu0 0.0
    %3275 = vmatpush1.msra.mxu0 0.0
    %3276 = vmatprep.subr.mxu0 0.0
    %3277 = vmatpush1.msra.mxu0 0.0
    %3278 = vmatprep.subr.mxu0 0.0
    %3279 = vmatpush1.msra.mxu0 0.0
    %3280 = vmatprep.subr.mxu0 0.0
    %3281 = vmatpush1.msra.mxu0 0.0
    %3282 = vmatprep.subr.mxu0 0.0
    %3283 = vmatpush1.msra.mxu0 0.0
    %3284 = vmatprep.subr.mxu0 0.0
    %3285 = vmatpush1.msra.mxu0 0.0
    %3286 = vmatprep.subr.mxu0 0.0
    %3287 = vmatpush1.msra.mxu0 0.0
    %3288 = vmatprep.subr.mxu0 0.0
    %3289 = vmatpush1.msra.mxu0 0.0
    %3290 = vmatprep.subr.mxu0 0.0
    %3291 = vmatpush1.msra.mxu0 0.0
    %3292 = vmatprep.subr.mxu0 0.0
    %3293 = vmatpush1.msra.mxu0 0.0
    %3294 = vmatprep.subr.mxu0 0.0
    %3295 = vmatpush1.msra.mxu0 0.0
    %3296 = vmatprep.subr.mxu0 0.0
    %3297 = vmatpush1.msra.mxu0 0.0
    %3298 = vmatprep.subr.mxu0 0.0
    %3299 = vmatpush1.msra.mxu0 0.0
    %3300 = vmatprep.subr.mxu0 0.0
    %3301 = vmatpush1.msra.mxu0 0.0
    %3302 = vmatprep.subr.mxu0 0.0
    %3303 = vmatpush1.msra.mxu0 0.0
    %3304 = vmatprep.mubr.f32.mxu0 0.0
    %3305 = vmatmul.mubr.f32.gmra.mrb[0].mxu0 %v3229
    %v3306 = vpop.f32.mrb[0].mxu0
    %v3307 = vadd.f32 %v3211, %v3306
    %v3308 = vpop.f32.mrb[0].mxu0
    %3309 = vmatprep.mubr.f32.mxu0 0.0
    %3310 = vmatmul.mubr.f32.gmra.mrb[0].mxu0 %v3232
    %v3311 = vpop.f32.mrb[0].mxu0
    %v3312 = vadd.f32 %v3216, %v3311
    %v3313 = vpop.f32.mrb[0].mxu0
    %3314 = vmatprep.mubr.f32.mxu0 0.0
    %3315 = vmatmul.mubr.f32.gmra.mrb[0].mxu0 %v3235
    %v3316 = vpop.f32.mrb[0].mxu0
    %v3317 = vadd.f32 %v3221, %v3316
    %v3318 = vpop.f32.mrb[0].mxu0
    %3319 = vmatprep.mubr.f32.mxu0 0.0
    %3320 = vmatmul.mubr.f32.gmra.mrb[0].mxu0 %v3238
    %v3321 = vpop.f32.mrb[0].mxu0
    %v3322 = vadd.f32 %v3226, %v3321
    %v3323 = vpop.f32.mrb[0].mxu0
    %3324 = vdwg.mxu0
    %v3325 = vmax.f32 %v3307, 0.0
    %v3326 = vmax.f32 %v3312, 0.0
    %v3327 = vmax.f32 %v3317, 0.0
    %v3328 = vmax.f32 %v3322, 0.0
    %v3329 = vld [vmem:[#allocation3 + $0x1d0] sm:$0x3]
    %v3330 = vld [vmem:[%s1 + $0x380] sm:$0x3]
    %3332 = vset.pattern.permute.xlu0 0
    %3333 = vperm.xlu0 %3332, %v3330
    %v3334 = vpop.permute.xlu0 %3333
    %v3337 = vsel %vm1802, %v3329, 0
    %3339 = vmatprep.subr.mxu0 0.0
    %3340 = vmatpush1.msra.mxu0 %v3325
    %3341 = vmatprep.subr.mxu0 0.0
    %3342 = vmatpush1.msra.mxu0 %v3326
    %3343 = vmatprep.subr.mxu0 0.0
    %3344 = vmatpush1.msra.mxu0 %v3327
    %3345 = vmatprep.subr.mxu0 0.0
    %3346 = vmatpush1.msra.mxu0 %v3328
    %3347 = vmatprep.subr.mxu0 0.0
    %3348 = vmatpush1.msra.mxu0 0.0
    %3349 = vmatprep.subr.mxu0 0.0
    %3350 = vmatpush1.msra.mxu0 0.0
    %3351 = vmatprep.subr.mxu0 0.0
    %3352 = vmatpush1.msra.mxu0 0.0
    %3353 = vmatprep.subr.mxu0 0.0
    %3354 = vmatpush1.msra.mxu0 0.0
    %3355 = vmatprep.subr.mxu0 0.0
    %3356 = vmatpush1.msra.mxu0 0.0
    %3357 = vmatprep.subr.mxu0 0.0
    %3358 = vmatpush1.msra.mxu0 0.0
    %3359 = vmatprep.subr.mxu0 0.0
    %3360 = vmatpush1.msra.mxu0 0.0
    %3361 = vmatprep.subr.mxu0 0.0
    %3362 = vmatpush1.msra.mxu0 0.0
    %3363 = vmatprep.subr.mxu0 0.0
    %3364 = vmatpush1.msra.mxu0 0.0
    %3365 = vmatprep.subr.mxu0 0.0
    %3366 = vmatpush1.msra.mxu0 0.0
    %3367 = vmatprep.subr.mxu0 0.0
    %3368 = vmatpush1.msra.mxu0 0.0
    %3369 = vmatprep.subr.mxu0 0.0
    %3370 = vmatpush1.msra.mxu0 0.0
    %3371 = vmatprep.subr.mxu0 0.0
    %3372 = vmatpush1.msra.mxu0 0.0
    %3373 = vmatprep.subr.mxu0 0.0
    %3374 = vmatpush1.msra.mxu0 0.0
    %3375 = vmatprep.subr.mxu0 0.0
    %3376 = vmatpush1.msra.mxu0 0.0
    %3377 = vmatprep.subr.mxu0 0.0
    %3378 = vmatpush1.msra.mxu0 0.0
    %3379 = vmatprep.subr.mxu0 0.0
    %3380 = vmatpush1.msra.mxu0 0.0
    %3381 = vmatprep.subr.mxu0 0.0
    %3382 = vmatpush1.msra.mxu0 0.0
    %3383 = vmatprep.subr.mxu0 0.0
    %3384 = vmatpush1.msra.mxu0 0.0
    %3385 = vmatprep.subr.mxu0 0.0
    %3386 = vmatpush1.msra.mxu0 0.0
    %3387 = vmatprep.subr.mxu0 0.0
    %3388 = vmatpush1.msra.mxu0 0.0
    %3389 = vmatprep.subr.mxu0 0.0
    %3390 = vmatpush1.msra.mxu0 0.0
    %3391 = vmatprep.subr.mxu0 0.0
    %3392 = vmatpush1.msra.mxu0 0.0
    %3393 = vmatprep.subr.mxu0 0.0
    %3394 = vmatpush1.msra.mxu0 0.0
    %3395 = vmatprep.subr.mxu0 0.0
    %3396 = vmatpush1.msra.mxu0 0.0
    %3397 = vmatprep.subr.mxu0 0.0
    %3398 = vmatpush1.msra.mxu0 0.0
    %3399 = vmatprep.subr.mxu0 0.0
    %3400 = vmatpush1.msra.mxu0 0.0
    %3401 = vmatprep.subr.mxu0 0.0
    %3402 = vmatpush1.msra.mxu0 0.0
    %3403 = vmatprep.mubr.f32.mxu0 0.0
    %3404 = vmatmul.mubr.f32.gmra.mrb[0].mxu0 %v3337
    %v3405 = vpop.f32.mrb[0].mxu0
    %v3406 = vadd.f32 %v3334, %v3405
    %v3407 = vpop.f32.mrb[0].mxu0
    %3408 = vdwg.mxu0
    %vm3409 = vcmask 25600
    %3410 = vst.msk [vmem:[#allocation6] sm:$0x3] %vm3409, %v3406
    // Predicated region
    $region18: #{forward.1} parent=1 // pred_check
      _
    $region19: #{forward.1} parent=1 // pred_check_branch
      %3412 = sbr.rel (0) target = $region21
    $region20: #{forward.1} parent=1 // pred_region
      %s3414 = ssub.s32 32, 32
      %3415 = vsyncadd [#allocation5], %s3414
      %s3417 = sshll.u32 [#allocation6], 4
      %s3418 = int_to_ptr.vmem [resolvable:$true] %s3417
      %3420 = dma.vmem_to_hbm [thread:$0]  %s3418, 32, %s3, [#allocation5]
    $region21: #{forward.1} parent=1 // pred_fallthru
      _
    // Predicated region
    $region22: #{forward.1} parent=1 // pred_check
      _
    $region23: #{forward.1} parent=1 // pred_check_branch
      %3422 = sbr.rel (0) target = $region25
    $region24: #{forward.1} parent=1 // pred_region
      %3423 = dma.done [#allocation5], 32
    $region25: #{forward.1} parent=1 // pred_fallthru
      _
    %3424 = vsyncpa [#allocation4], 1
    %3425 = vsyncpa [#allocation5], 1

</llo_original>
